<compile_context>
chip_gen: v5e
topology: v5e:2x2
jax: 0.10.0
libtpu: 0.0.40
codegen_flags: <defaults>
</compile_context>

<pallas_src>
import jax
import jax.numpy as jnp
from jax import lax
from jax.experimental import pallas as pl
from jax.experimental.pallas import tpu as pltpu

CPAD = 128  # lane-dense padded channel width for all conv outputs


# ---------------------------------------------------------------------------
# In-kernel building blocks
# ---------------------------------------------------------------------------
def _conv_relu_pool(x_ref, w_ref, b_ref, out_ref):
    """3x3 valid conv + bias + ReLU + 2x2 max-pool (floor mode), NHWC, in VMEM.

    x_ref:   (1, H, W, Cin)
    w_ref:   (9, Cin, CPAD)    tap t = ky*3 + kx, zero-padded channels
    b_ref:   (1, CPAD)         zero-padded bias
    out_ref: (1, ph, pw, CPAD) pooled NHWC output
    """
    _, H, W, _ = x_ref.shape
    oh, ow = H - 2, W - 2
    ph, pw = oh // 2, ow // 2

    # Stride-2 column decimation expressed as two tiny selection matmuls
    # (hoisted out of the row loop).
    r_idx = lax.broadcasted_iota(jnp.int32, (pw, ow), 0)
    c_idx = lax.broadcasted_iota(jnp.int32, (pw, ow), 1)
    sel_even = jnp.where(c_idx == 2 * r_idx, 1.0, 0.0).astype(jnp.float32)
    sel_odd = jnp.where(c_idx == 2 * r_idx + 1, 1.0, 0.0).astype(jnp.float32)

    bias = b_ref[...]                                          # (1, CPAD)

    def conv_row(r):
        acc = None
        for t in range(9):
            ky, kx = t // 3, t % 3
            xs = x_ref[0, r + ky, pl.ds(kx, ow), :]            # (ow, Cin)
            d = jnp.dot(xs, w_ref[t], preferred_element_type=jnp.float32)
            acc = d if acc is None else acc + d
        return jnp.maximum(acc + bias, 0.0)                    # (ow, CPAD)

    def pooled_row(i, carry):
        rmax = jnp.maximum(conv_row(2 * i), conv_row(2 * i + 1))
        pooled = jnp.maximum(
            jnp.dot(sel_even, rmax, preferred_element_type=jnp.float32),
            jnp.dot(sel_odd, rmax, preferred_element_type=jnp.float32))
        out_ref[0, i] = pooled                                 # (pw, CPAD)
        return carry

    lax.fori_loop(0, ph, pooled_row, 0)


def _net_kernel(x_ref, w1_ref, b1_ref, w2_ref, b2_ref, w3_ref, b3_ref,
                wfc_ref, bfc_ref, o_ref, act1_ref, act2_ref, pool3_ref):
    # fc_layer: three fused conv+ReLU+pool stages, activations stay in VMEM.
    _conv_relu_pool(x_ref, w1_ref, b1_ref, act1_ref)      # (1,32,32,3) -> (1,15,15,128)
    _conv_relu_pool(act1_ref, w2_ref, b2_ref, act2_ref)   # -> (1,6,6,128)
    _conv_relu_pool(act2_ref, w3_ref, b3_ref, pool3_ref)  # -> (1,2,2,128)

    # out_layer: Linear(192 -> 10) + Softmax. The PyTorch (c,h,w) flatten order
    # is folded into the pre-permuted (4, CPAD, 10) FC weight.
    logits = bfc_ref[...]                                     # (1, 10)
    for q in range(4):
        h, w = q // 2, q % 2
        logits = logits + jnp.dot(pool3_ref[:, h, w, :], wfc_ref[q],
                                  preferred_element_type=jnp.float32)
    m = jnp.max(logits, axis=-1, keepdims=True)
    e = jnp.exp(logits - m)
    o_ref[0] = e / jnp.sum(e, axis=-1, keepdims=True)         # (1, 10)


# ---------------------------------------------------------------------------
# Host-side weight packing (tiny, runs inside jit once per call)
# ---------------------------------------------------------------------------
def _pack_conv(w, b, cin_pad):
    """Torch (Cout,Cin,3,3)/(Cout,) -> (9, cin_pad, CPAD), (1, CPAD), zero-padded."""
    cout, cin, kh, kw = w.shape
    wt = jnp.transpose(w, (2, 3, 1, 0)).reshape(kh * kw, cin, cout)  # [t, ci, co]
    wp = jnp.zeros((kh * kw, cin_pad, CPAD), jnp.float32).at[:, :cin, :cout].set(wt)
    bp = jnp.zeros((1, CPAD), jnp.float32).at[0, :cout].set(b)
    return wp, bp


def _pack_fc(wfc, bfc):
    """Torch Linear (10, 48*2*2) -> (4, CPAD, 10) matching NHWC pooled slices."""
    w4 = wfc.reshape(10, 48, 2, 2)                  # [n, c, h, w]  (c*4 + h*2 + w)
    w4 = jnp.transpose(w4, (2, 3, 1, 0))            # [h, w, c, n]
    wp = jnp.zeros((2, 2, CPAD, 10), jnp.float32).at[:, :, :48, :].set(w4)
    return wp.reshape(4, CPAD, 10), bfc.reshape(1, 10).astype(jnp.float32)


# ---------------------------------------------------------------------------
# Forward pass: a single fused pallas_call
# ---------------------------------------------------------------------------
@jax.jit
def net_forward(x_nchw, params):
    B, _, H, W = x_nchw.shape
    x = jnp.transpose(x_nchw.astype(jnp.float32), (0, 2, 3, 1))      # NHWC

    w1, b1 = _pack_conv(*params["conv1"], cin_pad=3)
    w2, b2 = _pack_conv(*params["conv2"], cin_pad=CPAD)
    w3, b3 = _pack_conv(*params["conv3"], cin_pad=CPAD)
    wfc, bfc = _pack_fc(*params["fc"])

    h1, w1s = (H - 2) // 2, (W - 2) // 2          # 15, 15
    h2, w2s = (h1 - 2) // 2, (w1s - 2) // 2       # 6, 6
    h3, w3s = (h2 - 2) // 2, (w2s - 2) // 2       # 2, 2
    assert (h3, w3s) == (2, 2), "module requires 32x32 spatial input"

    def bcast(shape):                             # same block for every sample
        zeros = (0,) * len(shape)
        return pl.BlockSpec(shape, lambda i: zeros)

    cp_cls = getattr(pltpu, "CompilerParams", None) or getattr(
        pltpu, "TPUCompilerParams", None)
    compiler_params = (cp_cls(dimension_semantics=("parallel",))
                       if cp_cls is not None else None)

    out = pl.pallas_call(
        _net_kernel,
        out_shape=jax.ShapeDtypeStruct((B, 1, 10), jnp.float32),
        grid=(B,),
        in_specs=[
            pl.BlockSpec((1,) + x.shape[1:], lambda i: (i, 0, 0, 0)),
            bcast(w1.shape), bcast(b1.shape),
            bcast(w2.shape), bcast(b2.shape),
            bcast(w3.shape), bcast(b3.shape),
            bcast(wfc.shape), bcast(bfc.shape),
        ],
        out_specs=pl.BlockSpec((1, 1, 10), lambda i: (i, 0, 0)),
        scratch_shapes=[
            pltpu.VMEM((1, h1, w1s, CPAD), jnp.float32),
            pltpu.VMEM((1, h2, w2s, CPAD), jnp.float32),
            pltpu.VMEM((1, h3, w3s, CPAD), jnp.float32),
        ],
        compiler_params=compiler_params,
    )(x, w1, b1, w2, b2, w3, b3, wfc, bfc)
    return out.reshape(B, 10)


# ---------------------------------------------------------------------------
# Parameters (deterministic, PyTorch-default-style uniform init)
# ---------------------------------------------------------------------------
def init_params(key):
    keys = jax.random.split(key, 8)

    def conv_init(kw, kb, cout, cin, k):
        bound = 1.0 / ((cin * k * k) ** 0.5)
        w = jax.random.uniform(kw, (cout, cin, k, k), jnp.float32, -bound, bound)
        b = jax.random.uniform(kb, (cout,), jnp.float32, -bound, bound)
        return w, b

    def linear_init(kw, kb, out_f, in_f):
        bound = 1.0 / (in_f ** 0.5)
        w = jax.random.uniform(kw, (out_f, in_f), jnp.float32, -bound, bound)
        b = jax.random.uniform(kb, (out_f,), jnp.float32, -bound, bound)
        return w, b

    return {
        "conv1": conv_init(keys[0], keys[1], 12, 3, 3),
        "conv2": conv_init(keys[2], keys[3], 24, 12, 3),
        "conv3": conv_init(keys[4], keys[5], 48, 24, 3),
        "fc": linear_init(keys[6], keys[7], 10, 48 * 2 * 2),
    }


# ---------------------------------------------------------------------------
# Pure-JAX reference (mirrors Net.forward) for a correctness check
# ---------------------------------------------------------------------------
def reference_forward(x, params):
    def block(h, w, b):
        h = lax.conv_general_dilated(
            h, w, (1, 1), "VALID",
            dimension_numbers=("NCHW", "OIHW", "NCHW"),
            precision=lax.Precision.HIGHEST)
        h = jax.nn.relu(h + b.reshape(1, -1, 1, 1))
        return lax.reduce_window(h, -jnp.inf, lax.max,
                                 (1, 1, 2, 2), (1, 1, 2, 2), "VALID")

    h = block(x, *params["conv1"])
    h = block(h, *params["conv2"])
    h = block(h, *params["conv3"])
    flat = h.reshape(h.shape[0], -1)                 # NCHW flatten, like PyTorch
    wfc, bfc = params["fc"]
    logits = jnp.dot(flat, wfc.T, precision=lax.Precision.HIGHEST) + bfc
    return jax.nn.softmax(logits, axis=-1)


if __name__ == "__main__":
    key = jax.random.PRNGKey(0)
    k_param, k_x = jax.random.split(key)
    params = init_params(k_param)

    # CIFAR10-style input: NCHW (2, 3, 32, 32). 32x32 spatial is required by the
    # module's reshape(-1, 48 * 2 * 2).
    x = jax.random.normal(k_x, (2, 3, 32, 32), dtype=jnp.float32)

    out = jax.block_until_ready(net_forward(x, params))
    assert out.shape == (2, 10)
    assert bool(jnp.all(jnp.abs(jnp.sum(out, axis=1) - 1.0) < 1e-4))

    ref = jax.block_until_ready(reference_forward(x, params))
    assert bool(jnp.allclose(out, ref, atol=2e-3)), "mismatch vs pure-JAX reference"

    print("KERNEL_OK")
</pallas_src>

<mosaic_0001>
module attributes {stable_mosaic.version = 11 : i64} {
  func.func @_net_kernel(%arg0: i32, %arg1: memref<1x32x32x3xf32, #tpu.memory_space<vmem>>, %arg2: memref<9x3x128xf32, #tpu.memory_space<vmem>>, %arg3: memref<1x128xf32, #tpu.memory_space<vmem>>, %arg4: memref<9x128x128xf32, #tpu.memory_space<vmem>>, %arg5: memref<1x128xf32, #tpu.memory_space<vmem>>, %arg6: memref<9x128x128xf32, #tpu.memory_space<vmem>>, %arg7: memref<1x128xf32, #tpu.memory_space<vmem>>, %arg8: memref<4x128x10xf32, #tpu.memory_space<vmem>>, %arg9: memref<1x10xf32, #tpu.memory_space<vmem>>, %arg10: memref<1x1x10xf32, #tpu.memory_space<vmem>>, %arg11: memref<1x15x15x128xf32, #tpu.memory_space<vmem>>, %arg12: memref<1x6x6x128xf32, #tpu.memory_space<vmem>>, %arg13: memref<1x2x2x128xf32, #tpu.memory_space<vmem>>) attributes {dimension_semantics = [#tpu.dimension_semantics<parallel>], iteration_bounds = array<i64: 2>, scalar_prefetch = 0 : i64, scratch_operands = 3 : i64, tpu.core_type = #tpu.core_type<tc>, window_params = [{transform_indices = @transform_0, window_bounds = array<i64: 1, 32, 32, 3>}, {pipeline_mode = #tpu.pipeline_mode<synchronous>, transform_indices = @transform_1, window_bounds = array<i64: 9, 3, 128>}, {pipeline_mode = #tpu.pipeline_mode<synchronous>, transform_indices = @transform_2, window_bounds = array<i64: 1, 128>}, {pipeline_mode = #tpu.pipeline_mode<synchronous>, transform_indices = @transform_3, window_bounds = array<i64: 9, 128, 128>}, {pipeline_mode = #tpu.pipeline_mode<synchronous>, transform_indices = @transform_4, window_bounds = array<i64: 1, 128>}, {pipeline_mode = #tpu.pipeline_mode<synchronous>, transform_indices = @transform_5, window_bounds = array<i64: 9, 128, 128>}, {pipeline_mode = #tpu.pipeline_mode<synchronous>, transform_indices = @transform_6, window_bounds = array<i64: 1, 128>}, {pipeline_mode = #tpu.pipeline_mode<synchronous>, transform_indices = @transform_7, window_bounds = array<i64: 4, 128, 10>}, {pipeline_mode = #tpu.pipeline_mode<synchronous>, transform_indices = @transform_8, window_bounds = array<i64: 1, 10>}, {transform_indices = @transform_9, window_bounds = array<i64: 1, 1, 10>}]} {
    %0 = tpu.iota {dimensions = array<i32: 0>} : vector<15x30xi32>
    %1 = tpu.iota {dimensions = array<i32: 1>} : vector<15x30xi32>
    %c2_i32 = arith.constant 2 : i32
    %2 = vector.broadcast %c2_i32 : i32 to vector<15x30xi32>
    %3 = arith.muli %2, %0 : vector<15x30xi32>
    %4 = arith.cmpi eq, %1, %3 : vector<15x30xi32>
    %cst = arith.constant 1.000000e+00 : f32
    %cst_0 = arith.constant 0.000000e+00 : f32
    %5 = vector.broadcast %cst : f32 to vector<15x30xf32>
    %6 = vector.broadcast %cst_0 : f32 to vector<15x30xf32>
    %7 = arith.select %4, %5, %6 : vector<15x30xi1>, vector<15x30xf32>
    %c2_i32_1 = arith.constant 2 : i32
    %8 = vector.broadcast %c2_i32_1 : i32 to vector<15x30xi32>
    %9 = arith.muli %8, %0 : vector<15x30xi32>
    %c1_i32 = arith.constant 1 : i32
    %10 = vector.broadcast %c1_i32 : i32 to vector<15x30xi32>
    %11 = arith.addi %9, %10 : vector<15x30xi32>
    %12 = arith.cmpi eq, %1, %11 : vector<15x30xi32>
    %cst_2 = arith.constant 1.000000e+00 : f32
    %cst_3 = arith.constant 0.000000e+00 : f32
    %13 = vector.broadcast %cst_2 : f32 to vector<15x30xf32>
    %14 = vector.broadcast %cst_3 : f32 to vector<15x30xf32>
    %15 = arith.select %12, %13, %14 : vector<15x30xi1>, vector<15x30xf32>
    %c0 = arith.constant 0 : index
    %c0_4 = arith.constant 0 : index
    %16 = vector.load %arg3[%c0, %c0_4] : memref<1x128xf32, #tpu.memory_space<vmem>>, vector<1x128xf32>
    %c0_i32 = arith.constant 0 : i32
    %c15_i32 = arith.constant 15 : i32
    %17 = arith.addi %c0_i32, %c15_i32 : i32
    %c1_i32_5 = arith.constant 1 : i32
    scf.for %arg14 = %c0_i32 to %17 step %c1_i32_5  : i32 {
      %c2_i32_68 = arith.constant 2 : i32
      %91 = arith.muli %c2_i32_68, %arg14 : i32
      %c0_i32_69 = arith.constant 0 : i32
      %92 = arith.addi %91, %c0_i32_69 : i32
      %c0_70 = arith.constant 0 : index
      %93 = arith.index_cast %92 : i32 to index
      %c0_71 = arith.constant 0 : index
      %c0_72 = arith.constant 0 : index
      %94 = vector.load %arg1[%c0_70, %93, %c0_71, %c0_72] : memref<1x32x32x3xf32, #tpu.memory_space<vmem>>, vector<1x1x30x3xf32>
      %95 = vector.shape_cast %94 : vector<1x1x30x3xf32> to vector<30x3xf32>
      %c0_73 = arith.constant 0 : index
      %c0_74 = arith.constant 0 : index
      %c0_75 = arith.constant 0 : index
      %96 = vector.load %arg2[%c0_73, %c0_74, %c0_75] : memref<9x3x128xf32, #tpu.memory_space<vmem>>, vector<1x3x128xf32>
      %97 = vector.shape_cast %96 : vector<1x3x128xf32> to vector<3x128xf32>
      %cst_76 = arith.constant dense<0.000000e+00> : vector<30x128xf32>
      %98 = tpu.matmul %95, %97, %cst_76 {dimension_numbers = #tpu.dot_dimension_numbers<[1], [0], [0], [1], [0, 0, 1, 1], [], []>} : vector<30x3xf32>, vector<3x128xf32>, vector<30x128xf32> -> vector<30x128xf32>
      %c0_i32_77 = arith.constant 0 : i32
      %99 = arith.addi %91, %c0_i32_77 : i32
      %c0_78 = arith.constant 0 : index
      %100 = arith.index_cast %99 : i32 to index
      %c1_79 = arith.constant 1 : index
      %c0_80 = arith.constant 0 : index
      %101 = vector.load %arg1[%c0_78, %100, %c1_79, %c0_80] : memref<1x32x32x3xf32, #tpu.memory_space<vmem>>, vector<1x1x30x3xf32>
      %102 = vector.shape_cast %101 : vector<1x1x30x3xf32> to vector<30x3xf32>
      %c1_81 = arith.constant 1 : index
      %c0_82 = arith.constant 0 : index
      %c0_83 = arith.constant 0 : index
      %103 = vector.load %arg2[%c1_81, %c0_82, %c0_83] : memref<9x3x128xf32, #tpu.memory_space<vmem>>, vector<1x3x128xf32>
      %104 = vector.shape_cast %103 : vector<1x3x128xf32> to vector<3x128xf32>
      %cst_84 = arith.constant dense<0.000000e+00> : vector<30x128xf32>
      %105 = tpu.matmul %102, %104, %cst_84 {dimension_numbers = #tpu.dot_dimension_numbers<[1], [0], [0], [1], [0, 0, 1, 1], [], []>} : vector<30x3xf32>, vector<3x128xf32>, vector<30x128xf32> -> vector<30x128xf32>
      %106 = arith.addf %98, %105 : vector<30x128xf32>
      %c0_i32_85 = arith.constant 0 : i32
      %107 = arith.addi %91, %c0_i32_85 : i32
      %c0_86 = arith.constant 0 : index
      %108 = arith.index_cast %107 : i32 to index
      %c2_87 = arith.constant 2 : index
      %c0_88 = arith.constant 0 : index
      %109 = vector.load %arg1[%c0_86, %108, %c2_87, %c0_88] : memref<1x32x32x3xf32, #tpu.memory_space<vmem>>, vector<1x1x30x3xf32>
      %110 = vector.shape_cast %109 : vector<1x1x30x3xf32> to vector<30x3xf32>
      %c2_89 = arith.constant 2 : index
      %c0_90 = arith.constant 0 : index
      %c0_91 = arith.constant 0 : index
      %111 = vector.load %arg2[%c2_89, %c0_90, %c0_91] : memref<9x3x128xf32, #tpu.memory_space<vmem>>, vector<1x3x128xf32>
      %112 = vector.shape_cast %111 : vector<1x3x128xf32> to vector<3x128xf32>
      %cst_92 = arith.constant dense<0.000000e+00> : vector<30x128xf32>
      %113 = tpu.matmul %110, %112, %cst_92 {dimension_numbers = #tpu.dot_dimension_numbers<[1], [0], [0], [1], [0, 0, 1, 1], [], []>} : vector<30x3xf32>, vector<3x128xf32>, vector<30x128xf32> -> vector<30x128xf32>
      %114 = arith.addf %106, %113 : vector<30x128xf32>
      %c1_i32_93 = arith.constant 1 : i32
      %115 = arith.addi %91, %c1_i32_93 : i32
      %c0_94 = arith.constant 0 : index
      %116 = arith.index_cast %115 : i32 to index
      %c0_95 = arith.constant 0 : index
      %c0_96 = arith.constant 0 : index
      %117 = vector.load %arg1[%c0_94, %116, %c0_95, %c0_96] : memref<1x32x32x3xf32, #tpu.memory_space<vmem>>, vector<1x1x30x3xf32>
      %118 = vector.shape_cast %117 : vector<1x1x30x3xf32> to vector<30x3xf32>
      %c3_97 = arith.constant 3 : index
      %c0_98 = arith.constant 0 : index
      %c0_99 = arith.constant 0 : index
      %119 = vector.load %arg2[%c3_97, %c0_98, %c0_99] : memref<9x3x128xf32, #tpu.memory_space<vmem>>, vector<1x3x128xf32>
      %120 = vector.shape_cast %119 : vector<1x3x128xf32> to vector<3x128xf32>
      %cst_100 = arith.constant dense<0.000000e+00> : vector<30x128xf32>
      %121 = tpu.matmul %118, %120, %cst_100 {dimension_numbers = #tpu.dot_dimension_numbers<[1], [0], [0], [1], [0, 0, 1, 1], [], []>} : vector<30x3xf32>, vector<3x128xf32>, vector<30x128xf32> -> vector<30x128xf32>
      %122 = arith.addf %114, %121 : vector<30x128xf32>
      %c1_i32_101 = arith.constant 1 : i32
      %123 = arith.addi %91, %c1_i32_101 : i32
      %c0_102 = arith.constant 0 : index
      %124 = arith.index_cast %123 : i32 to index
      %c1_103 = arith.constant 1 : index
      %c0_104 = arith.constant 0 : index
      %125 = vector.load %arg1[%c0_102, %124, %c1_103, %c0_104] : memref<1x32x32x3xf32, #tpu.memory_space<vmem>>, vector<1x1x30x3xf32>
      %126 = vector.shape_cast %125 : vector<1x1x30x3xf32> to vector<30x3xf32>
      %c4 = arith.constant 4 : index
      %c0_105 = arith.constant 0 : index
      %c0_106 = arith.constant 0 : index
      %127 = vector.load %arg2[%c4, %c0_105, %c0_106] : memref<9x3x128xf32, #tpu.memory_space<vmem>>, vector<1x3x128xf32>
      %128 = vector.shape_cast %127 : vector<1x3x128xf32> to vector<3x128xf32>
      %cst_107 = arith.constant dense<0.000000e+00> : vector<30x128xf32>
      %129 = tpu.matmul %126, %128, %cst_107 {dimension_numbers = #tpu.dot_dimension_numbers<[1], [0], [0], [1], [0, 0, 1, 1], [], []>} : vector<30x3xf32>, vector<3x128xf32>, vector<30x128xf32> -> vector<30x128xf32>
      %130 = arith.addf %122, %129 : vector<30x128xf32>
      %c1_i32_108 = arith.constant 1 : i32
      %131 = arith.addi %91, %c1_i32_108 : i32
      %c0_109 = arith.constant 0 : index
      %132 = arith.index_cast %131 : i32 to index
      %c2_110 = arith.constant 2 : index
      %c0_111 = arith.constant 0 : index
      %133 = vector.load %arg1[%c0_109, %132, %c2_110, %c0_111] : memref<1x32x32x3xf32, #tpu.memory_space<vmem>>, vector<1x1x30x3xf32>
      %134 = vector.shape_cast %133 : vector<1x1x30x3xf32> to vector<30x3xf32>
      %c5 = arith.constant 5 : index
      %c0_112 = arith.constant 0 : index
      %c0_113 = arith.constant 0 : index
      %135 = vector.load %arg2[%c5, %c0_112, %c0_113] : memref<9x3x128xf32, #tpu.memory_space<vmem>>, vector<1x3x128xf32>
      %136 = vector.shape_cast %135 : vector<1x3x128xf32> to vector<3x128xf32>
      %cst_114 = arith.constant dense<0.000000e+00> : vector<30x128xf32>
      %137 = tpu.matmul %134, %136, %cst_114 {dimension_numbers = #tpu.dot_dimension_numbers<[1], [0], [0], [1], [0, 0, 1, 1], [], []>} : vector<30x3xf32>, vector<3x128xf32>, vector<30x128xf32> -> vector<30x128xf32>
      %138 = arith.addf %130, %137 : vector<30x128xf32>
      %c2_i32_115 = arith.constant 2 : i32
      %139 = arith.addi %91, %c2_i32_115 : i32
      %c0_116 = arith.constant 0 : index
      %140 = arith.index_cast %139 : i32 to index
      %c0_117 = arith.constant 0 : index
      %c0_118 = arith.constant 0 : index
      %141 = vector.load %arg1[%c0_116, %140, %c0_117, %c0_118] : memref<1x32x32x3xf32, #tpu.memory_space<vmem>>, vector<1x1x30x3xf32>
      %142 = vector.shape_cast %141 : vector<1x1x30x3xf32> to vector<30x3xf32>
      %c6 = arith.constant 6 : index
      %c0_119 = arith.constant 0 : index
      %c0_120 = arith.constant 0 : index
      %143 = vector.load %arg2[%c6, %c0_119, %c0_120] : memref<9x3x128xf32, #tpu.memory_space<vmem>>, vector<1x3x128xf32>
      %144 = vector.shape_cast %143 : vector<1x3x128xf32> to vector<3x128xf32>
      %cst_121 = arith.constant dense<0.000000e+00> : vector<30x128xf32>
      %145 = tpu.matmul %142, %144, %cst_121 {dimension_numbers = #tpu.dot_dimension_numbers<[1], [0], [0], [1], [0, 0, 1, 1], [], []>} : vector<30x3xf32>, vector<3x128xf32>, vector<30x128xf32> -> vector<30x128xf32>
      %146 = arith.addf %138, %145 : vector<30x128xf32>
      %c2_i32_122 = arith.constant 2 : i32
      %147 = arith.addi %91, %c2_i32_122 : i32
      %c0_123 = arith.constant 0 : index
      %148 = arith.index_cast %147 : i32 to index
      %c1_124 = arith.constant 1 : index
      %c0_125 = arith.constant 0 : index
      %149 = vector.load %arg1[%c0_123, %148, %c1_124, %c0_125] : memref<1x32x32x3xf32, #tpu.memory_space<vmem>>, vector<1x1x30x3xf32>
      %150 = vector.shape_cast %149 : vector<1x1x30x3xf32> to vector<30x3xf32>
      %c7 = arith.constant 7 : index
      %c0_126 = arith.constant 0 : index
      %c0_127 = arith.constant 0 : index
      %151 = vector.load %arg2[%c7, %c0_126, %c0_127] : memref<9x3x128xf32, #tpu.memory_space<vmem>>, vector<1x3x128xf32>
      %152 = vector.shape_cast %151 : vector<1x3x128xf32> to vector<3x128xf32>
      %cst_128 = arith.constant dense<0.000000e+00> : vector<30x128xf32>
      %153 = tpu.matmul %150, %152, %cst_128 {dimension_numbers = #tpu.dot_dimension_numbers<[1], [0], [0], [1], [0, 0, 1, 1], [], []>} : vector<30x3xf32>, vector<3x128xf32>, vector<30x128xf32> -> vector<30x128xf32>
      %154 = arith.addf %146, %153 : vector<30x128xf32>
      %c2_i32_129 = arith.constant 2 : i32
      %155 = arith.addi %91, %c2_i32_129 : i32
      %c0_130 = arith.constant 0 : index
      %156 = arith.index_cast %155 : i32 to index
      %c2_131 = arith.constant 2 : index
      %c0_132 = arith.constant 0 : index
      %157 = vector.load %arg1[%c0_130, %156, %c2_131, %c0_132] : memref<1x32x32x3xf32, #tpu.memory_space<vmem>>, vector<1x1x30x3xf32>
      %158 = vector.shape_cast %157 : vector<1x1x30x3xf32> to vector<30x3xf32>
      %c8 = arith.constant 8 : index
      %c0_133 = arith.constant 0 : index
      %c0_134 = arith.constant 0 : index
      %159 = vector.load %arg2[%c8, %c0_133, %c0_134] : memref<9x3x128xf32, #tpu.memory_space<vmem>>, vector<1x3x128xf32>
      %160 = vector.shape_cast %159 : vector<1x3x128xf32> to vector<3x128xf32>
      %cst_135 = arith.constant dense<0.000000e+00> : vector<30x128xf32>
      %161 = tpu.matmul %158, %160, %cst_135 {dimension_numbers = #tpu.dot_dimension_numbers<[1], [0], [0], [1], [0, 0, 1, 1], [], []>} : vector<30x3xf32>, vector<3x128xf32>, vector<30x128xf32> -> vector<30x128xf32>
      %162 = arith.addf %154, %161 : vector<30x128xf32>
      %163 = vector.broadcast %16 : vector<1x128xf32> to vector<30x128xf32>
      %164 = arith.addf %162, %163 : vector<30x128xf32>
      %cst_136 = arith.constant 0.000000e+00 : f32
      %165 = vector.broadcast %cst_136 : f32 to vector<30x128xf32>
      %166 = arith.maximumf %164, %165 : vector<30x128xf32>
      %c2_i32_137 = arith.constant 2 : i32
      %167 = arith.muli %c2_i32_137, %arg14 : i32
      %c1_i32_138 = arith.constant 1 : i32
      %168 = arith.addi %167, %c1_i32_138 : i32
      %c0_i32_139 = arith.constant 0 : i32
      %169 = arith.addi %168, %c0_i32_139 : i32
      %c0_140 = arith.constant 0 : index
      %170 = arith.index_cast %169 : i32 to index
      %c0_141 = arith.constant 0 : index
      %c0_142 = arith.constant 0 : index
      %171 = vector.load %arg1[%c0_140, %170, %c0_141, %c0_142] : memref<1x32x32x3xf32, #tpu.memory_space<vmem>>, vector<1x1x30x3xf32>
      %172 = vector.shape_cast %171 : vector<1x1x30x3xf32> to vector<30x3xf32>
      %c0_143 = arith.constant 0 : index
      %c0_144 = arith.constant 0 : index
      %c0_145 = arith.constant 0 : index
      %173 = vector.load %arg2[%c0_143, %c0_144, %c0_145] : memref<9x3x128xf32, #tpu.memory_space<vmem>>, vector<1x3x128xf32>
      %174 = vector.shape_cast %173 : vector<1x3x128xf32> to vector<3x128xf32>
      %cst_146 = arith.constant dense<0.000000e+00> : vector<30x128xf32>
      %175 = tpu.matmul %172, %174, %cst_146 {dimension_numbers = #tpu.dot_dimension_numbers<[1], [0], [0], [1], [0, 0, 1, 1], [], []>} : vector<30x3xf32>, vector<3x128xf32>, vector<30x128xf32> -> vector<30x128xf32>
      %c0_i32_147 = arith.constant 0 : i32
      %176 = arith.addi %168, %c0_i32_147 : i32
      %c0_148 = arith.constant 0 : index
      %177 = arith.index_cast %176 : i32 to index
      %c1_149 = arith.constant 1 : index
      %c0_150 = arith.constant 0 : index
      %178 = vector.load %arg1[%c0_148, %177, %c1_149, %c0_150] : memref<1x32x32x3xf32, #tpu.memory_space<vmem>>, vector<1x1x30x3xf32>
      %179 = vector.shape_cast %178 : vector<1x1x30x3xf32> to vector<30x3xf32>
      %c1_151 = arith.constant 1 : index
      %c0_152 = arith.constant 0 : index
      %c0_153 = arith.constant 0 : index
      %180 = vector.load %arg2[%c1_151, %c0_152, %c0_153] : memref<9x3x128xf32, #tpu.memory_space<vmem>>, vector<1x3x128xf32>
      %181 = vector.shape_cast %180 : vector<1x3x128xf32> to vector<3x128xf32>
      %cst_154 = arith.constant dense<0.000000e+00> : vector<30x128xf32>
      %182 = tpu.matmul %179, %181, %cst_154 {dimension_numbers = #tpu.dot_dimension_numbers<[1], [0], [0], [1], [0, 0, 1, 1], [], []>} : vector<30x3xf32>, vector<3x128xf32>, vector<30x128xf32> -> vector<30x128xf32>
      %183 = arith.addf %175, %182 : vector<30x128xf32>
      %c0_i32_155 = arith.constant 0 : i32
      %184 = arith.addi %168, %c0_i32_155 : i32
      %c0_156 = arith.constant 0 : index
      %185 = arith.index_cast %184 : i32 to index
      %c2_157 = arith.constant 2 : index
      %c0_158 = arith.constant 0 : index
      %186 = vector.load %arg1[%c0_156, %185, %c2_157, %c0_158] : memref<1x32x32x3xf32, #tpu.memory_space<vmem>>, vector<1x1x30x3xf32>
      %187 = vector.shape_cast %186 : vector<1x1x30x3xf32> to vector<30x3xf32>
      %c2_159 = arith.constant 2 : index
      %c0_160 = arith.constant 0 : index
      %c0_161 = arith.constant 0 : index
      %188 = vector.load %arg2[%c2_159, %c0_160, %c0_161] : memref<9x3x128xf32, #tpu.memory_space<vmem>>, vector<1x3x128xf32>
      %189 = vector.shape_cast %188 : vector<1x3x128xf32> to vector<3x128xf32>
      %cst_162 = arith.constant dense<0.000000e+00> : vector<30x128xf32>
      %190 = tpu.matmul %187, %189, %cst_162 {dimension_numbers = #tpu.dot_dimension_numbers<[1], [0], [0], [1], [0, 0, 1, 1], [], []>} : vector<30x3xf32>, vector<3x128xf32>, vector<30x128xf32> -> vector<30x128xf32>
      %191 = arith.addf %183, %190 : vector<30x128xf32>
      %c1_i32_163 = arith.constant 1 : i32
      %192 = arith.addi %168, %c1_i32_163 : i32
      %c0_164 = arith.constant 0 : index
      %193 = arith.index_cast %192 : i32 to index
      %c0_165 = arith.constant 0 : index
      %c0_166 = arith.constant 0 : index
      %194 = vector.load %arg1[%c0_164, %193, %c0_165, %c0_166] : memref<1x32x32x3xf32, #tpu.memory_space<vmem>>, vector<1x1x30x3xf32>
      %195 = vector.shape_cast %194 : vector<1x1x30x3xf32> to vector<30x3xf32>
      %c3_167 = arith.constant 3 : index
      %c0_168 = arith.constant 0 : index
      %c0_169 = arith.constant 0 : index
      %196 = vector.load %arg2[%c3_167, %c0_168, %c0_169] : memref<9x3x128xf32, #tpu.memory_space<vmem>>, vector<1x3x128xf32>
      %197 = vector.shape_cast %196 : vector<1x3x128xf32> to vector<3x128xf32>
      %cst_170 = arith.constant dense<0.000000e+00> : vector<30x128xf32>
      %198 = tpu.matmul %195, %197, %cst_170 {dimension_numbers = #tpu.dot_dimension_numbers<[1], [0], [0], [1], [0, 0, 1, 1], [], []>} : vector<30x3xf32>, vector<3x128xf32>, vector<30x128xf32> -> vector<30x128xf32>
      %199 = arith.addf %191, %198 : vector<30x128xf32>
      %c1_i32_171 = arith.constant 1 : i32
      %200 = arith.addi %168, %c1_i32_171 : i32
      %c0_172 = arith.constant 0 : index
      %201 = arith.index_cast %200 : i32 to index
      %c1_173 = arith.constant 1 : index
      %c0_174 = arith.constant 0 : index
      %202 = vector.load %arg1[%c0_172, %201, %c1_173, %c0_174] : memref<1x32x32x3xf32, #tpu.memory_space<vmem>>, vector<1x1x30x3xf32>
      %203 = vector.shape_cast %202 : vector<1x1x30x3xf32> to vector<30x3xf32>
      %c4_175 = arith.constant 4 : index
      %c0_176 = arith.constant 0 : index
      %c0_177 = arith.constant 0 : index
      %204 = vector.load %arg2[%c4_175, %c0_176, %c0_177] : memref<9x3x128xf32, #tpu.memory_space<vmem>>, vector<1x3x128xf32>
      %205 = vector.shape_cast %204 : vector<1x3x128xf32> to vector<3x128xf32>
      %cst_178 = arith.constant dense<0.000000e+00> : vector<30x128xf32>
      %206 = tpu.matmul %203, %205, %cst_178 {dimension_numbers = #tpu.dot_dimension_numbers<[1], [0], [0], [1], [0, 0, 1, 1], [], []>} : vector<30x3xf32>, vector<3x128xf32>, vector<30x128xf32> -> vector<30x128xf32>
      %207 = arith.addf %199, %206 : vector<30x128xf32>
      %c1_i32_179 = arith.constant 1 : i32
      %208 = arith.addi %168, %c1_i32_179 : i32
      %c0_180 = arith.constant 0 : index
      %209 = arith.index_cast %208 : i32 to index
      %c2_181 = arith.constant 2 : index
      %c0_182 = arith.constant 0 : index
      %210 = vector.load %arg1[%c0_180, %209, %c2_181, %c0_182] : memref<1x32x32x3xf32, #tpu.memory_space<vmem>>, vector<1x1x30x3xf32>
      %211 = vector.shape_cast %210 : vector<1x1x30x3xf32> to vector<30x3xf32>
      %c5_183 = arith.constant 5 : index
      %c0_184 = arith.constant 0 : index
      %c0_185 = arith.constant 0 : index
      %212 = vector.load %arg2[%c5_183, %c0_184, %c0_185] : memref<9x3x128xf32, #tpu.memory_space<vmem>>, vector<1x3x128xf32>
      %213 = vector.shape_cast %212 : vector<1x3x128xf32> to vector<3x128xf32>
      %cst_186 = arith.constant dense<0.000000e+00> : vector<30x128xf32>
      %214 = tpu.matmul %211, %213, %cst_186 {dimension_numbers = #tpu.dot_dimension_numbers<[1], [0], [0], [1], [0, 0, 1, 1], [], []>} : vector<30x3xf32>, vector<3x128xf32>, vector<30x128xf32> -> vector<30x128xf32>
      %215 = arith.addf %207, %214 : vector<30x128xf32>
      %c2_i32_187 = arith.constant 2 : i32
      %216 = arith.addi %168, %c2_i32_187 : i32
      %c0_188 = arith.constant 0 : index
      %217 = arith.index_cast %216 : i32 to index
      %c0_189 = arith.constant 0 : index
      %c0_190 = arith.constant 0 : index
      %218 = vector.load %arg1[%c0_188, %217, %c0_189, %c0_190] : memref<1x32x32x3xf32, #tpu.memory_space<vmem>>, vector<1x1x30x3xf32>
      %219 = vector.shape_cast %218 : vector<1x1x30x3xf32> to vector<30x3xf32>
      %c6_191 = arith.constant 6 : index
      %c0_192 = arith.constant 0 : index
      %c0_193 = arith.constant 0 : index
      %220 = vector.load %arg2[%c6_191, %c0_192, %c0_193] : memref<9x3x128xf32, #tpu.memory_space<vmem>>, vector<1x3x128xf32>
      %221 = vector.shape_cast %220 : vector<1x3x128xf32> to vector<3x128xf32>
      %cst_194 = arith.constant dense<0.000000e+00> : vector<30x128xf32>
      %222 = tpu.matmul %219, %221, %cst_194 {dimension_numbers = #tpu.dot_dimension_numbers<[1], [0], [0], [1], [0, 0, 1, 1], [], []>} : vector<30x3xf32>, vector<3x128xf32>, vector<30x128xf32> -> vector<30x128xf32>
      %223 = arith.addf %215, %222 : vector<30x128xf32>
      %c2_i32_195 = arith.constant 2 : i32
      %224 = arith.addi %168, %c2_i32_195 : i32
      %c0_196 = arith.constant 0 : index
      %225 = arith.index_cast %224 : i32 to index
      %c1_197 = arith.constant 1 : index
      %c0_198 = arith.constant 0 : index
      %226 = vector.load %arg1[%c0_196, %225, %c1_197, %c0_198] : memref<1x32x32x3xf32, #tpu.memory_space<vmem>>, vector<1x1x30x3xf32>
      %227 = vector.shape_cast %226 : vector<1x1x30x3xf32> to vector<30x3xf32>
      %c7_199 = arith.constant 7 : index
      %c0_200 = arith.constant 0 : index
      %c0_201 = arith.constant 0 : index
      %228 = vector.load %arg2[%c7_199, %c0_200, %c0_201] : memref<9x3x128xf32, #tpu.memory_space<vmem>>, vector<1x3x128xf32>
      %229 = vector.shape_cast %228 : vector<1x3x128xf32> to vector<3x128xf32>
      %cst_202 = arith.constant dense<0.000000e+00> : vector<30x128xf32>
      %230 = tpu.matmul %227, %229, %cst_202 {dimension_numbers = #tpu.dot_dimension_numbers<[1], [0], [0], [1], [0, 0, 1, 1], [], []>} : vector<30x3xf32>, vector<3x128xf32>, vector<30x128xf32> -> vector<30x128xf32>
      %231 = arith.addf %223, %230 : vector<30x128xf32>
      %c2_i32_203 = arith.constant 2 : i32
      %232 = arith.addi %168, %c2_i32_203 : i32
      %c0_204 = arith.constant 0 : index
      %233 = arith.index_cast %232 : i32 to index
      %c2_205 = arith.constant 2 : index
      %c0_206 = arith.constant 0 : index
      %234 = vector.load %arg1[%c0_204, %233, %c2_205, %c0_206] : memref<1x32x32x3xf32, #tpu.memory_space<vmem>>, vector<1x1x30x3xf32>
      %235 = vector.shape_cast %234 : vector<1x1x30x3xf32> to vector<30x3xf32>
      %c8_207 = arith.constant 8 : index
      %c0_208 = arith.constant 0 : index
      %c0_209 = arith.constant 0 : index
      %236 = vector.load %arg2[%c8_207, %c0_208, %c0_209] : memref<9x3x128xf32, #tpu.memory_space<vmem>>, vector<1x3x128xf32>
      %237 = vector.shape_cast %236 : vector<1x3x128xf32> to vector<3x128xf32>
      %cst_210 = arith.constant dense<0.000000e+00> : vector<30x128xf32>
      %238 = tpu.matmul %235, %237, %cst_210 {dimension_numbers = #tpu.dot_dimension_numbers<[1], [0], [0], [1], [0, 0, 1, 1], [], []>} : vector<30x3xf32>, vector<3x128xf32>, vector<30x128xf32> -> vector<30x128xf32>
      %239 = arith.addf %231, %238 : vector<30x128xf32>
      %240 = vector.broadcast %16 : vector<1x128xf32> to vector<30x128xf32>
      %241 = arith.addf %239, %240 : vector<30x128xf32>
      %cst_211 = arith.constant 0.000000e+00 : f32
      %242 = vector.broadcast %cst_211 : f32 to vector<30x128xf32>
      %243 = arith.maximumf %241, %242 : vector<30x128xf32>
      %244 = arith.maximumf %166, %243 : vector<30x128xf32>
      %cst_212 = arith.constant dense<0.000000e+00> : vector<15x128xf32>
      %245 = tpu.matmul %7, %244, %cst_212 {dimension_numbers = #tpu.dot_dimension_numbers<[1], [0], [0], [1], [0, 0, 1, 1], [], []>} : vector<15x30xf32>, vector<30x128xf32>, vector<15x128xf32> -> vector<15x128xf32>
      %cst_213 = arith.constant dense<0.000000e+00> : vector<15x128xf32>
      %246 = tpu.matmul %15, %244, %cst_213 {dimension_numbers = #tpu.dot_dimension_numbers<[1], [0], [0], [1], [0, 0, 1, 1], [], []>} : vector<15x30xf32>, vector<30x128xf32>, vector<15x128xf32> -> vector<15x128xf32>
      %247 = arith.maximumf %245, %246 : vector<15x128xf32>
      %c0_214 = arith.constant 0 : index
      %248 = arith.index_cast %arg14 : i32 to index
      %c0_215 = arith.constant 0 : index
      %c0_216 = arith.constant 0 : index
      %249 = vector.load %arg11[%c0_214, %248, %c0_215, %c0_216] : memref<1x15x15x128xf32, #tpu.memory_space<vmem>>, vector<1x1x15x128xf32>
      %250 = vector.shape_cast %249 : vector<1x1x15x128xf32> to vector<15x128xf32>
      %251 = vector.shape_cast %247 : vector<15x128xf32> to vector<1x1x15x128xf32>
      tpu.vector_store %arg11[%c0_214, %248, %c0_215, %c0_216], %251 {strides = array<i32>} : memref<1x15x15x128xf32, #tpu.memory_space<vmem>>, vector<1x1x15x128xf32>,
    }
    %c15_i32_6 = arith.constant 15 : i32
    %18 = tpu.iota {dimensions = array<i32: 0>} : vector<6x13xi32>
    %19 = tpu.iota {dimensions = array<i32: 1>} : vector<6x13xi32>
    %c2_i32_7 = arith.constant 2 : i32
    %20 = vector.broadcast %c2_i32_7 : i32 to vector<6x13xi32>
    %21 = arith.muli %20, %18 : vector<6x13xi32>
    %22 = arith.cmpi eq, %19, %21 : vector<6x13xi32>
    %cst_8 = arith.constant 1.000000e+00 : f32
    %cst_9 = arith.constant 0.000000e+00 : f32
    %23 = vector.broadcast %cst_8 : f32 to vector<6x13xf32>
    %24 = vector.broadcast %cst_9 : f32 to vector<6x13xf32>
    %25 = arith.select %22, %23, %24 : vector<6x13xi1>, vector<6x13xf32>
    %c2_i32_10 = arith.constant 2 : i32
    %26 = vector.broadcast %c2_i32_10 : i32 to vector<6x13xi32>
    %27 = arith.muli %26, %18 : vector<6x13xi32>
    %c1_i32_11 = arith.constant 1 : i32
    %28 = vector.broadcast %c1_i32_11 : i32 to vector<6x13xi32>
    %29 = arith.addi %27, %28 : vector<6x13xi32>
    %30 = arith.cmpi eq, %19, %29 : vector<6x13xi32>
    %cst_12 = arith.constant 1.000000e+00 : f32
    %cst_13 = arith.constant 0.000000e+00 : f32
    %31 = vector.broadcast %cst_12 : f32 to vector<6x13xf32>
    %32 = vector.broadcast %cst_13 : f32 to vector<6x13xf32>
    %33 = arith.select %30, %31, %32 : vector<6x13xi1>, vector<6x13xf32>
    %c0_14 = arith.constant 0 : index
    %c0_15 = arith.constant 0 : index
    %34 = vector.load %arg5[%c0_14, %c0_15] : memref<1x128xf32, #tpu.memory_space<vmem>>, vector<1x128xf32>
    %c0_i32_16 = arith.constant 0 : i32
    %c6_i32 = arith.constant 6 : i32
    %35 = arith.addi %c0_i32_16, %c6_i32 : i32
    %c1_i32_17 = arith.constant 1 : i32
    scf.for %arg14 = %c0_i32_16 to %35 step %c1_i32_17  : i32 {
      %c2_i32_68 = arith.constant 2 : i32
      %91 = arith.muli %c2_i32_68, %arg14 : i32
      %c0_i32_69 = arith.constant 0 : i32
      %92 = arith.addi %91, %c0_i32_69 : i32
      %c0_70 = arith.constant 0 : index
      %93 = arith.index_cast %92 : i32 to index
      %c0_71 = arith.constant 0 : index
      %c0_72 = arith.constant 0 : index
      %94 = vector.load %arg11[%c0_70, %93, %c0_71, %c0_72] : memref<1x15x15x128xf32, #tpu.memory_space<vmem>>, vector<1x1x13x128xf32>
      %95 = vector.shape_cast %94 : vector<1x1x13x128xf32> to vector<13x128xf32>
      %c0_73 = arith.constant 0 : index
      %c0_74 = arith.constant 0 : index
      %c0_75 = arith.constant 0 : index
      %96 = vector.load %arg4[%c0_73, %c0_74, %c0_75] : memref<9x128x128xf32, #tpu.memory_space<vmem>>, vector<1x128x128xf32>
      %97 = vector.shape_cast %96 : vector<1x128x128xf32> to vector<128x128xf32>
      %cst_76 = arith.constant dense<0.000000e+00> : vector<13x128xf32>
      %98 = tpu.matmul %95, %97, %cst_76 {dimension_numbers = #tpu.dot_dimension_numbers<[1], [0], [0], [1], [0, 0, 1, 1], [], []>} : vector<13x128xf32>, vector<128x128xf32>, vector<13x128xf32> -> vector<13x128xf32>
      %c0_i32_77 = arith.constant 0 : i32
      %99 = arith.addi %91, %c0_i32_77 : i32
      %c0_78 = arith.constant 0 : index
      %100 = arith.index_cast %99 : i32 to index
      %c1_79 = arith.constant 1 : index
      %c0_80 = arith.constant 0 : index
      %101 = vector.load %arg11[%c0_78, %100, %c1_79, %c0_80] : memref<1x15x15x128xf32, #tpu.memory_space<vmem>>, vector<1x1x13x128xf32>
      %102 = vector.shape_cast %101 : vector<1x1x13x128xf32> to vector<13x128xf32>
      %c1_81 = arith.constant 1 : index
      %c0_82 = arith.constant 0 : index
      %c0_83 = arith.constant 0 : index
      %103 = vector.load %arg4[%c1_81, %c0_82, %c0_83] : memref<9x128x128xf32, #tpu.memory_space<vmem>>, vector<1x128x128xf32>
      %104 = vector.shape_cast %103 : vector<1x128x128xf32> to vector<128x128xf32>
      %cst_84 = arith.constant dense<0.000000e+00> : vector<13x128xf32>
      %105 = tpu.matmul %102, %104, %cst_84 {dimension_numbers = #tpu.dot_dimension_numbers<[1], [0], [0], [1], [0, 0, 1, 1], [], []>} : vector<13x128xf32>, vector<128x128xf32>, vector<13x128xf32> -> vector<13x128xf32>
      %106 = arith.addf %98, %105 : vector<13x128xf32>
      %c0_i32_85 = arith.constant 0 : i32
      %107 = arith.addi %91, %c0_i32_85 : i32
      %c0_86 = arith.constant 0 : index
      %108 = arith.index_cast %107 : i32 to index
      %c2_87 = arith.constant 2 : index
      %c0_88 = arith.constant 0 : index
      %109 = vector.load %arg11[%c0_86, %108, %c2_87, %c0_88] : memref<1x15x15x128xf32, #tpu.memory_space<vmem>>, vector<1x1x13x128xf32>
      %110 = vector.shape_cast %109 : vector<1x1x13x128xf32> to vector<13x128xf32>
      %c2_89 = arith.constant 2 : index
      %c0_90 = arith.constant 0 : index
      %c0_91 = arith.constant 0 : index
      %111 = vector.load %arg4[%c2_89, %c0_90, %c0_91] : memref<9x128x128xf32, #tpu.memory_space<vmem>>, vector<1x128x128xf32>
      %112 = vector.shape_cast %111 : vector<1x128x128xf32> to vector<128x128xf32>
      %cst_92 = arith.constant dense<0.000000e+00> : vector<13x128xf32>
      %113 = tpu.matmul %110, %112, %cst_92 {dimension_numbers = #tpu.dot_dimension_numbers<[1], [0], [0], [1], [0, 0, 1, 1], [], []>} : vector<13x128xf32>, vector<128x128xf32>, vector<13x128xf32> -> vector<13x128xf32>
      %114 = arith.addf %106, %113 : vector<13x128xf32>
      %c1_i32_93 = arith.constant 1 : i32
      %115 = arith.addi %91, %c1_i32_93 : i32
      %c0_94 = arith.constant 0 : index
      %116 = arith.index_cast %115 : i32 to index
      %c0_95 = arith.constant 0 : index
      %c0_96 = arith.constant 0 : index
      %117 = vector.load %arg11[%c0_94, %116, %c0_95, %c0_96] : memref<1x15x15x128xf32, #tpu.memory_space<vmem>>, vector<1x1x13x128xf32>
      %118 = vector.shape_cast %117 : vector<1x1x13x128xf32> to vector<13x128xf32>
      %c3_97 = arith.constant 3 : index
      %c0_98 = arith.constant 0 : index
      %c0_99 = arith.constant 0 : index
      %119 = vector.load %arg4[%c3_97, %c0_98, %c0_99] : memref<9x128x128xf32, #tpu.memory_space<vmem>>, vector<1x128x128xf32>
      %120 = vector.shape_cast %119 : vector<1x128x128xf32> to vector<128x128xf32>
      %cst_100 = arith.constant dense<0.000000e+00> : vector<13x128xf32>
      %121 = tpu.matmul %118, %120, %cst_100 {dimension_numbers = #tpu.dot_dimension_numbers<[1], [0], [0], [1], [0, 0, 1, 1], [], []>} : vector<13x128xf32>, vector<128x128xf32>, vector<13x128xf32> -> vector<13x128xf32>
      %122 = arith.addf %114, %121 : vector<13x128xf32>
      %c1_i32_101 = arith.constant 1 : i32
      %123 = arith.addi %91, %c1_i32_101 : i32
      %c0_102 = arith.constant 0 : index
      %124 = arith.index_cast %123 : i32 to index
      %c1_103 = arith.constant 1 : index
      %c0_104 = arith.constant 0 : index
      %125 = vector.load %arg11[%c0_102, %124, %c1_103, %c0_104] : memref<1x15x15x128xf32, #tpu.memory_space<vmem>>, vector<1x1x13x128xf32>
      %126 = vector.shape_cast %125 : vector<1x1x13x128xf32> to vector<13x128xf32>
      %c4 = arith.constant 4 : index
      %c0_105 = arith.constant 0 : index
      %c0_106 = arith.constant 0 : index
      %127 = vector.load %arg4[%c4, %c0_105, %c0_106] : memref<9x128x128xf32, #tpu.memory_space<vmem>>, vector<1x128x128xf32>
      %128 = vector.shape_cast %127 : vector<1x128x128xf32> to vector<128x128xf32>
      %cst_107 = arith.constant dense<0.000000e+00> : vector<13x128xf32>
      %129 = tpu.matmul %126, %128, %cst_107 {dimension_numbers = #tpu.dot_dimension_numbers<[1], [0], [0], [1], [0, 0, 1, 1], [], []>} : vector<13x128xf32>, vector<128x128xf32>, vector<13x128xf32> -> vector<13x128xf32>
      %130 = arith.addf %122, %129 : vector<13x128xf32>
      %c1_i32_108 = arith.constant 1 : i32
      %131 = arith.addi %91, %c1_i32_108 : i32
      %c0_109 = arith.constant 0 : index
      %132 = arith.index_cast %131 : i32 to index
      %c2_110 = arith.constant 2 : index
      %c0_111 = arith.constant 0 : index
      %133 = vector.load %arg11[%c0_109, %132, %c2_110, %c0_111] : memref<1x15x15x128xf32, #tpu.memory_space<vmem>>, vector<1x1x13x128xf32>
      %134 = vector.shape_cast %133 : vector<1x1x13x128xf32> to vector<13x128xf32>
      %c5 = arith.constant 5 : index
      %c0_112 = arith.constant 0 : index
      %c0_113 = arith.constant 0 : index
      %135 = vector.load %arg4[%c5, %c0_112, %c0_113] : memref<9x128x128xf32, #tpu.memory_space<vmem>>, vector<1x128x128xf32>
      %136 = vector.shape_cast %135 : vector<1x128x128xf32> to vector<128x128xf32>
      %cst_114 = arith.constant dense<0.000000e+00> : vector<13x128xf32>
      %137 = tpu.matmul %134, %136, %cst_114 {dimension_numbers = #tpu.dot_dimension_numbers<[1], [0], [0], [1], [0, 0, 1, 1], [], []>} : vector<13x128xf32>, vector<128x128xf32>, vector<13x128xf32> -> vector<13x128xf32>
      %138 = arith.addf %130, %137 : vector<13x128xf32>
      %c2_i32_115 = arith.constant 2 : i32
      %139 = arith.addi %91, %c2_i32_115 : i32
      %c0_116 = arith.constant 0 : index
      %140 = arith.index_cast %139 : i32 to index
      %c0_117 = arith.constant 0 : index
      %c0_118 = arith.constant 0 : index
      %141 = vector.load %arg11[%c0_116, %140, %c0_117, %c0_118] : memref<1x15x15x128xf32, #tpu.memory_space<vmem>>, vector<1x1x13x128xf32>
      %142 = vector.shape_cast %141 : vector<1x1x13x128xf32> to vector<13x128xf32>
      %c6 = arith.constant 6 : index
      %c0_119 = arith.constant 0 : index
      %c0_120 = arith.constant 0 : index
      %143 = vector.load %arg4[%c6, %c0_119, %c0_120] : memref<9x128x128xf32, #tpu.memory_space<vmem>>, vector<1x128x128xf32>
      %144 = vector.shape_cast %143 : vector<1x128x128xf32> to vector<128x128xf32>
      %cst_121 = arith.constant dense<0.000000e+00> : vector<13x128xf32>
      %145 = tpu.matmul %142, %144, %cst_121 {dimension_numbers = #tpu.dot_dimension_numbers<[1], [0], [0], [1], [0, 0, 1, 1], [], []>} : vector<13x128xf32>, vector<128x128xf32>, vector<13x128xf32> -> vector<13x128xf32>
      %146 = arith.addf %138, %145 : vector<13x128xf32>
      %c2_i32_122 = arith.constant 2 : i32
      %147 = arith.addi %91, %c2_i32_122 : i32
      %c0_123 = arith.constant 0 : index
      %148 = arith.index_cast %147 : i32 to index
      %c1_124 = arith.constant 1 : index
      %c0_125 = arith.constant 0 : index
      %149 = vector.load %arg11[%c0_123, %148, %c1_124, %c0_125] : memref<1x15x15x128xf32, #tpu.memory_space<vmem>>, vector<1x1x13x128xf32>
      %150 = vector.shape_cast %149 : vector<1x1x13x128xf32> to vector<13x128xf32>
      %c7 = arith.constant 7 : index
      %c0_126 = arith.constant 0 : index
      %c0_127 = arith.constant 0 : index
      %151 = vector.load %arg4[%c7, %c0_126, %c0_127] : memref<9x128x128xf32, #tpu.memory_space<vmem>>, vector<1x128x128xf32>
      %152 = vector.shape_cast %151 : vector<1x128x128xf32> to vector<128x128xf32>
      %cst_128 = arith.constant dense<0.000000e+00> : vector<13x128xf32>
      %153 = tpu.matmul %150, %152, %cst_128 {dimension_numbers = #tpu.dot_dimension_numbers<[1], [0], [0], [1], [0, 0, 1, 1], [], []>} : vector<13x128xf32>, vector<128x128xf32>, vector<13x128xf32> -> vector<13x128xf32>
      %154 = arith.addf %146, %153 : vector<13x128xf32>
      %c2_i32_129 = arith.constant 2 : i32
      %155 = arith.addi %91, %c2_i32_129 : i32
      %c0_130 = arith.constant 0 : index
      %156 = arith.index_cast %155 : i32 to index
      %c2_131 = arith.constant 2 : index
      %c0_132 = arith.constant 0 : index
      %157 = vector.load %arg11[%c0_130, %156, %c2_131, %c0_132] : memref<1x15x15x128xf32, #tpu.memory_space<vmem>>, vector<1x1x13x128xf32>
      %158 = vector.shape_cast %157 : vector<1x1x13x128xf32> to vector<13x128xf32>
      %c8 = arith.constant 8 : index
      %c0_133 = arith.constant 0 : index
      %c0_134 = arith.constant 0 : index
      %159 = vector.load %arg4[%c8, %c0_133, %c0_134] : memref<9x128x128xf32, #tpu.memory_space<vmem>>, vector<1x128x128xf32>
      %160 = vector.shape_cast %159 : vector<1x128x128xf32> to vector<128x128xf32>
      %cst_135 = arith.constant dense<0.000000e+00> : vector<13x128xf32>
      %161 = tpu.matmul %158, %160, %cst_135 {dimension_numbers = #tpu.dot_dimension_numbers<[1], [0], [0], [1], [0, 0, 1, 1], [], []>} : vector<13x128xf32>, vector<128x128xf32>, vector<13x128xf32> -> vector<13x128xf32>
      %162 = arith.addf %154, %161 : vector<13x128xf32>
      %163 = vector.broadcast %34 : vector<1x128xf32> to vector<13x128xf32>
      %164 = arith.addf %162, %163 : vector<13x128xf32>
      %cst_136 = arith.constant 0.000000e+00 : f32
      %165 = vector.broadcast %cst_136 : f32 to vector<13x128xf32>
      %166 = arith.maximumf %164, %165 : vector<13x128xf32>
      %c2_i32_137 = arith.constant 2 : i32
      %167 = arith.muli %c2_i32_137, %arg14 : i32
      %c1_i32_138 = arith.constant 1 : i32
      %168 = arith.addi %167, %c1_i32_138 : i32
      %c0_i32_139 = arith.constant 0 : i32
      %169 = arith.addi %168, %c0_i32_139 : i32
      %c0_140 = arith.constant 0 : index
      %170 = arith.index_cast %169 : i32 to index
      %c0_141 = arith.constant 0 : index
      %c0_142 = arith.constant 0 : index
      %171 = vector.load %arg11[%c0_140, %170, %c0_141, %c0_142] : memref<1x15x15x128xf32, #tpu.memory_space<vmem>>, vector<1x1x13x128xf32>
      %172 = vector.shape_cast %171 : vector<1x1x13x128xf32> to vector<13x128xf32>
      %c0_143 = arith.constant 0 : index
      %c0_144 = arith.constant 0 : index
      %c0_145 = arith.constant 0 : index
      %173 = vector.load %arg4[%c0_143, %c0_144, %c0_145] : memref<9x128x128xf32, #tpu.memory_space<vmem>>, vector<1x128x128xf32>
      %174 = vector.shape_cast %173 : vector<1x128x128xf32> to vector<128x128xf32>
      %cst_146 = arith.constant dense<0.000000e+00> : vector<13x128xf32>
      %175 = tpu.matmul %172, %174, %cst_146 {dimension_numbers = #tpu.dot_dimension_numbers<[1], [0], [0], [1], [0, 0, 1, 1], [], []>} : vector<13x128xf32>, vector<128x128xf32>, vector<13x128xf32> -> vector<13x128xf32>
      %c0_i32_147 = arith.constant 0 : i32
      %176 = arith.addi %168, %c0_i32_147 : i32
      %c0_148 = arith.constant 0 : index
      %177 = arith.index_cast %176 : i32 to index
      %c1_149 = arith.constant 1 : index
      %c0_150 = arith.constant 0 : index
      %178 = vector.load %arg11[%c0_148, %177, %c1_149, %c0_150] : memref<1x15x15x128xf32, #tpu.memory_space<vmem>>, vector<1x1x13x128xf32>
      %179 = vector.shape_cast %178 : vector<1x1x13x128xf32> to vector<13x128xf32>
      %c1_151 = arith.constant 1 : index
      %c0_152 = arith.constant 0 : index
      %c0_153 = arith.constant 0 : index
      %180 = vector.load %arg4[%c1_151, %c0_152, %c0_153] : memref<9x128x128xf32, #tpu.memory_space<vmem>>, vector<1x128x128xf32>
      %181 = vector.shape_cast %180 : vector<1x128x128xf32> to vector<128x128xf32>
      %cst_154 = arith.constant dense<0.000000e+00> : vector<13x128xf32>
      %182 = tpu.matmul %179, %181, %cst_154 {dimension_numbers = #tpu.dot_dimension_numbers<[1], [0], [0], [1], [0, 0, 1, 1], [], []>} : vector<13x128xf32>, vector<128x128xf32>, vector<13x128xf32> -> vector<13x128xf32>
      %183 = arith.addf %175, %182 : vector<13x128xf32>
      %c0_i32_155 = arith.constant 0 : i32
      %184 = arith.addi %168, %c0_i32_155 : i32
      %c0_156 = arith.constant 0 : index
      %185 = arith.index_cast %184 : i32 to index
      %c2_157 = arith.constant 2 : index
      %c0_158 = arith.constant 0 : index
      %186 = vector.load %arg11[%c0_156, %185, %c2_157, %c0_158] : memref<1x15x15x128xf32, #tpu.memory_space<vmem>>, vector<1x1x13x128xf32>
      %187 = vector.shape_cast %186 : vector<1x1x13x128xf32> to vector<13x128xf32>
      %c2_159 = arith.constant 2 : index
      %c0_160 = arith.constant 0 : index
      %c0_161 = arith.constant 0 : index
      %188 = vector.load %arg4[%c2_159, %c0_160, %c0_161] : memref<9x128x128xf32, #tpu.memory_space<vmem>>, vector<1x128x128xf32>
      %189 = vector.shape_cast %188 : vector<1x128x128xf32> to vector<128x128xf32>
      %cst_162 = arith.constant dense<0.000000e+00> : vector<13x128xf32>
      %190 = tpu.matmul %187, %189, %cst_162 {dimension_numbers = #tpu.dot_dimension_numbers<[1], [0], [0], [1], [0, 0, 1, 1], [], []>} : vector<13x128xf32>, vector<128x128xf32>, vector<13x128xf32> -> vector<13x128xf32>
      %191 = arith.addf %183, %190 : vector<13x128xf32>
      %c1_i32_163 = arith.constant 1 : i32
      %192 = arith.addi %168, %c1_i32_163 : i32
      %c0_164 = arith.constant 0 : index
      %193 = arith.index_cast %192 : i32 to index
      %c0_165 = arith.constant 0 : index
      %c0_166 = arith.constant 0 : index
      %194 = vector.load %arg11[%c0_164, %193, %c0_165, %c0_166] : memref<1x15x15x128xf32, #tpu.memory_space<vmem>>, vector<1x1x13x128xf32>
      %195 = vector.shape_cast %194 : vector<1x1x13x128xf32> to vector<13x128xf32>
      %c3_167 = arith.constant 3 : index
      %c0_168 = arith.constant 0 : index
      %c0_169 = arith.constant 0 : index
      %196 = vector.load %arg4[%c3_167, %c0_168, %c0_169] : memref<9x128x128xf32, #tpu.memory_space<vmem>>, vector<1x128x128xf32>
      %197 = vector.shape_cast %196 : vector<1x128x128xf32> to vector<128x128xf32>
      %cst_170 = arith.constant dense<0.000000e+00> : vector<13x128xf32>
      %198 = tpu.matmul %195, %197, %cst_170 {dimension_numbers = #tpu.dot_dimension_numbers<[1], [0], [0], [1], [0, 0, 1, 1], [], []>} : vector<13x128xf32>, vector<128x128xf32>, vector<13x128xf32> -> vector<13x128xf32>
      %199 = arith.addf %191, %198 : vector<13x128xf32>
      %c1_i32_171 = arith.constant 1 : i32
      %200 = arith.addi %168, %c1_i32_171 : i32
      %c0_172 = arith.constant 0 : index
      %201 = arith.index_cast %200 : i32 to index
      %c1_173 = arith.constant 1 : index
      %c0_174 = arith.constant 0 : index
      %202 = vector.load %arg11[%c0_172, %201, %c1_173, %c0_174] : memref<1x15x15x128xf32, #tpu.memory_space<vmem>>, vector<1x1x13x128xf32>
      %203 = vector.shape_cast %202 : vector<1x1x13x128xf32> to vector<13x128xf32>
      %c4_175 = arith.constant 4 : index
      %c0_176 = arith.constant 0 : index
      %c0_177 = arith.constant 0 : index
      %204 = vector.load %arg4[%c4_175, %c0_176, %c0_177] : memref<9x128x128xf32, #tpu.memory_space<vmem>>, vector<1x128x128xf32>
      %205 = vector.shape_cast %204 : vector<1x128x128xf32> to vector<128x128xf32>
      %cst_178 = arith.constant dense<0.000000e+00> : vector<13x128xf32>
      %206 = tpu.matmul %203, %205, %cst_178 {dimension_numbers = #tpu.dot_dimension_numbers<[1], [0], [0], [1], [0, 0, 1, 1], [], []>} : vector<13x128xf32>, vector<128x128xf32>, vector<13x128xf32> -> vector<13x128xf32>
      %207 = arith.addf %199, %206 : vector<13x128xf32>
      %c1_i32_179 = arith.constant 1 : i32
      %208 = arith.addi %168, %c1_i32_179 : i32
      %c0_180 = arith.constant 0 : index
      %209 = arith.index_cast %208 : i32 to index
      %c2_181 = arith.constant 2 : index
      %c0_182 = arith.constant 0 : index
      %210 = vector.load %arg11[%c0_180, %209, %c2_181, %c0_182] : memref<1x15x15x128xf32, #tpu.memory_space<vmem>>, vector<1x1x13x128xf32>
      %211 = vector.shape_cast %210 : vector<1x1x13x128xf32> to vector<13x128xf32>
      %c5_183 = arith.constant 5 : index
      %c0_184 = arith.constant 0 : index
      %c0_185 = arith.constant 0 : index
      %212 = vector.load %arg4[%c5_183, %c0_184, %c0_185] : memref<9x128x128xf32, #tpu.memory_space<vmem>>, vector<1x128x128xf32>
      %213 = vector.shape_cast %212 : vector<1x128x128xf32> to vector<128x128xf32>
      %cst_186 = arith.constant dense<0.000000e+00> : vector<13x128xf32>
      %214 = tpu.matmul %211, %213, %cst_186 {dimension_numbers = #tpu.dot_dimension_numbers<[1], [0], [0], [1], [0, 0, 1, 1], [], []>} : vector<13x128xf32>, vector<128x128xf32>, vector<13x128xf32> -> vector<13x128xf32>
      %215 = arith.addf %207, %214 : vector<13x128xf32>
      %c2_i32_187 = arith.constant 2 : i32
      %216 = arith.addi %168, %c2_i32_187 : i32
      %c0_188 = arith.constant 0 : index
      %217 = arith.index_cast %216 : i32 to index
      %c0_189 = arith.constant 0 : index
      %c0_190 = arith.constant 0 : index
      %218 = vector.load %arg11[%c0_188, %217, %c0_189, %c0_190] : memref<1x15x15x128xf32, #tpu.memory_space<vmem>>, vector<1x1x13x128xf32>
      %219 = vector.shape_cast %218 : vector<1x1x13x128xf32> to vector<13x128xf32>
      %c6_191 = arith.constant 6 : index
      %c0_192 = arith.constant 0 : index
      %c0_193 = arith.constant 0 : index
      %220 = vector.load %arg4[%c6_191, %c0_192, %c0_193] : memref<9x128x128xf32, #tpu.memory_space<vmem>>, vector<1x128x128xf32>
      %221 = vector.shape_cast %220 : vector<1x128x128xf32> to vector<128x128xf32>
      %cst_194 = arith.constant dense<0.000000e+00> : vector<13x128xf32>
      %222 = tpu.matmul %219, %221, %cst_194 {dimension_numbers = #tpu.dot_dimension_numbers<[1], [0], [0], [1], [0, 0, 1, 1], [], []>} : vector<13x128xf32>, vector<128x128xf32>, vector<13x128xf32> -> vector<13x128xf32>
      %223 = arith.addf %215, %222 : vector<13x128xf32>
      %c2_i32_195 = arith.constant 2 : i32
      %224 = arith.addi %168, %c2_i32_195 : i32
      %c0_196 = arith.constant 0 : index
      %225 = arith.index_cast %224 : i32 to index
      %c1_197 = arith.constant 1 : index
      %c0_198 = arith.constant 0 : index
      %226 = vector.load %arg11[%c0_196, %225, %c1_197, %c0_198] : memref<1x15x15x128xf32, #tpu.memory_space<vmem>>, vector<1x1x13x128xf32>
      %227 = vector.shape_cast %226 : vector<1x1x13x128xf32> to vector<13x128xf32>
      %c7_199 = arith.constant 7 : index
      %c0_200 = arith.constant 0 : index
      %c0_201 = arith.constant 0 : index
      %228 = vector.load %arg4[%c7_199, %c0_200, %c0_201] : memref<9x128x128xf32, #tpu.memory_space<vmem>>, vector<1x128x128xf32>
      %229 = vector.shape_cast %228 : vector<1x128x128xf32> to vector<128x128xf32>
      %cst_202 = arith.constant dense<0.000000e+00> : vector<13x128xf32>
      %230 = tpu.matmul %227, %229, %cst_202 {dimension_numbers = #tpu.dot_dimension_numbers<[1], [0], [0], [1], [0, 0, 1, 1], [], []>} : vector<13x128xf32>, vector<128x128xf32>, vector<13x128xf32> -> vector<13x128xf32>
      %231 = arith.addf %223, %230 : vector<13x128xf32>
      %c2_i32_203 = arith.constant 2 : i32
      %232 = arith.addi %168, %c2_i32_203 : i32
      %c0_204 = arith.constant 0 : index
      %233 = arith.index_cast %232 : i32 to index
      %c2_205 = arith.constant 2 : index
      %c0_206 = arith.constant 0 : index
      %234 = vector.load %arg11[%c0_204, %233, %c2_205, %c0_206] : memref<1x15x15x128xf32, #tpu.memory_space<vmem>>, vector<1x1x13x128xf32>
      %235 = vector.shape_cast %234 : vector<1x1x13x128xf32> to vector<13x128xf32>
      %c8_207 = arith.constant 8 : index
      %c0_208 = arith.constant 0 : index
      %c0_209 = arith.constant 0 : index
      %236 = vector.load %arg4[%c8_207, %c0_208, %c0_209] : memref<9x128x128xf32, #tpu.memory_space<vmem>>, vector<1x128x128xf32>
      %237 = vector.shape_cast %236 : vector<1x128x128xf32> to vector<128x128xf32>
      %cst_210 = arith.constant dense<0.000000e+00> : vector<13x128xf32>
      %238 = tpu.matmul %235, %237, %cst_210 {dimension_numbers = #tpu.dot_dimension_numbers<[1], [0], [0], [1], [0, 0, 1, 1], [], []>} : vector<13x128xf32>, vector<128x128xf32>, vector<13x128xf32> -> vector<13x128xf32>
      %239 = arith.addf %231, %238 : vector<13x128xf32>
      %240 = vector.broadcast %34 : vector<1x128xf32> to vector<13x128xf32>
      %241 = arith.addf %239, %240 : vector<13x128xf32>
      %cst_211 = arith.constant 0.000000e+00 : f32
      %242 = vector.broadcast %cst_211 : f32 to vector<13x128xf32>
      %243 = arith.maximumf %241, %242 : vector<13x128xf32>
      %244 = arith.maximumf %166, %243 : vector<13x128xf32>
      %cst_212 = arith.constant dense<0.000000e+00> : vector<6x128xf32>
      %245 = tpu.matmul %25, %244, %cst_212 {dimension_numbers = #tpu.dot_dimension_numbers<[1], [0], [0], [1], [0, 0, 1, 1], [], []>} : vector<6x13xf32>, vector<13x128xf32>, vector<6x128xf32> -> vector<6x128xf32>
      %cst_213 = arith.constant dense<0.000000e+00> : vector<6x128xf32>
      %246 = tpu.matmul %33, %244, %cst_213 {dimension_numbers = #tpu.dot_dimension_numbers<[1], [0], [0], [1], [0, 0, 1, 1], [], []>} : vector<6x13xf32>, vector<13x128xf32>, vector<6x128xf32> -> vector<6x128xf32>
      %247 = arith.maximumf %245, %246 : vector<6x128xf32>
      %c0_214 = arith.constant 0 : index
      %248 = arith.index_cast %arg14 : i32 to index
      %c0_215 = arith.constant 0 : index
      %c0_216 = arith.constant 0 : index
      %249 = vector.load %arg12[%c0_214, %248, %c0_215, %c0_216] : memref<1x6x6x128xf32, #tpu.memory_space<vmem>>, vector<1x1x6x128xf32>
      %250 = vector.shape_cast %249 : vector<1x1x6x128xf32> to vector<6x128xf32>
      %251 = vector.shape_cast %247 : vector<6x128xf32> to vector<1x1x6x128xf32>
      tpu.vector_store %arg12[%c0_214, %248, %c0_215, %c0_216], %251 {strides = array<i32>} : memref<1x6x6x128xf32, #tpu.memory_space<vmem>>, vector<1x1x6x128xf32>,
    }
    %c6_i32_18 = arith.constant 6 : i32
    %36 = tpu.iota {dimensions = array<i32: 0>} : vector<2x4xi32>
    %37 = tpu.iota {dimensions = array<i32: 1>} : vector<2x4xi32>
    %c2_i32_19 = arith.constant 2 : i32
    %38 = vector.broadcast %c2_i32_19 : i32 to vector<2x4xi32>
    %39 = arith.muli %38, %36 : vector<2x4xi32>
    %40 = arith.cmpi eq, %37, %39 : vector<2x4xi32>
    %cst_20 = arith.constant 1.000000e+00 : f32
    %cst_21 = arith.constant 0.000000e+00 : f32
    %41 = vector.broadcast %cst_20 : f32 to vector<2x4xf32>
    %42 = vector.broadcast %cst_21 : f32 to vector<2x4xf32>
    %43 = arith.select %40, %41, %42 : vector<2x4xi1>, vector<2x4xf32>
    %c2_i32_22 = arith.constant 2 : i32
    %44 = vector.broadcast %c2_i32_22 : i32 to vector<2x4xi32>
    %45 = arith.muli %44, %36 : vector<2x4xi32>
    %c1_i32_23 = arith.constant 1 : i32
    %46 = vector.broadcast %c1_i32_23 : i32 to vector<2x4xi32>
    %47 = arith.addi %45, %46 : vector<2x4xi32>
    %48 = arith.cmpi eq, %37, %47 : vector<2x4xi32>
    %cst_24 = arith.constant 1.000000e+00 : f32
    %cst_25 = arith.constant 0.000000e+00 : f32
    %49 = vector.broadcast %cst_24 : f32 to vector<2x4xf32>
    %50 = vector.broadcast %cst_25 : f32 to vector<2x4xf32>
    %51 = arith.select %48, %49, %50 : vector<2x4xi1>, vector<2x4xf32>
    %c0_26 = arith.constant 0 : index
    %c0_27 = arith.constant 0 : index
    %52 = vector.load %arg7[%c0_26, %c0_27] : memref<1x128xf32, #tpu.memory_space<vmem>>, vector<1x128xf32>
    %c0_i32_28 = arith.constant 0 : i32
    %c2_i32_29 = arith.constant 2 : i32
    %53 = arith.addi %c0_i32_28, %c2_i32_29 : i32
    %c1_i32_30 = arith.constant 1 : i32
    scf.for %arg14 = %c0_i32_28 to %53 step %c1_i32_30  : i32 {
      %c2_i32_68 = arith.constant 2 : i32
      %91 = arith.muli %c2_i32_68, %arg14 : i32
      %c0_i32_69 = arith.constant 0 : i32
      %92 = arith.addi %91, %c0_i32_69 : i32
      %c0_70 = arith.constant 0 : index
      %93 = arith.index_cast %92 : i32 to index
      %c0_71 = arith.constant 0 : index
      %c0_72 = arith.constant 0 : index
      %94 = vector.load %arg12[%c0_70, %93, %c0_71, %c0_72] : memref<1x6x6x128xf32, #tpu.memory_space<vmem>>, vector<1x1x4x128xf32>
      %95 = vector.shape_cast %94 : vector<1x1x4x128xf32> to vector<4x128xf32>
      %c0_73 = arith.constant 0 : index
      %c0_74 = arith.constant 0 : index
      %c0_75 = arith.constant 0 : index
      %96 = vector.load %arg6[%c0_73, %c0_74, %c0_75] : memref<9x128x128xf32, #tpu.memory_space<vmem>>, vector<1x128x128xf32>
      %97 = vector.shape_cast %96 : vector<1x128x128xf32> to vector<128x128xf32>
      %cst_76 = arith.constant dense<0.000000e+00> : vector<4x128xf32>
      %98 = tpu.matmul %95, %97, %cst_76 {dimension_numbers = #tpu.dot_dimension_numbers<[1], [0], [0], [1], [0, 0, 1, 1], [], []>} : vector<4x128xf32>, vector<128x128xf32>, vector<4x128xf32> -> vector<4x128xf32>
      %c0_i32_77 = arith.constant 0 : i32
      %99 = arith.addi %91, %c0_i32_77 : i32
      %c0_78 = arith.constant 0 : index
      %100 = arith.index_cast %99 : i32 to index
      %c1_79 = arith.constant 1 : index
      %c0_80 = arith.constant 0 : index
      %101 = vector.load %arg12[%c0_78, %100, %c1_79, %c0_80] : memref<1x6x6x128xf32, #tpu.memory_space<vmem>>, vector<1x1x4x128xf32>
      %102 = vector.shape_cast %101 : vector<1x1x4x128xf32> to vector<4x128xf32>
      %c1_81 = arith.constant 1 : index
      %c0_82 = arith.constant 0 : index
      %c0_83 = arith.constant 0 : index
      %103 = vector.load %arg6[%c1_81, %c0_82, %c0_83] : memref<9x128x128xf32, #tpu.memory_space<vmem>>, vector<1x128x128xf32>
      %104 = vector.shape_cast %103 : vector<1x128x128xf32> to vector<128x128xf32>
      %cst_84 = arith.constant dense<0.000000e+00> : vector<4x128xf32>
      %105 = tpu.matmul %102, %104, %cst_84 {dimension_numbers = #tpu.dot_dimension_numbers<[1], [0], [0], [1], [0, 0, 1, 1], [], []>} : vector<4x128xf32>, vector<128x128xf32>, vector<4x128xf32> -> vector<4x128xf32>
      %106 = arith.addf %98, %105 : vector<4x128xf32>
      %c0_i32_85 = arith.constant 0 : i32
      %107 = arith.addi %91, %c0_i32_85 : i32
      %c0_86 = arith.constant 0 : index
      %108 = arith.index_cast %107 : i32 to index
      %c2_87 = arith.constant 2 : index
      %c0_88 = arith.constant 0 : index
      %109 = vector.load %arg12[%c0_86, %108, %c2_87, %c0_88] : memref<1x6x6x128xf32, #tpu.memory_space<vmem>>, vector<1x1x4x128xf32>
      %110 = vector.shape_cast %109 : vector<1x1x4x128xf32> to vector<4x128xf32>
      %c2_89 = arith.constant 2 : index
      %c0_90 = arith.constant 0 : index
      %c0_91 = arith.constant 0 : index
      %111 = vector.load %arg6[%c2_89, %c0_90, %c0_91] : memref<9x128x128xf32, #tpu.memory_space<vmem>>, vector<1x128x128xf32>
      %112 = vector.shape_cast %111 : vector<1x128x128xf32> to vector<128x128xf32>
      %cst_92 = arith.constant dense<0.000000e+00> : vector<4x128xf32>
      %113 = tpu.matmul %110, %112, %cst_92 {dimension_numbers = #tpu.dot_dimension_numbers<[1], [0], [0], [1], [0, 0, 1, 1], [], []>} : vector<4x128xf32>, vector<128x128xf32>, vector<4x128xf32> -> vector<4x128xf32>
      %114 = arith.addf %106, %113 : vector<4x128xf32>
      %c1_i32_93 = arith.constant 1 : i32
      %115 = arith.addi %91, %c1_i32_93 : i32
      %c0_94 = arith.constant 0 : index
      %116 = arith.index_cast %115 : i32 to index
      %c0_95 = arith.constant 0 : index
      %c0_96 = arith.constant 0 : index
      %117 = vector.load %arg12[%c0_94, %116, %c0_95, %c0_96] : memref<1x6x6x128xf32, #tpu.memory_space<vmem>>, vector<1x1x4x128xf32>
      %118 = vector.shape_cast %117 : vector<1x1x4x128xf32> to vector<4x128xf32>
      %c3_97 = arith.constant 3 : index
      %c0_98 = arith.constant 0 : index
      %c0_99 = arith.constant 0 : index
      %119 = vector.load %arg6[%c3_97, %c0_98, %c0_99] : memref<9x128x128xf32, #tpu.memory_space<vmem>>, vector<1x128x128xf32>
      %120 = vector.shape_cast %119 : vector<1x128x128xf32> to vector<128x128xf32>
      %cst_100 = arith.constant dense<0.000000e+00> : vector<4x128xf32>
      %121 = tpu.matmul %118, %120, %cst_100 {dimension_numbers = #tpu.dot_dimension_numbers<[1], [0], [0], [1], [0, 0, 1, 1], [], []>} : vector<4x128xf32>, vector<128x128xf32>, vector<4x128xf32> -> vector<4x128xf32>
      %122 = arith.addf %114, %121 : vector<4x128xf32>
      %c1_i32_101 = arith.constant 1 : i32
      %123 = arith.addi %91, %c1_i32_101 : i32
      %c0_102 = arith.constant 0 : index
      %124 = arith.index_cast %123 : i32 to index
      %c1_103 = arith.constant 1 : index
      %c0_104 = arith.constant 0 : index
      %125 = vector.load %arg12[%c0_102, %124, %c1_103, %c0_104] : memref<1x6x6x128xf32, #tpu.memory_space<vmem>>, vector<1x1x4x128xf32>
      %126 = vector.shape_cast %125 : vector<1x1x4x128xf32> to vector<4x128xf32>
      %c4 = arith.constant 4 : index
      %c0_105 = arith.constant 0 : index
      %c0_106 = arith.constant 0 : index
      %127 = vector.load %arg6[%c4, %c0_105, %c0_106] : memref<9x128x128xf32, #tpu.memory_space<vmem>>, vector<1x128x128xf32>
      %128 = vector.shape_cast %127 : vector<1x128x128xf32> to vector<128x128xf32>
      %cst_107 = arith.constant dense<0.000000e+00> : vector<4x128xf32>
      %129 = tpu.matmul %126, %128, %cst_107 {dimension_numbers = #tpu.dot_dimension_numbers<[1], [0], [0], [1], [0, 0, 1, 1], [], []>} : vector<4x128xf32>, vector<128x128xf32>, vector<4x128xf32> -> vector<4x128xf32>
      %130 = arith.addf %122, %129 : vector<4x128xf32>
      %c1_i32_108 = arith.constant 1 : i32
      %131 = arith.addi %91, %c1_i32_108 : i32
      %c0_109 = arith.constant 0 : index
      %132 = arith.index_cast %131 : i32 to index
      %c2_110 = arith.constant 2 : index
      %c0_111 = arith.constant 0 : index
      %133 = vector.load %arg12[%c0_109, %132, %c2_110, %c0_111] : memref<1x6x6x128xf32, #tpu.memory_space<vmem>>, vector<1x1x4x128xf32>
      %134 = vector.shape_cast %133 : vector<1x1x4x128xf32> to vector<4x128xf32>
      %c5 = arith.constant 5 : index
      %c0_112 = arith.constant 0 : index
      %c0_113 = arith.constant 0 : index
      %135 = vector.load %arg6[%c5, %c0_112, %c0_113] : memref<9x128x128xf32, #tpu.memory_space<vmem>>, vector<1x128x128xf32>
      %136 = vector.shape_cast %135 : vector<1x128x128xf32> to vector<128x128xf32>
      %cst_114 = arith.constant dense<0.000000e+00> : vector<4x128xf32>
      %137 = tpu.matmul %134, %136, %cst_114 {dimension_numbers = #tpu.dot_dimension_numbers<[1], [0], [0], [1], [0, 0, 1, 1], [], []>} : vector<4x128xf32>, vector<128x128xf32>, vector<4x128xf32> -> vector<4x128xf32>
      %138 = arith.addf %130, %137 : vector<4x128xf32>
      %c2_i32_115 = arith.constant 2 : i32
      %139 = arith.addi %91, %c2_i32_115 : i32
      %c0_116 = arith.constant 0 : index
      %140 = arith.index_cast %139 : i32 to index
      %c0_117 = arith.constant 0 : index
      %c0_118 = arith.constant 0 : index
      %141 = vector.load %arg12[%c0_116, %140, %c0_117, %c0_118] : memref<1x6x6x128xf32, #tpu.memory_space<vmem>>, vector<1x1x4x128xf32>
      %142 = vector.shape_cast %141 : vector<1x1x4x128xf32> to vector<4x128xf32>
      %c6 = arith.constant 6 : index
      %c0_119 = arith.constant 0 : index
      %c0_120 = arith.constant 0 : index
      %143 = vector.load %arg6[%c6, %c0_119, %c0_120] : memref<9x128x128xf32, #tpu.memory_space<vmem>>, vector<1x128x128xf32>
      %144 = vector.shape_cast %143 : vector<1x128x128xf32> to vector<128x128xf32>
      %cst_121 = arith.constant dense<0.000000e+00> : vector<4x128xf32>
      %145 = tpu.matmul %142, %144, %cst_121 {dimension_numbers = #tpu.dot_dimension_numbers<[1], [0], [0], [1], [0, 0, 1, 1], [], []>} : vector<4x128xf32>, vector<128x128xf32>, vector<4x128xf32> -> vector<4x128xf32>
      %146 = arith.addf %138, %145 : vector<4x128xf32>
      %c2_i32_122 = arith.constant 2 : i32
      %147 = arith.addi %91, %c2_i32_122 : i32
      %c0_123 = arith.constant 0 : index
      %148 = arith.index_cast %147 : i32 to index
      %c1_124 = arith.constant 1 : index
      %c0_125 = arith.constant 0 : index
      %149 = vector.load %arg12[%c0_123, %148, %c1_124, %c0_125] : memref<1x6x6x128xf32, #tpu.memory_space<vmem>>, vector<1x1x4x128xf32>
      %150 = vector.shape_cast %149 : vector<1x1x4x128xf32> to vector<4x128xf32>
      %c7 = arith.constant 7 : index
      %c0_126 = arith.constant 0 : index
      %c0_127 = arith.constant 0 : index
      %151 = vector.load %arg6[%c7, %c0_126, %c0_127] : memref<9x128x128xf32, #tpu.memory_space<vmem>>, vector<1x128x128xf32>
      %152 = vector.shape_cast %151 : vector<1x128x128xf32> to vector<128x128xf32>
      %cst_128 = arith.constant dense<0.000000e+00> : vector<4x128xf32>
      %153 = tpu.matmul %150, %152, %cst_128 {dimension_numbers = #tpu.dot_dimension_numbers<[1], [0], [0], [1], [0, 0, 1, 1], [], []>} : vector<4x128xf32>, vector<128x128xf32>, vector<4x128xf32> -> vector<4x128xf32>
      %154 = arith.addf %146, %153 : vector<4x128xf32>
      %c2_i32_129 = arith.constant 2 : i32
      %155 = arith.addi %91, %c2_i32_129 : i32
      %c0_130 = arith.constant 0 : index
      %156 = arith.index_cast %155 : i32 to index
      %c2_131 = arith.constant 2 : index
      %c0_132 = arith.constant 0 : index
      %157 = vector.load %arg12[%c0_130, %156, %c2_131, %c0_132] : memref<1x6x6x128xf32, #tpu.memory_space<vmem>>, vector<1x1x4x128xf32>
      %158 = vector.shape_cast %157 : vector<1x1x4x128xf32> to vector<4x128xf32>
      %c8 = arith.constant 8 : index
      %c0_133 = arith.constant 0 : index
      %c0_134 = arith.constant 0 : index
      %159 = vector.load %arg6[%c8, %c0_133, %c0_134] : memref<9x128x128xf32, #tpu.memory_space<vmem>>, vector<1x128x128xf32>
      %160 = vector.shape_cast %159 : vector<1x128x128xf32> to vector<128x128xf32>
      %cst_135 = arith.constant dense<0.000000e+00> : vector<4x128xf32>
      %161 = tpu.matmul %158, %160, %cst_135 {dimension_numbers = #tpu.dot_dimension_numbers<[1], [0], [0], [1], [0, 0, 1, 1], [], []>} : vector<4x128xf32>, vector<128x128xf32>, vector<4x128xf32> -> vector<4x128xf32>
      %162 = arith.addf %154, %161 : vector<4x128xf32>
      %163 = vector.broadcast %52 : vector<1x128xf32> to vector<4x128xf32>
      %164 = arith.addf %162, %163 : vector<4x128xf32>
      %cst_136 = arith.constant 0.000000e+00 : f32
      %165 = vector.broadcast %cst_136 : f32 to vector<4x128xf32>
      %166 = arith.maximumf %164, %165 : vector<4x128xf32>
      %c2_i32_137 = arith.constant 2 : i32
      %167 = arith.muli %c2_i32_137, %arg14 : i32
      %c1_i32_138 = arith.constant 1 : i32
      %168 = arith.addi %167, %c1_i32_138 : i32
      %c0_i32_139 = arith.constant 0 : i32
      %169 = arith.addi %168, %c0_i32_139 : i32
      %c0_140 = arith.constant 0 : index
      %170 = arith.index_cast %169 : i32 to index
      %c0_141 = arith.constant 0 : index
      %c0_142 = arith.constant 0 : index
      %171 = vector.load %arg12[%c0_140, %170, %c0_141, %c0_142] : memref<1x6x6x128xf32, #tpu.memory_space<vmem>>, vector<1x1x4x128xf32>
      %172 = vector.shape_cast %171 : vector<1x1x4x128xf32> to vector<4x128xf32>
      %c0_143 = arith.constant 0 : index
      %c0_144 = arith.constant 0 : index
      %c0_145 = arith.constant 0 : index
      %173 = vector.load %arg6[%c0_143, %c0_144, %c0_145] : memref<9x128x128xf32, #tpu.memory_space<vmem>>, vector<1x128x128xf32>
      %174 = vector.shape_cast %173 : vector<1x128x128xf32> to vector<128x128xf32>
      %cst_146 = arith.constant dense<0.000000e+00> : vector<4x128xf32>
      %175 = tpu.matmul %172, %174, %cst_146 {dimension_numbers = #tpu.dot_dimension_numbers<[1], [0], [0], [1], [0, 0, 1, 1], [], []>} : vector<4x128xf32>, vector<128x128xf32>, vector<4x128xf32> -> vector<4x128xf32>
      %c0_i32_147 = arith.constant 0 : i32
      %176 = arith.addi %168, %c0_i32_147 : i32
      %c0_148 = arith.constant 0 : index
      %177 = arith.index_cast %176 : i32 to index
      %c1_149 = arith.constant 1 : index
      %c0_150 = arith.constant 0 : index
      %178 = vector.load %arg12[%c0_148, %177, %c1_149, %c0_150] : memref<1x6x6x128xf32, #tpu.memory_space<vmem>>, vector<1x1x4x128xf32>
      %179 = vector.shape_cast %178 : vector<1x1x4x128xf32> to vector<4x128xf32>
      %c1_151 = arith.constant 1 : index
      %c0_152 = arith.constant 0 : index
      %c0_153 = arith.constant 0 : index
      %180 = vector.load %arg6[%c1_151, %c0_152, %c0_153] : memref<9x128x128xf32, #tpu.memory_space<vmem>>, vector<1x128x128xf32>
      %181 = vector.shape_cast %180 : vector<1x128x128xf32> to vector<128x128xf32>
      %cst_154 = arith.constant dense<0.000000e+00> : vector<4x128xf32>
      %182 = tpu.matmul %179, %181, %cst_154 {dimension_numbers = #tpu.dot_dimension_numbers<[1], [0], [0], [1], [0, 0, 1, 1], [], []>} : vector<4x128xf32>, vector<128x128xf32>, vector<4x128xf32> -> vector<4x128xf32>
      %183 = arith.addf %175, %182 : vector<4x128xf32>
      %c0_i32_155 = arith.constant 0 : i32
      %184 = arith.addi %168, %c0_i32_155 : i32
      %c0_156 = arith.constant 0 : index
      %185 = arith.index_cast %184 : i32 to index
      %c2_157 = arith.constant 2 : index
      %c0_158 = arith.constant 0 : index
      %186 = vector.load %arg12[%c0_156, %185, %c2_157, %c0_158] : memref<1x6x6x128xf32, #tpu.memory_space<vmem>>, vector<1x1x4x128xf32>
      %187 = vector.shape_cast %186 : vector<1x1x4x128xf32> to vector<4x128xf32>
      %c2_159 = arith.constant 2 : index
      %c0_160 = arith.constant 0 : index
      %c0_161 = arith.constant 0 : index
      %188 = vector.load %arg6[%c2_159, %c0_160, %c0_161] : memref<9x128x128xf32, #tpu.memory_space<vmem>>, vector<1x128x128xf32>
      %189 = vector.shape_cast %188 : vector<1x128x128xf32> to vector<128x128xf32>
      %cst_162 = arith.constant dense<0.000000e+00> : vector<4x128xf32>
      %190 = tpu.matmul %187, %189, %cst_162 {dimension_numbers = #tpu.dot_dimension_numbers<[1], [0], [0], [1], [0, 0, 1, 1], [], []>} : vector<4x128xf32>, vector<128x128xf32>, vector<4x128xf32> -> vector<4x128xf32>
      %191 = arith.addf %183, %190 : vector<4x128xf32>
      %c1_i32_163 = arith.constant 1 : i32
      %192 = arith.addi %168, %c1_i32_163 : i32
      %c0_164 = arith.constant 0 : index
      %193 = arith.index_cast %192 : i32 to index
      %c0_165 = arith.constant 0 : index
      %c0_166 = arith.constant 0 : index
      %194 = vector.load %arg12[%c0_164, %193, %c0_165, %c0_166] : memref<1x6x6x128xf32, #tpu.memory_space<vmem>>, vector<1x1x4x128xf32>
      %195 = vector.shape_cast %194 : vector<1x1x4x128xf32> to vector<4x128xf32>
      %c3_167 = arith.constant 3 : index
      %c0_168 = arith.constant 0 : index
      %c0_169 = arith.constant 0 : index
      %196 = vector.load %arg6[%c3_167, %c0_168, %c0_169] : memref<9x128x128xf32, #tpu.memory_space<vmem>>, vector<1x128x128xf32>
      %197 = vector.shape_cast %196 : vector<1x128x128xf32> to vector<128x128xf32>
      %cst_170 = arith.constant dense<0.000000e+00> : vector<4x128xf32>
      %198 = tpu.matmul %195, %197, %cst_170 {dimension_numbers = #tpu.dot_dimension_numbers<[1], [0], [0], [1], [0, 0, 1, 1], [], []>} : vector<4x128xf32>, vector<128x128xf32>, vector<4x128xf32> -> vector<4x128xf32>
      %199 = arith.addf %191, %198 : vector<4x128xf32>
      %c1_i32_171 = arith.constant 1 : i32
      %200 = arith.addi %168, %c1_i32_171 : i32
      %c0_172 = arith.constant 0 : index
      %201 = arith.index_cast %200 : i32 to index
      %c1_173 = arith.constant 1 : index
      %c0_174 = arith.constant 0 : index
      %202 = vector.load %arg12[%c0_172, %201, %c1_173, %c0_174] : memref<1x6x6x128xf32, #tpu.memory_space<vmem>>, vector<1x1x4x128xf32>
      %203 = vector.shape_cast %202 : vector<1x1x4x128xf32> to vector<4x128xf32>
      %c4_175 = arith.constant 4 : index
      %c0_176 = arith.constant 0 : index
      %c0_177 = arith.constant 0 : index
      %204 = vector.load %arg6[%c4_175, %c0_176, %c0_177] : memref<9x128x128xf32, #tpu.memory_space<vmem>>, vector<1x128x128xf32>
      %205 = vector.shape_cast %204 : vector<1x128x128xf32> to vector<128x128xf32>
      %cst_178 = arith.constant dense<0.000000e+00> : vector<4x128xf32>
      %206 = tpu.matmul %203, %205, %cst_178 {dimension_numbers = #tpu.dot_dimension_numbers<[1], [0], [0], [1], [0, 0, 1, 1], [], []>} : vector<4x128xf32>, vector<128x128xf32>, vector<4x128xf32> -> vector<4x128xf32>
      %207 = arith.addf %199, %206 : vector<4x128xf32>
      %c1_i32_179 = arith.constant 1 : i32
      %208 = arith.addi %168, %c1_i32_179 : i32
      %c0_180 = arith.constant 0 : index
      %209 = arith.index_cast %208 : i32 to index
      %c2_181 = arith.constant 2 : index
      %c0_182 = arith.constant 0 : index
      %210 = vector.load %arg12[%c0_180, %209, %c2_181, %c0_182] : memref<1x6x6x128xf32, #tpu.memory_space<vmem>>, vector<1x1x4x128xf32>
      %211 = vector.shape_cast %210 : vector<1x1x4x128xf32> to vector<4x128xf32>
      %c5_183 = arith.constant 5 : index
      %c0_184 = arith.constant 0 : index
      %c0_185 = arith.constant 0 : index
      %212 = vector.load %arg6[%c5_183, %c0_184, %c0_185] : memref<9x128x128xf32, #tpu.memory_space<vmem>>, vector<1x128x128xf32>
      %213 = vector.shape_cast %212 : vector<1x128x128xf32> to vector<128x128xf32>
      %cst_186 = arith.constant dense<0.000000e+00> : vector<4x128xf32>
      %214 = tpu.matmul %211, %213, %cst_186 {dimension_numbers = #tpu.dot_dimension_numbers<[1], [0], [0], [1], [0, 0, 1, 1], [], []>} : vector<4x128xf32>, vector<128x128xf32>, vector<4x128xf32> -> vector<4x128xf32>
      %215 = arith.addf %207, %214 : vector<4x128xf32>
      %c2_i32_187 = arith.constant 2 : i32
      %216 = arith.addi %168, %c2_i32_187 : i32
      %c0_188 = arith.constant 0 : index
      %217 = arith.index_cast %216 : i32 to index
      %c0_189 = arith.constant 0 : index
      %c0_190 = arith.constant 0 : index
      %218 = vector.load %arg12[%c0_188, %217, %c0_189, %c0_190] : memref<1x6x6x128xf32, #tpu.memory_space<vmem>>, vector<1x1x4x128xf32>
      %219 = vector.shape_cast %218 : vector<1x1x4x128xf32> to vector<4x128xf32>
      %c6_191 = arith.constant 6 : index
      %c0_192 = arith.constant 0 : index
      %c0_193 = arith.constant 0 : index
      %220 = vector.load %arg6[%c6_191, %c0_192, %c0_193] : memref<9x128x128xf32, #tpu.memory_space<vmem>>, vector<1x128x128xf32>
      %221 = vector.shape_cast %220 : vector<1x128x128xf32> to vector<128x128xf32>
      %cst_194 = arith.constant dense<0.000000e+00> : vector<4x128xf32>
      %222 = tpu.matmul %219, %221, %cst_194 {dimension_numbers = #tpu.dot_dimension_numbers<[1], [0], [0], [1], [0, 0, 1, 1], [], []>} : vector<4x128xf32>, vector<128x128xf32>, vector<4x128xf32> -> vector<4x128xf32>
      %223 = arith.addf %215, %222 : vector<4x128xf32>
      %c2_i32_195 = arith.constant 2 : i32
      %224 = arith.addi %168, %c2_i32_195 : i32
      %c0_196 = arith.constant 0 : index
      %225 = arith.index_cast %224 : i32 to index
      %c1_197 = arith.constant 1 : index
      %c0_198 = arith.constant 0 : index
      %226 = vector.load %arg12[%c0_196, %225, %c1_197, %c0_198] : memref<1x6x6x128xf32, #tpu.memory_space<vmem>>, vector<1x1x4x128xf32>
      %227 = vector.shape_cast %226 : vector<1x1x4x128xf32> to vector<4x128xf32>
      %c7_199 = arith.constant 7 : index
      %c0_200 = arith.constant 0 : index
      %c0_201 = arith.constant 0 : index
      %228 = vector.load %arg6[%c7_199, %c0_200, %c0_201] : memref<9x128x128xf32, #tpu.memory_space<vmem>>, vector<1x128x128xf32>
      %229 = vector.shape_cast %228 : vector<1x128x128xf32> to vector<128x128xf32>
      %cst_202 = arith.constant dense<0.000000e+00> : vector<4x128xf32>
      %230 = tpu.matmul %227, %229, %cst_202 {dimension_numbers = #tpu.dot_dimension_numbers<[1], [0], [0], [1], [0, 0, 1, 1], [], []>} : vector<4x128xf32>, vector<128x128xf32>, vector<4x128xf32> -> vector<4x128xf32>
      %231 = arith.addf %223, %230 : vector<4x128xf32>
      %c2_i32_203 = arith.constant 2 : i32
      %232 = arith.addi %168, %c2_i32_203 : i32
      %c0_204 = arith.constant 0 : index
      %233 = arith.index_cast %232 : i32 to index
      %c2_205 = arith.constant 2 : index
      %c0_206 = arith.constant 0 : index
      %234 = vector.load %arg12[%c0_204, %233, %c2_205, %c0_206] : memref<1x6x6x128xf32, #tpu.memory_space<vmem>>, vector<1x1x4x128xf32>
      %235 = vector.shape_cast %234 : vector<1x1x4x128xf32> to vector<4x128xf32>
      %c8_207 = arith.constant 8 : index
      %c0_208 = arith.constant 0 : index
      %c0_209 = arith.constant 0 : index
      %236 = vector.load %arg6[%c8_207, %c0_208, %c0_209] : memref<9x128x128xf32, #tpu.memory_space<vmem>>, vector<1x128x128xf32>
      %237 = vector.shape_cast %236 : vector<1x128x128xf32> to vector<128x128xf32>
      %cst_210 = arith.constant dense<0.000000e+00> : vector<4x128xf32>
      %238 = tpu.matmul %235, %237, %cst_210 {dimension_numbers = #tpu.dot_dimension_numbers<[1], [0], [0], [1], [0, 0, 1, 1], [], []>} : vector<4x128xf32>, vector<128x128xf32>, vector<4x128xf32> -> vector<4x128xf32>
      %239 = arith.addf %231, %238 : vector<4x128xf32>
      %240 = vector.broadcast %52 : vector<1x128xf32> to vector<4x128xf32>
      %241 = arith.addf %239, %240 : vector<4x128xf32>
      %cst_211 = arith.constant 0.000000e+00 : f32
      %242 = vector.broadcast %cst_211 : f32 to vector<4x128xf32>
      %243 = arith.maximumf %241, %242 : vector<4x128xf32>
      %244 = arith.maximumf %166, %243 : vector<4x128xf32>
      %cst_212 = arith.constant dense<0.000000e+00> : vector<2x128xf32>
      %245 = tpu.matmul %43, %244, %cst_212 {dimension_numbers = #tpu.dot_dimension_numbers<[1], [0], [0], [1], [0, 0, 1, 1], [], []>} : vector<2x4xf32>, vector<4x128xf32>, vector<2x128xf32> -> vector<2x128xf32>
      %cst_213 = arith.constant dense<0.000000e+00> : vector<2x128xf32>
      %246 = tpu.matmul %51, %244, %cst_213 {dimension_numbers = #tpu.dot_dimension_numbers<[1], [0], [0], [1], [0, 0, 1, 1], [], []>} : vector<2x4xf32>, vector<4x128xf32>, vector<2x128xf32> -> vector<2x128xf32>
      %247 = arith.maximumf %245, %246 : vector<2x128xf32>
      %c0_214 = arith.constant 0 : index
      %248 = arith.index_cast %arg14 : i32 to index
      %c0_215 = arith.constant 0 : index
      %c0_216 = arith.constant 0 : index
      %249 = vector.load %arg13[%c0_214, %248, %c0_215, %c0_216] : memref<1x2x2x128xf32, #tpu.memory_space<vmem>>, vector<1x1x2x128xf32>
      %250 = vector.shape_cast %249 : vector<1x1x2x128xf32> to vector<2x128xf32>
      %251 = vector.shape_cast %247 : vector<2x128xf32> to vector<1x1x2x128xf32>
      tpu.vector_store %arg13[%c0_214, %248, %c0_215, %c0_216], %251 {strides = array<i32>} : memref<1x2x2x128xf32, #tpu.memory_space<vmem>>, vector<1x1x2x128xf32>,
    }
    %c2_i32_31 = arith.constant 2 : i32
    %c0_32 = arith.constant 0 : index
    %c0_33 = arith.constant 0 : index
    %54 = vector.load %arg9[%c0_32, %c0_33] : memref<1x10xf32, #tpu.memory_space<vmem>>, vector<1x10xf32>
    %c0_34 = arith.constant 0 : index
    %c0_35 = arith.constant 0 : index
    %c0_36 = arith.constant 0 : index
    %c0_37 = arith.constant 0 : index
    %55 = vector.load %arg13[%c0_34, %c0_35, %c0_36, %c0_37] : memref<1x2x2x128xf32, #tpu.memory_space<vmem>>, vector<1x1x1x128xf32>
    %56 = vector.shape_cast %55 : vector<1x1x1x128xf32> to vector<1x128xf32>
    %c0_38 = arith.constant 0 : index
    %c0_39 = arith.constant 0 : index
    %c0_40 = arith.constant 0 : index
    %57 = vector.load %arg8[%c0_38, %c0_39, %c0_40] : memref<4x128x10xf32, #tpu.memory_space<vmem>>, vector<1x128x10xf32>
    %58 = vector.shape_cast %57 : vector<1x128x10xf32> to vector<128x10xf32>
    %cst_41 = arith.constant dense<0.000000e+00> : vector<1x10xf32>
    %59 = tpu.matmul %56, %58, %cst_41 {dimension_numbers = #tpu.dot_dimension_numbers<[1], [0], [0], [1], [0, 0, 1, 1], [], []>} : vector<1x128xf32>, vector<128x10xf32>, vector<1x10xf32> -> vector<1x10xf32>
    %60 = arith.addf %54, %59 : vector<1x10xf32>
    %c0_42 = arith.constant 0 : index
    %c0_43 = arith.constant 0 : index
    %c1 = arith.constant 1 : index
    %c0_44 = arith.constant 0 : index
    %61 = vector.load %arg13[%c0_42, %c0_43, %c1, %c0_44] : memref<1x2x2x128xf32, #tpu.memory_space<vmem>>, vector<1x1x1x128xf32>
    %62 = vector.shape_cast %61 : vector<1x1x1x128xf32> to vector<1x128xf32>
    %c1_45 = arith.constant 1 : index
    %c0_46 = arith.constant 0 : index
    %c0_47 = arith.constant 0 : index
    %63 = vector.load %arg8[%c1_45, %c0_46, %c0_47] : memref<4x128x10xf32, #tpu.memory_space<vmem>>, vector<1x128x10xf32>
    %64 = vector.shape_cast %63 : vector<1x128x10xf32> to vector<128x10xf32>
    %cst_48 = arith.constant dense<0.000000e+00> : vector<1x10xf32>
    %65 = tpu.matmul %62, %64, %cst_48 {dimension_numbers = #tpu.dot_dimension_numbers<[1], [0], [0], [1], [0, 0, 1, 1], [], []>} : vector<1x128xf32>, vector<128x10xf32>, vector<1x10xf32> -> vector<1x10xf32>
    %66 = arith.addf %60, %65 : vector<1x10xf32>
    %c0_49 = arith.constant 0 : index
    %c1_50 = arith.constant 1 : index
    %c0_51 = arith.constant 0 : index
    %c0_52 = arith.constant 0 : index
    %67 = vector.load %arg13[%c0_49, %c1_50, %c0_51, %c0_52] : memref<1x2x2x128xf32, #tpu.memory_space<vmem>>, vector<1x1x1x128xf32>
    %68 = vector.shape_cast %67 : vector<1x1x1x128xf32> to vector<1x128xf32>
    %c2 = arith.constant 2 : index
    %c0_53 = arith.constant 0 : index
    %c0_54 = arith.constant 0 : index
    %69 = vector.load %arg8[%c2, %c0_53, %c0_54] : memref<4x128x10xf32, #tpu.memory_space<vmem>>, vector<1x128x10xf32>
    %70 = vector.shape_cast %69 : vector<1x128x10xf32> to vector<128x10xf32>
    %cst_55 = arith.constant dense<0.000000e+00> : vector<1x10xf32>
    %71 = tpu.matmul %68, %70, %cst_55 {dimension_numbers = #tpu.dot_dimension_numbers<[1], [0], [0], [1], [0, 0, 1, 1], [], []>} : vector<1x128xf32>, vector<128x10xf32>, vector<1x10xf32> -> vector<1x10xf32>
    %72 = arith.addf %66, %71 : vector<1x10xf32>
    %c0_56 = arith.constant 0 : index
    %c1_57 = arith.constant 1 : index
    %c1_58 = arith.constant 1 : index
    %c0_59 = arith.constant 0 : index
    %73 = vector.load %arg13[%c0_56, %c1_57, %c1_58, %c0_59] : memref<1x2x2x128xf32, #tpu.memory_space<vmem>>, vector<1x1x1x128xf32>
    %74 = vector.shape_cast %73 : vector<1x1x1x128xf32> to vector<1x128xf32>
    %c3 = arith.constant 3 : index
    %c0_60 = arith.constant 0 : index
    %c0_61 = arith.constant 0 : index
    %75 = vector.load %arg8[%c3, %c0_60, %c0_61] : memref<4x128x10xf32, #tpu.memory_space<vmem>>, vector<1x128x10xf32>
    %76 = vector.shape_cast %75 : vector<1x128x10xf32> to vector<128x10xf32>
    %cst_62 = arith.constant dense<0.000000e+00> : vector<1x10xf32>
    %77 = tpu.matmul %74, %76, %cst_62 {dimension_numbers = #tpu.dot_dimension_numbers<[1], [0], [0], [1], [0, 0, 1, 1], [], []>} : vector<1x128xf32>, vector<128x10xf32>, vector<1x10xf32> -> vector<1x10xf32>
    %78 = arith.addf %72, %77 : vector<1x10xf32>
    %cst_63 = arith.constant dense<0xFF800000> : vector<1xf32>
    %79 = vector.multi_reduction <maximumf>, %78, %cst_63 [1] : vector<1x10xf32> to vector<1xf32>
    %80 = vector.shape_cast %79 : vector<1xf32> to vector<1x1xf32>
    %81 = vector.broadcast %80 : vector<1x1xf32> to vector<1x10xf32>
    %82 = arith.subf %78, %81 : vector<1x10xf32>
    %83 = math.exp %82 : vector<1x10xf32>
    %cst_64 = arith.constant dense<0.000000e+00> : vector<1xf32>
    %84 = vector.multi_reduction <add>, %83, %cst_64 [1] : vector<1x10xf32> to vector<1xf32>
    %85 = vector.shape_cast %84 : vector<1xf32> to vector<1x1xf32>
    %86 = vector.broadcast %85 : vector<1x1xf32> to vector<1x10xf32>
    %87 = arith.divf %83, %86 : vector<1x10xf32>
    %c0_65 = arith.constant 0 : index
    %c0_66 = arith.constant 0 : index
    %c0_67 = arith.constant 0 : index
    %88 = vector.load %arg10[%c0_65, %c0_66, %c0_67] : memref<1x1x10xf32, #tpu.memory_space<vmem>>, vector<1x1x10xf32>
    %89 = vector.shape_cast %88 : vector<1x1x10xf32> to vector<1x10xf32>
    %90 = vector.shape_cast %87 : vector<1x10xf32> to vector<1x1x10xf32>
    tpu.vector_store %arg10[%c0_65, %c0_66, %c0_67], %90 {strides = array<i32>} : memref<1x1x10xf32, #tpu.memory_space<vmem>>, vector<1x1x10xf32>,
    return
  }
  func.func @transform_0(%arg0: i32) -> (i32, i32, i32, i32) {
    %c0_i32 = arith.constant 0 : i32
    %c0_i32_0 = arith.constant 0 : i32
    %c0_i32_1 = arith.constant 0 : i32
    %c0_i32_2 = arith.constant 0 : i32
    return %arg0, %c0_i32, %c0_i32_0, %c0_i32_1 : i32, i32, i32, i32
  }
  func.func @transform_1(%arg0: i32) -> (i32, i32, i32) {
    %c0_i32 = arith.constant 0 : i32
    %c0_i32_0 = arith.constant 0 : i32
    %c0_i32_1 = arith.constant 0 : i32
    %c0_i32_2 = arith.constant 0 : i32
    return %c0_i32, %c0_i32_0, %c0_i32_1 : i32, i32, i32
  }
  func.func @transform_2(%arg0: i32) -> (i32, i32) {
    %c0_i32 = arith.constant 0 : i32
    %c0_i32_0 = arith.constant 0 : i32
    %c0_i32_1 = arith.constant 0 : i32
    return %c0_i32, %c0_i32_0 : i32, i32
  }
  func.func @transform_3(%arg0: i32) -> (i32, i32, i32) {
    %c0_i32 = arith.constant 0 : i32
    %c0_i32_0 = arith.constant 0 : i32
    %c0_i32_1 = arith.constant 0 : i32
    %c0_i32_2 = arith.constant 0 : i32
    return %c0_i32, %c0_i32_0, %c0_i32_1 : i32, i32, i32
  }
  func.func @transform_4(%arg0: i32) -> (i32, i32) {
    %c0_i32 = arith.constant 0 : i32
    %c0_i32_0 = arith.constant 0 : i32
    %c0_i32_1 = arith.constant 0 : i32
    return %c0_i32, %c0_i32_0 : i32, i32
  }
  func.func @transform_5(%arg0: i32) -> (i32, i32, i32) {
    %c0_i32 = arith.constant 0 : i32
    %c0_i32_0 = arith.constant 0 : i32
    %c0_i32_1 = arith.constant 0 : i32
    %c0_i32_2 = arith.constant 0 : i32
    return %c0_i32, %c0_i32_0, %c0_i32_1 : i32, i32, i32
  }
  func.func @transform_6(%arg0: i32) -> (i32, i32) {
    %c0_i32 = arith.constant 0 : i32
    %c0_i32_0 = arith.constant 0 : i32
    %c0_i32_1 = arith.constant 0 : i32
    return %c0_i32, %c0_i32_0 : i32, i32
  }
  func.func @transform_7(%arg0: i32) -> (i32, i32, i32) {
    %c0_i32 = arith.constant 0 : i32
    %c0_i32_0 = arith.constant 0 : i32
    %c0_i32_1 = arith.constant 0 : i32
    %c0_i32_2 = arith.constant 0 : i32
    return %c0_i32, %c0_i32_0, %c0_i32_1 : i32, i32, i32
  }
  func.func @transform_8(%arg0: i32) -> (i32, i32) {
    %c0_i32 = arith.constant 0 : i32
    %c0_i32_0 = arith.constant 0 : i32
    %c0_i32_1 = arith.constant 0 : i32
    return %c0_i32, %c0_i32_0 : i32, i32
  }
  func.func @transform_9(%arg0: i32) -> (i32, i32, i32) {
    %c0_i32 = arith.constant 0 : i32
    %c0_i32_0 = arith.constant 0 : i32
    %c0_i32_1 = arith.constant 0 : i32
    return %arg0, %c0_i32, %c0_i32_0 : i32, i32, i32
  }
}

</mosaic_0001>

<llo_original>
// kernel: net_forward.1
$region0: #{net_forward.1}
  #allocation0 [shape = 'u32[]', space=smem, size = 0x4, offset = 0x4, fixed_abs, tag = 'smem constant byte address 0x4 - core index']
  #allocation1 [shape = 'u32[72,128]{1,0:T(1,128)}', space=vmem, size = 0x9000, scoped, tag = 'internal scratch']
  #allocation2 [shape = 'f32[1,15,15,128]{3,2,1,0:T(8,128)}', space=vmem, size = 0x1e000, scoped, tag = 'scratch operand']
  #allocation3 [shape = 'f32[1,6,6,128]{3,2,1,0:T(8,128)}', space=vmem, size = 0x6000, scoped, tag = 'scratch operand']
  #allocation4 [shape = 'f32[1,2,2,128]{3,2,1,0:T(2,128)}', space=vmem, size = 0x800, scoped, tag = 'scratch operand']
  %s0 = inlined_call_operand.vmem [shape: f32[2,32,32,3], index: 0, kind: input, shape index: {}]
  %s1 = inlined_call_operand.vmem [shape: f32[9,3,128], index: 1, kind: input, shape index: {}]
  %s2 = inlined_call_operand.vmem [shape: f32[1,128], index: 2, kind: input, shape index: {}]
  %s3 = inlined_call_operand.vmem [shape: f32[9,128,128], index: 3, kind: input, shape index: {}]
  %s4 = inlined_call_operand.vmem [shape: f32[1,128], index: 4, kind: input, shape index: {}]
  %s5 = inlined_call_operand.vmem [shape: f32[9,128,128], index: 5, kind: input, shape index: {}]
  %s6 = inlined_call_operand.vmem [shape: f32[1,128], index: 6, kind: input, shape index: {}]
  %s7 = inlined_call_operand.vmem [shape: f32[4,128,10], index: 7, kind: input, shape index: {}]
  %s8 = inlined_call_operand.vmem [shape: f32[1,10], index: 8, kind: input, shape index: {}]
  %s9 = inlined_call_operand.hbm [shape: f32[2,1,10], index: 9, kind: output, shape index: {}]
  %s10 = sld [smem:[#allocation0]]
  $region90: #{net_forward.1} parent=0
    _
  %s12 = ssub.s32 1, %s10
  %s13 = scalar_select 0, %s12, %s10
  $region1: #{net_forward.1} parent=0
    #allocation5 [shape = 'u8[1024]{0}', space=vmem, size = 0x400, scoped, tag = 'output window, operand 0']
    #allocation6 [shape = 's32[2]{0}', space=sflag, size = 0x8, scoped, tag = 'scoped memory for net_forward.1']
    %14 = vsyncpa [#allocation6], 0
    %s15 = scalar_lea.sflag [#allocation6], 1
    %16 = vsyncpa %s15, 0
    loop: start=0, step=1, limit=4
    $region2: #{net_forward.1} parent=1 // loop_pre_header
      _
    $region3: #{net_forward.1} parent=1 // loop_header
      %s18 = sphi 0, %s22
      %p19 = scmp.ge.s32.totalorder %s18, 4
      %s28 = sphi 0, %s30
      %s31 = sphi 0, %s28
      %s32 = sphi 0, %s31
      %s48 = sphi 0, %s32
      %s52 = sphi 0, %s52
      %s54 = sphi 0, %s52
      %s55 = sphi 0, %s54
      %s69 = sphi 0, %s55
      %s73 = sphi 0, %s73
      %s75 = sphi 0, %s73
      %s76 = sphi 0, %s75
      %s90 = sphi 0, %s76
      %s94 = sphi 0, %s94
      %s96 = sphi 0, %s94
      %s97 = sphi 0, %s96
      %s111 = sphi 0, %s97
      %s115 = sphi 0, %s115
      %s117 = sphi 0, %s115
      %s118 = sphi 0, %s117
      %s132 = sphi 0, %s118
      %s136 = sphi 0, %s136
      %s138 = sphi 0, %s136
      %s139 = sphi 0, %s138
      %s153 = sphi 0, %s139
      %s157 = sphi 0, %s157
      %s159 = sphi 0, %s157
      %s160 = sphi 0, %s159
      %s174 = sphi 0, %s160
      %s178 = sphi 0, %s178
      %s180 = sphi 0, %s178
      %s181 = sphi 0, %s180
      %s195 = sphi 0, %s181
      %s199 = sphi 0, %s199
      %s201 = sphi 0, %s199
      %s202 = sphi 0, %s201
      %s216 = sphi 0, %s202
      %s222 = sphi 0, %s224
      %s225 = sphi 0, %s222
      %s226 = sphi 0, %s225
      %s242 = sphi 0, %s226
    $region4: #{net_forward.1} parent=1 // loop_header_branch
      %21 = sbr.rel (%p19) target = $region8
    $region5: #{net_forward.1} parent=1 // loop_body
      %s23 = ssub.s32 %s18, 1
      %s24 = ssub.s32 %s18, 2
      %s25 = sadd.s32 %s18, 1
      %s26 = ssub.s32 %s18, %s25
      %p27 = scmp.eq.s32.totalorder %s26, 0
      %s29 = sadd.s32 %s28, 1
      %s30 = scalar_select %p27, %s28, %s29
      %p33 = pneg %p27
      %p34 = scmp.eq.s32.totalorder %s18, 1
      %p35 = por %p33, %p34
      %p36 = scmp.ne.s32.totalorder %s28, %s31
      %p37 = scmp.eq.s32.totalorder %s18, 0
      %p38 = por %p36, %p37
      %p39 = scmp.ne.s32.totalorder %s28, %s31
      %p40 = scmp.eq.s32.totalorder %s23, 1
      %p41 = por %p39, %p40
      %p42 = scmp.ne.s32.totalorder %s31, %s32
      %p43 = scmp.eq.s32.totalorder %s23, 0
      %p44 = por %p42, %p43
      %p45 = scmp.ne.s32.totalorder %s31, %s32
      %p46 = scmp.eq.s32.totalorder %s24, 1
      %p47 = por %p45, %p46
      %p49 = scmp.ne.s32.totalorder %s32, %s48
      %p50 = scmp.eq.s32.totalorder %s24, 0
      %p51 = por %p49, %p50
      %s53 = sadd.s32 %s52, 1
      %p56 = scmp.eq.s32.totalorder %s18, 1
      %p57 = scmp.ne.s32.totalorder %s52, %s54
      %p58 = scmp.eq.s32.totalorder %s18, 0
      %p59 = por %p57, %p58
      %p60 = scmp.ne.s32.totalorder %s52, %s54
      %p61 = scmp.eq.s32.totalorder %s23, 1
      %p62 = por %p60, %p61
      %p63 = scmp.ne.s32.totalorder %s54, %s55
      %p64 = scmp.eq.s32.totalorder %s23, 0
      %p65 = por %p63, %p64
      %p66 = scmp.ne.s32.totalorder %s54, %s55
      %p67 = scmp.eq.s32.totalorder %s24, 1
      %p68 = por %p66, %p67
      %p70 = scmp.ne.s32.totalorder %s55, %s69
      %p71 = scmp.eq.s32.totalorder %s24, 0
      %p72 = por %p70, %p71
      %s74 = sadd.s32 %s73, 1
      %p77 = scmp.eq.s32.totalorder %s18, 1
      %p78 = scmp.ne.s32.totalorder %s73, %s75
      %p79 = scmp.eq.s32.totalorder %s18, 0
      %p80 = por %p78, %p79
      %p81 = scmp.ne.s32.totalorder %s73, %s75
      %p82 = scmp.eq.s32.totalorder %s23, 1
      %p83 = por %p81, %p82
      %p84 = scmp.ne.s32.totalorder %s75, %s76
      %p85 = scmp.eq.s32.totalorder %s23, 0
      %p86 = por %p84, %p85
      %p87 = scmp.ne.s32.totalorder %s75, %s76
      %p88 = scmp.eq.s32.totalorder %s24, 1
      %p89 = por %p87, %p88
      %p91 = scmp.ne.s32.totalorder %s76, %s90
      %p92 = scmp.eq.s32.totalorder %s24, 0
      %p93 = por %p91, %p92
      %s95 = sadd.s32 %s94, 1
      %p98 = scmp.eq.s32.totalorder %s18, 1
      %p99 = scmp.ne.s32.totalorder %s94, %s96
      %p100 = scmp.eq.s32.totalorder %s18, 0
      %p101 = por %p99, %p100
      %p102 = scmp.ne.s32.totalorder %s94, %s96
      %p103 = scmp.eq.s32.totalorder %s23, 1
      %p104 = por %p102, %p103
      %p105 = scmp.ne.s32.totalorder %s96, %s97
      %p106 = scmp.eq.s32.totalorder %s23, 0
      %p107 = por %p105, %p106
      %p108 = scmp.ne.s32.totalorder %s96, %s97
      %p109 = scmp.eq.s32.totalorder %s24, 1
      %p110 = por %p108, %p109
      %p112 = scmp.ne.s32.totalorder %s97, %s111
      %p113 = scmp.eq.s32.totalorder %s24, 0
      %p114 = por %p112, %p113
      %s116 = sadd.s32 %s115, 1
      %p119 = scmp.eq.s32.totalorder %s18, 1
      %p120 = scmp.ne.s32.totalorder %s115, %s117
      %p121 = scmp.eq.s32.totalorder %s18, 0
      %p122 = por %p120, %p121
      %p123 = scmp.ne.s32.totalorder %s115, %s117
      %p124 = scmp.eq.s32.totalorder %s23, 1
      %p125 = por %p123, %p124
      %p126 = scmp.ne.s32.totalorder %s117, %s118
      %p127 = scmp.eq.s32.totalorder %s23, 0
      %p128 = por %p126, %p127
      %p129 = scmp.ne.s32.totalorder %s117, %s118
      %p130 = scmp.eq.s32.totalorder %s24, 1
      %p131 = por %p129, %p130
      %p133 = scmp.ne.s32.totalorder %s118, %s132
      %p134 = scmp.eq.s32.totalorder %s24, 0
      %p135 = por %p133, %p134
      %s137 = sadd.s32 %s136, 1
      %p140 = scmp.eq.s32.totalorder %s18, 1
      %p141 = scmp.ne.s32.totalorder %s136, %s138
      %p142 = scmp.eq.s32.totalorder %s18, 0
      %p143 = por %p141, %p142
      %p144 = scmp.ne.s32.totalorder %s136, %s138
      %p145 = scmp.eq.s32.totalorder %s23, 1
      %p146 = por %p144, %p145
      %p147 = scmp.ne.s32.totalorder %s138, %s139
      %p148 = scmp.eq.s32.totalorder %s23, 0
      %p149 = por %p147, %p148
      %p150 = scmp.ne.s32.totalorder %s138, %s139
      %p151 = scmp.eq.s32.totalorder %s24, 1
      %p152 = por %p150, %p151
      %p154 = scmp.ne.s32.totalorder %s139, %s153
      %p155 = scmp.eq.s32.totalorder %s24, 0
      %p156 = por %p154, %p155
      %s158 = sadd.s32 %s157, 1
      %p161 = scmp.eq.s32.totalorder %s18, 1
      %p162 = scmp.ne.s32.totalorder %s157, %s159
      %p163 = scmp.eq.s32.totalorder %s18, 0
      %p164 = por %p162, %p163
      %p165 = scmp.ne.s32.totalorder %s157, %s159
      %p166 = scmp.eq.s32.totalorder %s23, 1
      %p167 = por %p165, %p166
      %p168 = scmp.ne.s32.totalorder %s159, %s160
      %p169 = scmp.eq.s32.totalorder %s23, 0
      %p170 = por %p168, %p169
      %p171 = scmp.ne.s32.totalorder %s159, %s160
      %p172 = scmp.eq.s32.totalorder %s24, 1
      %p173 = por %p171, %p172
      %p175 = scmp.ne.s32.totalorder %s160, %s174
      %p176 = scmp.eq.s32.totalorder %s24, 0
      %p177 = por %p175, %p176
      %s179 = sadd.s32 %s178, 1
      %p182 = scmp.eq.s32.totalorder %s18, 1
      %p183 = scmp.ne.s32.totalorder %s178, %s180
      %p184 = scmp.eq.s32.totalorder %s18, 0
      %p185 = por %p183, %p184
      %p186 = scmp.ne.s32.totalorder %s178, %s180
      %p187 = scmp.eq.s32.totalorder %s23, 1
      %p188 = por %p186, %p187
      %p189 = scmp.ne.s32.totalorder %s180, %s181
      %p190 = scmp.eq.s32.totalorder %s23, 0
      %p191 = por %p189, %p190
      %p192 = scmp.ne.s32.totalorder %s180, %s181
      %p193 = scmp.eq.s32.totalorder %s24, 1
      %p194 = por %p192, %p193
      %p196 = scmp.ne.s32.totalorder %s181, %s195
      %p197 = scmp.eq.s32.totalorder %s24, 0
      %p198 = por %p196, %p197
      %s200 = sadd.s32 %s199, 1
      %p203 = scmp.eq.s32.totalorder %s18, 1
      %p204 = scmp.ne.s32.totalorder %s199, %s201
      %p205 = scmp.eq.s32.totalorder %s18, 0
      %p206 = por %p204, %p205
      %p207 = scmp.ne.s32.totalorder %s199, %s201
      %p208 = scmp.eq.s32.totalorder %s23, 1
      %p209 = por %p207, %p208
      %p210 = scmp.ne.s32.totalorder %s201, %s202
      %p211 = scmp.eq.s32.totalorder %s23, 0
      %p212 = por %p210, %p211
      %p213 = scmp.ne.s32.totalorder %s201, %s202
      %p214 = scmp.eq.s32.totalorder %s24, 1
      %p215 = por %p213, %p214
      %p217 = scmp.ne.s32.totalorder %s202, %s216
      %p218 = scmp.eq.s32.totalorder %s24, 0
      %p219 = por %p217, %p218
      %s220 = ssub.s32 %s18, %s25
      %p221 = scmp.eq.s32.totalorder %s220, 0
      %s223 = sadd.s32 %s222, 1
      %s224 = scalar_select %p221, %s222, %s223
      %p227 = pneg %p221
      %p228 = scmp.eq.s32.totalorder %s18, 1
      %p229 = por %p227, %p228
      %p230 = scmp.ne.s32.totalorder %s222, %s225
      %p231 = scmp.eq.s32.totalorder %s18, 0
      %p232 = por %p230, %p231
      %p233 = scmp.ne.s32.totalorder %s222, %s225
      %p234 = scmp.eq.s32.totalorder %s23, 1
      %p235 = por %p233, %p234
      %p236 = scmp.ne.s32.totalorder %s225, %s226
      %p237 = scmp.eq.s32.totalorder %s23, 0
      %p238 = por %p236, %p237
      %p239 = scmp.ne.s32.totalorder %s225, %s226
      %p240 = scmp.eq.s32.totalorder %s24, 1
      %p241 = por %p239, %p240
      %p243 = scmp.ne.s32.totalorder %s226, %s242
      %p244 = scmp.eq.s32.totalorder %s24, 0
      %p245 = por %p243, %p244
      %p246 = scmp.le.s32.totalorder 1, %s18
      %p247 = scmp.lt.s32.totalorder %s18, 3
      %p248 = pnand %p246, %p247
      %p249 = pneg %p248
      // Predicated region
      $region9: #{net_forward.1} parent=5 // pred_check
        _
      $region10: #{net_forward.1} parent=5 // pred_check_branch
        %251 = sbr.rel (%p248) target = $region12
      $region11: #{net_forward.1} parent=5 // pred_region
        %s252 = ssub.s32 %s18, 1
        // Predicated region
        $region13: #{net_forward.1} parent=11 // pred_check
          %p253 = pneg %p65
        $region14: #{net_forward.1} parent=11 // pred_check_branch
          %255 = sbr.rel (%p253) target = $region16
        $region15: #{net_forward.1} parent=11 // pred_region
          _
        $region16: #{net_forward.1} parent=11 // pred_fallthru
          _
        // Predicated region
        $region17: #{net_forward.1} parent=11 // pred_check
          %p256 = pneg %p86
        $region18: #{net_forward.1} parent=11 // pred_check_branch
          %258 = sbr.rel (%p256) target = $region20
        $region19: #{net_forward.1} parent=11 // pred_region
          _
        $region20: #{net_forward.1} parent=11 // pred_fallthru
          _
        // Predicated region
        $region21: #{net_forward.1} parent=11 // pred_check
          %p259 = pneg %p107
        $region22: #{net_forward.1} parent=11 // pred_check_branch
          %261 = sbr.rel (%p259) target = $region24
        $region23: #{net_forward.1} parent=11 // pred_region
          _
        $region24: #{net_forward.1} parent=11 // pred_fallthru
          _
        // Predicated region
        $region25: #{net_forward.1} parent=11 // pred_check
          %p262 = pneg %p128
        $region26: #{net_forward.1} parent=11 // pred_check_branch
          %264 = sbr.rel (%p262) target = $region28
        $region27: #{net_forward.1} parent=11 // pred_region
          _
        $region28: #{net_forward.1} parent=11 // pred_fallthru
          _
        // Predicated region
        $region29: #{net_forward.1} parent=11 // pred_check
          %p265 = pneg %p149
        $region30: #{net_forward.1} parent=11 // pred_check_branch
          %267 = sbr.rel (%p265) target = $region32
        $region31: #{net_forward.1} parent=11 // pred_region
          _
        $region32: #{net_forward.1} parent=11 // pred_fallthru
          _
        // Predicated region
        $region33: #{net_forward.1} parent=11 // pred_check
          %p268 = pneg %p170
        $region34: #{net_forward.1} parent=11 // pred_check_branch
          %270 = sbr.rel (%p268) target = $region36
        $region35: #{net_forward.1} parent=11 // pred_region
          _
        $region36: #{net_forward.1} parent=11 // pred_fallthru
          _
        // Predicated region
        $region37: #{net_forward.1} parent=11 // pred_check
          %p271 = pneg %p191
        $region38: #{net_forward.1} parent=11 // pred_check_branch
          %273 = sbr.rel (%p271) target = $region40
        $region39: #{net_forward.1} parent=11 // pred_region
          _
        $region40: #{net_forward.1} parent=11 // pred_fallthru
          _
        // Predicated region
        $region41: #{net_forward.1} parent=11 // pred_check
          %p274 = pneg %p212
        $region42: #{net_forward.1} parent=11 // pred_check_branch
          %276 = sbr.rel (%p274) target = $region44
        $region43: #{net_forward.1} parent=11 // pred_region
          _
        $region44: #{net_forward.1} parent=11 // pred_fallthru
          _
      $region12: #{net_forward.1} parent=5 // pred_fallthru
        _
      %p277 = scmp.lt.s32.totalorder %s18, 2
      // Predicated region
      $region45: #{net_forward.1} parent=5 // pred_check
        %p278 = pneg %p277
      $region46: #{net_forward.1} parent=5 // pred_check_branch
        %280 = sbr.rel (%p278) target = $region48
      $region47: #{net_forward.1} parent=5 // pred_region
        // Predicated region
        $region49: #{net_forward.1} parent=47 // pred_check
          %p281 = pneg %p38
        $region50: #{net_forward.1} parent=47 // pred_check_branch
          %283 = sbr.rel (%p281) target = $region52
        $region51: #{net_forward.1} parent=47 // pred_region
          %p284 = scmp.lt.s32.totalorder %s18, 1
          %s285 = scalar_select %p284, %s18, 1
          %s286 = smul.addr %s285, 128
          %s287 = smul.addr %s286, 8
          %s288 = scalar_lea.vmem %s0, %s287
        $region52: #{net_forward.1} parent=47 // pred_fallthru
          _
      $region48: #{net_forward.1} parent=5 // pred_fallthru
        _
      %p289 = scmp.le.s32.totalorder 1, %s18
      %p290 = scmp.lt.s32.totalorder %s18, 3
      %p291 = pnand %p289, %p290
      %p292 = pneg %p291
      // Predicated region
      $region53: #{net_forward.1} parent=5 // pred_check
        _
      $region54: #{net_forward.1} parent=5 // pred_check_branch
        %294 = sbr.rel (%p291) target = $region56
      $region55: #{net_forward.1} parent=5 // pred_region
        %s295 = ssub.s32 %s18, 1
        %p296 = scmp.lt.s32.totalorder %s23, 1
        %s297 = scalar_select %p296, %s23, 1
        %s298 = smul.addr %s297, 128
        %s299 = smul.addr %s298, 8
        %s300 = scalar_lea.vmem %s0, %s299
        %p301 = pneg %p44
        %p302 = pneg %p41
        %p303 = pneg %p65
        %p304 = pneg %p62
        %p305 = pneg %p86
        %p306 = pneg %p83
        %p307 = pneg %p107
        %p308 = pneg %p104
        %p309 = pneg %p128
        %p310 = pneg %p125
        %p311 = pneg %p149
        %p312 = pneg %p146
        %p313 = pneg %p170
        %p314 = pneg %p167
        %p315 = pneg %p191
        %p316 = pneg %p188
        %p317 = pneg %p212
        %p318 = pneg %p209
        %p319 = pneg %p238
        %p320 = pneg %p235
        %s321 = sand.u32 %s225, 1
        %s322 = scalar_lea.sflag [#allocation6], %s321
        %s323 = sand.u32 %s225, 1
        %s324 = scalar_lea.vmem [#allocation5], %s323
        %p325 = scmp.lt.s32.totalorder %s23, 1
        %s326 = scalar_select %p325, %s23, 1
        %s327 = smul.addr %s326, 128
        %s328 = smul.addr %s327, 8
        %s329 = scalar_lea.vmem %s0, %s328
        %v330 = vlaneseq
        %v331 = vshrl.u32 %v330, 7
        %v332 = vadd.s32 %v331, 8
        %v333 = vlaneseq
        %v334 = vand.u32 %v333, 127
        %v335 = vmul.u32 %v331, 2
        %v336 = vmul.u32 %v332, 2
        %vm337 = vcmp.eq.s32.totalorder %v334, %v335
        %vm338 = vcmp.eq.s32.totalorder %v334, %v336
        %v339 = vsel %vm337, 1.0, 0.0
        %v340 = vsel %vm338, 1.0, 0.0
        %v341 = vadd.s32 %v335, 1
        %v342 = vadd.s32 %v336, 1
        %vm343 = vcmp.eq.s32.totalorder %v334, %v341
        %vm344 = vcmp.eq.s32.totalorder %v334, %v342
        %v345 = vsel %vm343, 1.0, 0.0
        %v346 = vsel %vm344, 1.0, 0.0
        %v347 = vld [vmem:[%s2] sm:$0x1]
        loop: start=0, step=1, limit=15
        $region57: #{net_forward.1} parent=55 // loop_pre_header
          _
        $region58: #{net_forward.1} parent=55 // loop_header
          %s349 = sphi 0, %s353
          %p350 = scmp.ge.s32.totalorder %s349, 15
        $region59: #{net_forward.1} parent=55 // loop_header_branch
          %352 = sbr.rel (%p350) target = $region63
        $region60: #{net_forward.1} parent=55 // loop_body
          %s354 = smul.u32 %s349, 2
          %s355 = smul.u32 %s354, 32
          %s356 = scalar_lea.vmem %s329, %s355
          %v357 = vld [vmem:[%s356] sm:$0xff]
          %v358 = vld [vmem:[%s356 + $0x8] sm:$0xff]
          %v359 = vld [vmem:[%s356 + $0x10] sm:$0xff]
          %v360 = vld [vmem:[%s356 + $0x18] sm:$0x3f]
          %v361 = vld [vmem:[%s1] sm:$0x7]
          %v362 = vld [vmem:[%s356 + $0x1] sm:$0xff]
          %v363 = vld [vmem:[%s356 + $0x9] sm:$0xff]
          %v364 = vld [vmem:[%s356 + $0x11] sm:$0xff]
          %v365 = vld [vmem:[%s356 + $0x19] sm:$0x3f]
          %s366 = scalar_lea.vmem %s1, 4
          %v367 = vld [vmem:[%s366] sm:$0x7]
          %vm368 = vcmask 23552
          %v370 = vsel %vm368, %v362, 0
          %v373 = vsel %vm368, %v363, 0
          %v376 = vsel %vm368, %v364, 0
          %v379 = vsel %vm368, %v365, 0
          %vm381 = vcmask 1042432
          %v383 = vsel %vm381, %v367, 0
          %385 = vmatpush.msra.mxu0 0.0
          %386 = vmatpush.msra.mxu0 0.0
          %387 = vmatpush.msra.mxu0 0.0
          %388 = vmatpush.msra.mxu0 0.0
          %389 = vmatpush.msra.mxu0 0.0
          %390 = vmatpush.msra.mxu0 0.0
          %391 = vmatpush.msra.mxu0 0.0
          %392 = vmatpush.msra.mxu0 0.0
          %393 = vmatpush.msra.mxu0 0.0
          %394 = vmatpush.msra.mxu0 0.0
          %395 = vmatpush.msra.mxu0 0.0
          %396 = vmatpush.msra.mxu0 0.0
          %397 = vmatpush.msra.mxu0 0.0
          %398 = vmatpush.msra.mxu0 0.0
          %399 = vmatpush.msra.mxu0 0.0
          %400 = vmatpush.msra.mxu0 %v383
          %401 = vmatmul.f32.gmra.mxu0 %v370
          %v402 = vpop.f32.mrf.mxu0
          %v403 = vadd.f32 0.0, %v402
          %404 = vmatmul.f32.gmra.mxu0 %v373
          %v405 = vpop.f32.mrf.mxu0
          %v406 = vadd.f32 0.0, %v405
          %407 = vmatmul.f32.gmra.mxu0 %v376
          %v408 = vpop.f32.mrf.mxu0
          %v409 = vadd.f32 0.0, %v408
          %410 = vmatmul.f32.gmra.mxu0 %v379
          %v411 = vpop.f32.mrf.mxu0
          %v412 = vadd.f32 0.0, %v411
          %413 = vdwg.mxu0
          %v415 = vsel %vm368, %v357, 0
          %v418 = vsel %vm368, %v358, 0
          %v421 = vsel %vm368, %v359, 0
          %v424 = vsel %vm368, %v360, 0
          %v427 = vsel %vm381, %v361, 0
          %429 = vmatpush.msra.mxu0 0.0
          %430 = vmatpush.msra.mxu0 0.0
          %431 = vmatpush.msra.mxu0 0.0
          %432 = vmatpush.msra.mxu0 0.0
          %433 = vmatpush.msra.mxu0 0.0
          %434 = vmatpush.msra.mxu0 0.0
          %435 = vmatpush.msra.mxu0 0.0
          %436 = vmatpush.msra.mxu0 0.0
          %437 = vmatpush.msra.mxu0 0.0
          %438 = vmatpush.msra.mxu0 0.0
          %439 = vmatpush.msra.mxu0 0.0
          %440 = vmatpush.msra.mxu0 0.0
          %441 = vmatpush.msra.mxu0 0.0
          %442 = vmatpush.msra.mxu0 0.0
          %443 = vmatpush.msra.mxu0 0.0
          %444 = vmatpush.msra.mxu0 %v427
          %445 = vmatmul.f32.gmra.mxu0 %v415
          %v446 = vpop.f32.mrf.mxu0
          %v447 = vadd.f32 %v403, %v446
          %448 = vmatmul.f32.gmra.mxu0 %v418
          %v449 = vpop.f32.mrf.mxu0
          %v450 = vadd.f32 %v406, %v449
          %451 = vmatmul.f32.gmra.mxu0 %v421
          %v452 = vpop.f32.mrf.mxu0
          %v453 = vadd.f32 %v409, %v452
          %454 = vmatmul.f32.gmra.mxu0 %v424
          %v455 = vpop.f32.mrf.mxu0
          %v456 = vadd.f32 %v412, %v455
          %457 = vdwg.mxu0
          %v458 = vld [vmem:[%s356 + $0x2] sm:$0xff]
          %v459 = vld [vmem:[%s356 + $0xa] sm:$0xff]
          %v460 = vld [vmem:[%s356 + $0x12] sm:$0xff]
          %v461 = vld [vmem:[%s356 + $0x1a] sm:$0x3f]
          %s462 = scalar_lea.vmem %s1, 8
          %v463 = vld [vmem:[%s462] sm:$0x7]
          %v465 = vsel %vm368, %v458, 0
          %v468 = vsel %vm368, %v459, 0
          %v471 = vsel %vm368, %v460, 0
          %v474 = vsel %vm368, %v461, 0
          %v477 = vsel %vm381, %v463, 0
          %479 = vmatpush.msra.mxu0 0.0
          %480 = vmatpush.msra.mxu0 0.0
          %481 = vmatpush.msra.mxu0 0.0
          %482 = vmatpush.msra.mxu0 0.0
          %483 = vmatpush.msra.mxu0 0.0
          %484 = vmatpush.msra.mxu0 0.0
          %485 = vmatpush.msra.mxu0 0.0
          %486 = vmatpush.msra.mxu0 0.0
          %487 = vmatpush.msra.mxu0 0.0
          %488 = vmatpush.msra.mxu0 0.0
          %489 = vmatpush.msra.mxu0 0.0
          %490 = vmatpush.msra.mxu0 0.0
          %491 = vmatpush.msra.mxu0 0.0
          %492 = vmatpush.msra.mxu0 0.0
          %493 = vmatpush.msra.mxu0 0.0
          %494 = vmatpush.msra.mxu0 %v477
          %495 = vmatmul.f32.gmra.mxu0 %v465
          %v496 = vpop.f32.mrf.mxu0
          %v497 = vadd.f32 0.0, %v496
          %498 = vmatmul.f32.gmra.mxu0 %v468
          %v499 = vpop.f32.mrf.mxu0
          %v500 = vadd.f32 0.0, %v499
          %501 = vmatmul.f32.gmra.mxu0 %v471
          %v502 = vpop.f32.mrf.mxu0
          %v503 = vadd.f32 0.0, %v502
          %504 = vmatmul.f32.gmra.mxu0 %v474
          %v505 = vpop.f32.mrf.mxu0
          %v506 = vadd.f32 0.0, %v505
          %507 = vdwg.mxu0
          %v508 = vadd.f32 %v447, %v497
          %v509 = vadd.f32 %v450, %v500
          %v510 = vadd.f32 %v453, %v503
          %v511 = vadd.f32 %v456, %v506
          %s512 = sadd.s32 %s354, 1
          %s513 = smul.u32 %s512, 32
          %s514 = scalar_lea.vmem %s329, %s513
          %v515 = vld [vmem:[%s514] sm:$0xff]
          %v516 = vld [vmem:[%s514 + $0x8] sm:$0xff]
          %v517 = vld [vmem:[%s514 + $0x10] sm:$0xff]
          %v518 = vld [vmem:[%s514 + $0x18] sm:$0x3f]
          %s519 = scalar_lea.vmem %s1, 12
          %v520 = vld [vmem:[%s519] sm:$0x7]
          %v522 = vsel %vm368, %v515, 0
          %v525 = vsel %vm368, %v516, 0
          %v528 = vsel %vm368, %v517, 0
          %v531 = vsel %vm368, %v518, 0
          %v534 = vsel %vm381, %v520, 0
          %536 = vmatpush.msra.mxu0 0.0
          %537 = vmatpush.msra.mxu0 0.0
          %538 = vmatpush.msra.mxu0 0.0
          %539 = vmatpush.msra.mxu0 0.0
          %540 = vmatpush.msra.mxu0 0.0
          %541 = vmatpush.msra.mxu0 0.0
          %542 = vmatpush.msra.mxu0 0.0
          %543 = vmatpush.msra.mxu0 0.0
          %544 = vmatpush.msra.mxu0 0.0
          %545 = vmatpush.msra.mxu0 0.0
          %546 = vmatpush.msra.mxu0 0.0
          %547 = vmatpush.msra.mxu0 0.0
          %548 = vmatpush.msra.mxu0 0.0
          %549 = vmatpush.msra.mxu0 0.0
          %550 = vmatpush.msra.mxu0 0.0
          %551 = vmatpush.msra.mxu0 %v534
          %552 = vmatmul.f32.gmra.mxu0 %v522
          %v553 = vpop.f32.mrf.mxu0
          %v554 = vadd.f32 0.0, %v553
          %555 = vmatmul.f32.gmra.mxu0 %v525
          %v556 = vpop.f32.mrf.mxu0
          %v557 = vadd.f32 0.0, %v556
          %558 = vmatmul.f32.gmra.mxu0 %v528
          %v559 = vpop.f32.mrf.mxu0
          %v560 = vadd.f32 0.0, %v559
          %561 = vmatmul.f32.gmra.mxu0 %v531
          %v562 = vpop.f32.mrf.mxu0
          %v563 = vadd.f32 0.0, %v562
          %564 = vdwg.mxu0
          %v565 = vadd.f32 %v508, %v554
          %v566 = vadd.f32 %v509, %v557
          %v567 = vadd.f32 %v510, %v560
          %v568 = vadd.f32 %v511, %v563
          %v569 = vld [vmem:[%s514 + $0x1] sm:$0xff]
          %v570 = vld [vmem:[%s514 + $0x9] sm:$0xff]
          %v571 = vld [vmem:[%s514 + $0x11] sm:$0xff]
          %v572 = vld [vmem:[%s514 + $0x19] sm:$0x3f]
          %s573 = scalar_lea.vmem %s1, 16
          %v574 = vld [vmem:[%s573] sm:$0x7]
          %v576 = vsel %vm368, %v569, 0
          %v579 = vsel %vm368, %v570, 0
          %v582 = vsel %vm368, %v571, 0
          %v585 = vsel %vm368, %v572, 0
          %v588 = vsel %vm381, %v574, 0
          %590 = vmatpush.msra.mxu0 0.0
          %591 = vmatpush.msra.mxu0 0.0
          %592 = vmatpush.msra.mxu0 0.0
          %593 = vmatpush.msra.mxu0 0.0
          %594 = vmatpush.msra.mxu0 0.0
          %595 = vmatpush.msra.mxu0 0.0
          %596 = vmatpush.msra.mxu0 0.0
          %597 = vmatpush.msra.mxu0 0.0
          %598 = vmatpush.msra.mxu0 0.0
          %599 = vmatpush.msra.mxu0 0.0
          %600 = vmatpush.msra.mxu0 0.0
          %601 = vmatpush.msra.mxu0 0.0
          %602 = vmatpush.msra.mxu0 0.0
          %603 = vmatpush.msra.mxu0 0.0
          %604 = vmatpush.msra.mxu0 0.0
          %605 = vmatpush.msra.mxu0 %v588
          %606 = vmatmul.f32.gmra.mxu0 %v576
          %v607 = vpop.f32.mrf.mxu0
          %v608 = vadd.f32 0.0, %v607
          %609 = vmatmul.f32.gmra.mxu0 %v579
          %v610 = vpop.f32.mrf.mxu0
          %v611 = vadd.f32 0.0, %v610
          %612 = vmatmul.f32.gmra.mxu0 %v582
          %v613 = vpop.f32.mrf.mxu0
          %v614 = vadd.f32 0.0, %v613
          %615 = vmatmul.f32.gmra.mxu0 %v585
          %v616 = vpop.f32.mrf.mxu0
          %v617 = vadd.f32 0.0, %v616
          %618 = vdwg.mxu0
          %v619 = vadd.f32 %v565, %v608
          %v620 = vadd.f32 %v566, %v611
          %v621 = vadd.f32 %v567, %v614
          %v622 = vadd.f32 %v568, %v617
          %v623 = vld [vmem:[%s514 + $0x2] sm:$0xff]
          %v624 = vld [vmem:[%s514 + $0xa] sm:$0xff]
          %v625 = vld [vmem:[%s514 + $0x12] sm:$0xff]
          %v626 = vld [vmem:[%s514 + $0x1a] sm:$0x3f]
          %s627 = scalar_lea.vmem %s1, 20
          %v628 = vld [vmem:[%s627] sm:$0x7]
          %v630 = vsel %vm368, %v623, 0
          %v633 = vsel %vm368, %v624, 0
          %v636 = vsel %vm368, %v625, 0
          %v639 = vsel %vm368, %v626, 0
          %v642 = vsel %vm381, %v628, 0
          %644 = vmatpush.msra.mxu0 0.0
          %645 = vmatpush.msra.mxu0 0.0
          %646 = vmatpush.msra.mxu0 0.0
          %647 = vmatpush.msra.mxu0 0.0
          %648 = vmatpush.msra.mxu0 0.0
          %649 = vmatpush.msra.mxu0 0.0
          %650 = vmatpush.msra.mxu0 0.0
          %651 = vmatpush.msra.mxu0 0.0
          %652 = vmatpush.msra.mxu0 0.0
          %653 = vmatpush.msra.mxu0 0.0
          %654 = vmatpush.msra.mxu0 0.0
          %655 = vmatpush.msra.mxu0 0.0
          %656 = vmatpush.msra.mxu0 0.0
          %657 = vmatpush.msra.mxu0 0.0
          %658 = vmatpush.msra.mxu0 0.0
          %659 = vmatpush.msra.mxu0 %v642
          %660 = vmatmul.f32.gmra.mxu0 %v630
          %v661 = vpop.f32.mrf.mxu0
          %v662 = vadd.f32 0.0, %v661
          %663 = vmatmul.f32.gmra.mxu0 %v633
          %v664 = vpop.f32.mrf.mxu0
          %v665 = vadd.f32 0.0, %v664
          %666 = vmatmul.f32.gmra.mxu0 %v636
          %v667 = vpop.f32.mrf.mxu0
          %v668 = vadd.f32 0.0, %v667
          %669 = vmatmul.f32.gmra.mxu0 %v639
          %v670 = vpop.f32.mrf.mxu0
          %v671 = vadd.f32 0.0, %v670
          %672 = vdwg.mxu0
          %v673 = vadd.f32 %v619, %v662
          %v674 = vadd.f32 %v620, %v665
          %v675 = vadd.f32 %v621, %v668
          %v676 = vadd.f32 %v622, %v671
          %s677 = sadd.s32 %s354, 2
          %s678 = smul.u32 %s677, 32
          %s679 = scalar_lea.vmem %s329, %s678
          %v680 = vld [vmem:[%s679] sm:$0xff]
          %v681 = vld [vmem:[%s679 + $0x8] sm:$0xff]
          %v682 = vld [vmem:[%s679 + $0x10] sm:$0xff]
          %v683 = vld [vmem:[%s679 + $0x18] sm:$0x3f]
          %s684 = scalar_lea.vmem %s1, 24
          %v685 = vld [vmem:[%s684] sm:$0x7]
          %v687 = vsel %vm368, %v680, 0
          %v690 = vsel %vm368, %v681, 0
          %v693 = vsel %vm368, %v682, 0
          %v696 = vsel %vm368, %v683, 0
          %v699 = vsel %vm381, %v685, 0
          %701 = vmatpush.msra.mxu0 0.0
          %702 = vmatpush.msra.mxu0 0.0
          %703 = vmatpush.msra.mxu0 0.0
          %704 = vmatpush.msra.mxu0 0.0
          %705 = vmatpush.msra.mxu0 0.0
          %706 = vmatpush.msra.mxu0 0.0
          %707 = vmatpush.msra.mxu0 0.0
          %708 = vmatpush.msra.mxu0 0.0
          %709 = vmatpush.msra.mxu0 0.0
          %710 = vmatpush.msra.mxu0 0.0
          %711 = vmatpush.msra.mxu0 0.0
          %712 = vmatpush.msra.mxu0 0.0
          %713 = vmatpush.msra.mxu0 0.0
          %714 = vmatpush.msra.mxu0 0.0
          %715 = vmatpush.msra.mxu0 0.0
          %716 = vmatpush.msra.mxu0 %v699
          %717 = vmatmul.f32.gmra.mxu0 %v687
          %v718 = vpop.f32.mrf.mxu0
          %v719 = vadd.f32 0.0, %v718
          %720 = vmatmul.f32.gmra.mxu0 %v690
          %v721 = vpop.f32.mrf.mxu0
          %v722 = vadd.f32 0.0, %v721
          %723 = vmatmul.f32.gmra.mxu0 %v693
          %v724 = vpop.f32.mrf.mxu0
          %v725 = vadd.f32 0.0, %v724
          %726 = vmatmul.f32.gmra.mxu0 %v696
          %v727 = vpop.f32.mrf.mxu0
          %v728 = vadd.f32 0.0, %v727
          %729 = vdwg.mxu0
          %v730 = vadd.f32 %v673, %v719
          %v731 = vadd.f32 %v674, %v722
          %v732 = vadd.f32 %v675, %v725
          %v733 = vadd.f32 %v676, %v728
          %v734 = vld [vmem:[%s679 + $0x1] sm:$0xff]
          %v735 = vld [vmem:[%s679 + $0x9] sm:$0xff]
          %v736 = vld [vmem:[%s679 + $0x11] sm:$0xff]
          %v737 = vld [vmem:[%s679 + $0x19] sm:$0x3f]
          %s738 = scalar_lea.vmem %s1, 28
          %v739 = vld [vmem:[%s738] sm:$0x7]
          %v741 = vsel %vm368, %v734, 0
          %v744 = vsel %vm368, %v735, 0
          %v747 = vsel %vm368, %v736, 0
          %v750 = vsel %vm368, %v737, 0
          %v753 = vsel %vm381, %v739, 0
          %755 = vmatpush.msra.mxu0 0.0
          %756 = vmatpush.msra.mxu0 0.0
          %757 = vmatpush.msra.mxu0 0.0
          %758 = vmatpush.msra.mxu0 0.0
          %759 = vmatpush.msra.mxu0 0.0
          %760 = vmatpush.msra.mxu0 0.0
          %761 = vmatpush.msra.mxu0 0.0
          %762 = vmatpush.msra.mxu0 0.0
          %763 = vmatpush.msra.mxu0 0.0
          %764 = vmatpush.msra.mxu0 0.0
          %765 = vmatpush.msra.mxu0 0.0
          %766 = vmatpush.msra.mxu0 0.0
          %767 = vmatpush.msra.mxu0 0.0
          %768 = vmatpush.msra.mxu0 0.0
          %769 = vmatpush.msra.mxu0 0.0
          %770 = vmatpush.msra.mxu0 %v753
          %771 = vmatmul.f32.gmra.mxu0 %v741
          %v772 = vpop.f32.mrf.mxu0
          %v773 = vadd.f32 0.0, %v772
          %774 = vmatmul.f32.gmra.mxu0 %v744
          %v775 = vpop.f32.mrf.mxu0
          %v776 = vadd.f32 0.0, %v775
          %777 = vmatmul.f32.gmra.mxu0 %v747
          %v778 = vpop.f32.mrf.mxu0
          %v779 = vadd.f32 0.0, %v778
          %780 = vmatmul.f32.gmra.mxu0 %v750
          %v781 = vpop.f32.mrf.mxu0
          %v782 = vadd.f32 0.0, %v781
          %783 = vdwg.mxu0
          %v784 = vadd.f32 %v730, %v773
          %v785 = vadd.f32 %v731, %v776
          %v786 = vadd.f32 %v732, %v779
          %v787 = vadd.f32 %v733, %v782
          %v788 = vld [vmem:[%s679 + $0x2] sm:$0xff]
          %v789 = vld [vmem:[%s679 + $0xa] sm:$0xff]
          %v790 = vld [vmem:[%s679 + $0x12] sm:$0xff]
          %v791 = vld [vmem:[%s679 + $0x1a] sm:$0x3f]
          %s792 = scalar_lea.vmem %s1, 32
          %v793 = vld [vmem:[%s792] sm:$0x7]
          %v795 = vsel %vm368, %v788, 0
          %v798 = vsel %vm368, %v789, 0
          %v801 = vsel %vm368, %v790, 0
          %v804 = vsel %vm368, %v791, 0
          %v807 = vsel %vm381, %v793, 0
          %809 = vmatpush.msra.mxu0 0.0
          %810 = vmatpush.msra.mxu0 0.0
          %811 = vmatpush.msra.mxu0 0.0
          %812 = vmatpush.msra.mxu0 0.0
          %813 = vmatpush.msra.mxu0 0.0
          %814 = vmatpush.msra.mxu0 0.0
          %815 = vmatpush.msra.mxu0 0.0
          %816 = vmatpush.msra.mxu0 0.0
          %817 = vmatpush.msra.mxu0 0.0
          %818 = vmatpush.msra.mxu0 0.0
          %819 = vmatpush.msra.mxu0 0.0
          %820 = vmatpush.msra.mxu0 0.0
          %821 = vmatpush.msra.mxu0 0.0
          %822 = vmatpush.msra.mxu0 0.0
          %823 = vmatpush.msra.mxu0 0.0
          %824 = vmatpush.msra.mxu0 %v807
          %825 = vmatmul.f32.gmra.mxu0 %v795
          %v826 = vpop.f32.mrf.mxu0
          %v827 = vadd.f32 0.0, %v826
          %828 = vmatmul.f32.gmra.mxu0 %v798
          %v829 = vpop.f32.mrf.mxu0
          %v830 = vadd.f32 0.0, %v829
          %831 = vmatmul.f32.gmra.mxu0 %v801
          %v832 = vpop.f32.mrf.mxu0
          %v833 = vadd.f32 0.0, %v832
          %834 = vmatmul.f32.gmra.mxu0 %v804
          %v835 = vpop.f32.mrf.mxu0
          %v836 = vadd.f32 0.0, %v835
          %837 = vdwg.mxu0
          %v838 = vadd.f32 %v784, %v827
          %v839 = vadd.f32 %v785, %v830
          %v840 = vadd.f32 %v786, %v833
          %v841 = vadd.f32 %v787, %v836
          %v843 = vperm.slane %v347, 0
          %v845 = vadd.f32 %v838, %v843
          %v846 = vadd.f32 %v839, %v843
          %v847 = vadd.f32 %v840, %v843
          %v848 = vadd.f32 %v841, %v843
          %v849 = vmax.f32 %v845, 0.0
          %v850 = vmax.f32 %v846, 0.0
          %v851 = vmax.f32 %v847, 0.0
          %v852 = vmax.f32 %v848, 0.0
          %853 = vmatpush.msra.mxu0 0.0
          %854 = vmatpush.msra.mxu0 0.0
          %855 = vmatpush.msra.mxu0 0.0
          %856 = vmatpush.msra.mxu0 0.0
          %857 = vmatpush.msra.mxu0 0.0
          %858 = vmatpush.msra.mxu0 0.0
          %859 = vmatpush.msra.mxu0 0.0
          %860 = vmatpush.msra.mxu0 0.0
          %861 = vmatpush.msra.mxu0 0.0
          %862 = vmatpush.msra.mxu0 0.0
          %863 = vmatpush.msra.mxu0 0.0
          %864 = vmatpush.msra.mxu0 0.0
          %865 = vmatpush.msra.mxu0 0.0
          %866 = vmatpush.msra.mxu0 0.0
          %867 = vmatpush.msra.mxu0 0.0
          %868 = vmatpush.msra.mxu0 %v383
          %869 = vmatmul.f32.gmra.mxu0 %v576
          %v870 = vpop.f32.mrf.mxu0
          %v871 = vadd.f32 0.0, %v870
          %872 = vmatmul.f32.gmra.mxu0 %v579
          %v873 = vpop.f32.mrf.mxu0
          %v874 = vadd.f32 0.0, %v873
          %875 = vmatmul.f32.gmra.mxu0 %v582
          %v876 = vpop.f32.mrf.mxu0
          %v877 = vadd.f32 0.0, %v876
          %878 = vmatmul.f32.gmra.mxu0 %v585
          %v879 = vpop.f32.mrf.mxu0
          %v880 = vadd.f32 0.0, %v879
          %881 = vdwg.mxu0
          %882 = vmatpush.msra.mxu0 0.0
          %883 = vmatpush.msra.mxu0 0.0
          %884 = vmatpush.msra.mxu0 0.0
          %885 = vmatpush.msra.mxu0 0.0
          %886 = vmatpush.msra.mxu0 0.0
          %887 = vmatpush.msra.mxu0 0.0
          %888 = vmatpush.msra.mxu0 0.0
          %889 = vmatpush.msra.mxu0 0.0
          %890 = vmatpush.msra.mxu0 0.0
          %891 = vmatpush.msra.mxu0 0.0
          %892 = vmatpush.msra.mxu0 0.0
          %893 = vmatpush.msra.mxu0 0.0
          %894 = vmatpush.msra.mxu0 0.0
          %895 = vmatpush.msra.mxu0 0.0
          %896 = vmatpush.msra.mxu0 0.0
          %897 = vmatpush.msra.mxu0 %v427
          %898 = vmatmul.f32.gmra.mxu0 %v522
          %v899 = vpop.f32.mrf.mxu0
          %v900 = vadd.f32 %v871, %v899
          %901 = vmatmul.f32.gmra.mxu0 %v525
          %v902 = vpop.f32.mrf.mxu0
          %v903 = vadd.f32 %v874, %v902
          %904 = vmatmul.f32.gmra.mxu0 %v528
          %v905 = vpop.f32.mrf.mxu0
          %v906 = vadd.f32 %v877, %v905
          %907 = vmatmul.f32.gmra.mxu0 %v531
          %v908 = vpop.f32.mrf.mxu0
          %v909 = vadd.f32 %v880, %v908
          %910 = vdwg.mxu0
          %911 = vmatpush.msra.mxu0 0.0
          %912 = vmatpush.msra.mxu0 0.0
          %913 = vmatpush.msra.mxu0 0.0
          %914 = vmatpush.msra.mxu0 0.0
          %915 = vmatpush.msra.mxu0 0.0
          %916 = vmatpush.msra.mxu0 0.0
          %917 = vmatpush.msra.mxu0 0.0
          %918 = vmatpush.msra.mxu0 0.0
          %919 = vmatpush.msra.mxu0 0.0
          %920 = vmatpush.msra.mxu0 0.0
          %921 = vmatpush.msra.mxu0 0.0
          %922 = vmatpush.msra.mxu0 0.0
          %923 = vmatpush.msra.mxu0 0.0
          %924 = vmatpush.msra.mxu0 0.0
          %925 = vmatpush.msra.mxu0 0.0
          %926 = vmatpush.msra.mxu0 %v477
          %927 = vmatmul.f32.gmra.mxu0 %v630
          %v928 = vpop.f32.mrf.mxu0
          %v929 = vadd.f32 0.0, %v928
          %930 = vmatmul.f32.gmra.mxu0 %v633
          %v931 = vpop.f32.mrf.mxu0
          %v932 = vadd.f32 0.0, %v931
          %933 = vmatmul.f32.gmra.mxu0 %v636
          %v934 = vpop.f32.mrf.mxu0
          %v935 = vadd.f32 0.0, %v934
          %936 = vmatmul.f32.gmra.mxu0 %v639
          %v937 = vpop.f32.mrf.mxu0
          %v938 = vadd.f32 0.0, %v937
          %939 = vdwg.mxu0
          %v940 = vadd.f32 %v900, %v929
          %v941 = vadd.f32 %v903, %v932
          %v942 = vadd.f32 %v906, %v935
          %v943 = vadd.f32 %v909, %v938
          %944 = vmatpush.msra.mxu0 0.0
          %945 = vmatpush.msra.mxu0 0.0
          %946 = vmatpush.msra.mxu0 0.0
          %947 = vmatpush.msra.mxu0 0.0
          %948 = vmatpush.msra.mxu0 0.0
          %949 = vmatpush.msra.mxu0 0.0
          %950 = vmatpush.msra.mxu0 0.0
          %951 = vmatpush.msra.mxu0 0.0
          %952 = vmatpush.msra.mxu0 0.0
          %953 = vmatpush.msra.mxu0 0.0
          %954 = vmatpush.msra.mxu0 0.0
          %955 = vmatpush.msra.mxu0 0.0
          %956 = vmatpush.msra.mxu0 0.0
          %957 = vmatpush.msra.mxu0 0.0
          %958 = vmatpush.msra.mxu0 0.0
          %959 = vmatpush.msra.mxu0 %v534
          %960 = vmatmul.f32.gmra.mxu0 %v687
          %v961 = vpop.f32.mrf.mxu0
          %v962 = vadd.f32 0.0, %v961
          %963 = vmatmul.f32.gmra.mxu0 %v690
          %v964 = vpop.f32.mrf.mxu0
          %v965 = vadd.f32 0.0, %v964
          %966 = vmatmul.f32.gmra.mxu0 %v693
          %v967 = vpop.f32.mrf.mxu0
          %v968 = vadd.f32 0.0, %v967
          %969 = vmatmul.f32.gmra.mxu0 %v696
          %v970 = vpop.f32.mrf.mxu0
          %v971 = vadd.f32 0.0, %v970
          %972 = vdwg.mxu0
          %v973 = vadd.f32 %v940, %v962
          %v974 = vadd.f32 %v941, %v965
          %v975 = vadd.f32 %v942, %v968
          %v976 = vadd.f32 %v943, %v971
          %977 = vmatpush.msra.mxu0 0.0
          %978 = vmatpush.msra.mxu0 0.0
          %979 = vmatpush.msra.mxu0 0.0
          %980 = vmatpush.msra.mxu0 0.0
          %981 = vmatpush.msra.mxu0 0.0
          %982 = vmatpush.msra.mxu0 0.0
          %983 = vmatpush.msra.mxu0 0.0
          %984 = vmatpush.msra.mxu0 0.0
          %985 = vmatpush.msra.mxu0 0.0
          %986 = vmatpush.msra.mxu0 0.0
          %987 = vmatpush.msra.mxu0 0.0
          %988 = vmatpush.msra.mxu0 0.0
          %989 = vmatpush.msra.mxu0 0.0
          %990 = vmatpush.msra.mxu0 0.0
          %991 = vmatpush.msra.mxu0 0.0
          %992 = vmatpush.msra.mxu0 %v588
          %993 = vmatmul.f32.gmra.mxu0 %v741
          %v994 = vpop.f32.mrf.mxu0
          %v995 = vadd.f32 0.0, %v994
          %996 = vmatmul.f32.gmra.mxu0 %v744
          %v997 = vpop.f32.mrf.mxu0
          %v998 = vadd.f32 0.0, %v997
          %999 = vmatmul.f32.gmra.mxu0 %v747
          %v1000 = vpop.f32.mrf.mxu0
          %v1001 = vadd.f32 0.0, %v1000
          %1002 = vmatmul.f32.gmra.mxu0 %v750
          %v1003 = vpop.f32.mrf.mxu0
          %v1004 = vadd.f32 0.0, %v1003
          %1005 = vdwg.mxu0
          %v1006 = vadd.f32 %v973, %v995
          %v1007 = vadd.f32 %v974, %v998
          %v1008 = vadd.f32 %v975, %v1001
          %v1009 = vadd.f32 %v976, %v1004
          %1010 = vmatpush.msra.mxu0 0.0
          %1011 = vmatpush.msra.mxu0 0.0
          %1012 = vmatpush.msra.mxu0 0.0
          %1013 = vmatpush.msra.mxu0 0.0
          %1014 = vmatpush.msra.mxu0 0.0
          %1015 = vmatpush.msra.mxu0 0.0
          %1016 = vmatpush.msra.mxu0 0.0
          %1017 = vmatpush.msra.mxu0 0.0
          %1018 = vmatpush.msra.mxu0 0.0
          %1019 = vmatpush.msra.mxu0 0.0
          %1020 = vmatpush.msra.mxu0 0.0
          %1021 = vmatpush.msra.mxu0 0.0
          %1022 = vmatpush.msra.mxu0 0.0
          %1023 = vmatpush.msra.mxu0 0.0
          %1024 = vmatpush.msra.mxu0 0.0
          %1025 = vmatpush.msra.mxu0 %v642
          %1026 = vmatmul.f32.gmra.mxu0 %v795
          %v1027 = vpop.f32.mrf.mxu0
          %v1028 = vadd.f32 0.0, %v1027
          %1029 = vmatmul.f32.gmra.mxu0 %v798
          %v1030 = vpop.f32.mrf.mxu0
          %v1031 = vadd.f32 0.0, %v1030
          %1032 = vmatmul.f32.gmra.mxu0 %v801
          %v1033 = vpop.f32.mrf.mxu0
          %v1034 = vadd.f32 0.0, %v1033
          %1035 = vmatmul.f32.gmra.mxu0 %v804
          %v1036 = vpop.f32.mrf.mxu0
          %v1037 = vadd.f32 0.0, %v1036
          %1038 = vdwg.mxu0
          %v1039 = vadd.f32 %v1006, %v1028
          %v1040 = vadd.f32 %v1007, %v1031
          %v1041 = vadd.f32 %v1008, %v1034
          %v1042 = vadd.f32 %v1009, %v1037
          %s1043 = sadd.s32 %s354, 3
          %s1044 = smul.u32 %s1043, 32
          %s1045 = scalar_lea.vmem %s329, %s1044
          %v1046 = vld [vmem:[%s1045] sm:$0xff]
          %v1047 = vld [vmem:[%s1045 + $0x8] sm:$0xff]
          %v1048 = vld [vmem:[%s1045 + $0x10] sm:$0xff]
          %v1049 = vld [vmem:[%s1045 + $0x18] sm:$0x3f]
          %v1051 = vsel %vm368, %v1046, 0
          %v1054 = vsel %vm368, %v1047, 0
          %v1057 = vsel %vm368, %v1048, 0
          %v1060 = vsel %vm368, %v1049, 0
          %1062 = vmatpush.msra.mxu0 0.0
          %1063 = vmatpush.msra.mxu0 0.0
          %1064 = vmatpush.msra.mxu0 0.0
          %1065 = vmatpush.msra.mxu0 0.0
          %1066 = vmatpush.msra.mxu0 0.0
          %1067 = vmatpush.msra.mxu0 0.0
          %1068 = vmatpush.msra.mxu0 0.0
          %1069 = vmatpush.msra.mxu0 0.0
          %1070 = vmatpush.msra.mxu0 0.0
          %1071 = vmatpush.msra.mxu0 0.0
          %1072 = vmatpush.msra.mxu0 0.0
          %1073 = vmatpush.msra.mxu0 0.0
          %1074 = vmatpush.msra.mxu0 0.0
          %1075 = vmatpush.msra.mxu0 0.0
          %1076 = vmatpush.msra.mxu0 0.0
          %1077 = vmatpush.msra.mxu0 %v699
          %1078 = vmatmul.f32.gmra.mxu0 %v1051
          %v1079 = vpop.f32.mrf.mxu0
          %v1080 = vadd.f32 0.0, %v1079
          %1081 = vmatmul.f32.gmra.mxu0 %v1054
          %v1082 = vpop.f32.mrf.mxu0
          %v1083 = vadd.f32 0.0, %v1082
          %1084 = vmatmul.f32.gmra.mxu0 %v1057
          %v1085 = vpop.f32.mrf.mxu0
          %v1086 = vadd.f32 0.0, %v1085
          %1087 = vmatmul.f32.gmra.mxu0 %v1060
          %v1088 = vpop.f32.mrf.mxu0
          %v1089 = vadd.f32 0.0, %v1088
          %1090 = vdwg.mxu0
          %v1091 = vadd.f32 %v1039, %v1080
          %v1092 = vadd.f32 %v1040, %v1083
          %v1093 = vadd.f32 %v1041, %v1086
          %v1094 = vadd.f32 %v1042, %v1089
          %v1095 = vld [vmem:[%s1045 + $0x1] sm:$0xff]
          %v1096 = vld [vmem:[%s1045 + $0x9] sm:$0xff]
          %v1097 = vld [vmem:[%s1045 + $0x11] sm:$0xff]
          %v1098 = vld [vmem:[%s1045 + $0x19] sm:$0x3f]
          %v1100 = vsel %vm368, %v1095, 0
          %v1103 = vsel %vm368, %v1096, 0
          %v1106 = vsel %vm368, %v1097, 0
          %v1109 = vsel %vm368, %v1098, 0
          %1111 = vmatpush.msra.mxu0 0.0
          %1112 = vmatpush.msra.mxu0 0.0
          %1113 = vmatpush.msra.mxu0 0.0
          %1114 = vmatpush.msra.mxu0 0.0
          %1115 = vmatpush.msra.mxu0 0.0
          %1116 = vmatpush.msra.mxu0 0.0
          %1117 = vmatpush.msra.mxu0 0.0
          %1118 = vmatpush.msra.mxu0 0.0
          %1119 = vmatpush.msra.mxu0 0.0
          %1120 = vmatpush.msra.mxu0 0.0
          %1121 = vmatpush.msra.mxu0 0.0
          %1122 = vmatpush.msra.mxu0 0.0
          %1123 = vmatpush.msra.mxu0 0.0
          %1124 = vmatpush.msra.mxu0 0.0
          %1125 = vmatpush.msra.mxu0 0.0
          %1126 = vmatpush.msra.mxu0 %v753
          %1127 = vmatmul.f32.gmra.mxu0 %v1100
          %v1128 = vpop.f32.mrf.mxu0
          %v1129 = vadd.f32 0.0, %v1128
          %1130 = vmatmul.f32.gmra.mxu0 %v1103
          %v1131 = vpop.f32.mrf.mxu0
          %v1132 = vadd.f32 0.0, %v1131
          %1133 = vmatmul.f32.gmra.mxu0 %v1106
          %v1134 = vpop.f32.mrf.mxu0
          %v1135 = vadd.f32 0.0, %v1134
          %1136 = vmatmul.f32.gmra.mxu0 %v1109
          %v1137 = vpop.f32.mrf.mxu0
          %v1138 = vadd.f32 0.0, %v1137
          %1139 = vdwg.mxu0
          %v1140 = vadd.f32 %v1091, %v1129
          %v1141 = vadd.f32 %v1092, %v1132
          %v1142 = vadd.f32 %v1093, %v1135
          %v1143 = vadd.f32 %v1094, %v1138
          %v1144 = vld [vmem:[%s1045 + $0x2] sm:$0xff]
          %v1145 = vld [vmem:[%s1045 + $0xa] sm:$0xff]
          %v1146 = vld [vmem:[%s1045 + $0x12] sm:$0xff]
          %v1147 = vld [vmem:[%s1045 + $0x1a] sm:$0x3f]
          %v1149 = vsel %vm368, %v1144, 0
          %v1152 = vsel %vm368, %v1145, 0
          %v1155 = vsel %vm368, %v1146, 0
          %v1158 = vsel %vm368, %v1147, 0
          %1160 = vmatpush.msra.mxu0 0.0
          %1161 = vmatpush.msra.mxu0 0.0
          %1162 = vmatpush.msra.mxu0 0.0
          %1163 = vmatpush.msra.mxu0 0.0
          %1164 = vmatpush.msra.mxu0 0.0
          %1165 = vmatpush.msra.mxu0 0.0
          %1166 = vmatpush.msra.mxu0 0.0
          %1167 = vmatpush.msra.mxu0 0.0
          %1168 = vmatpush.msra.mxu0 0.0
          %1169 = vmatpush.msra.mxu0 0.0
          %1170 = vmatpush.msra.mxu0 0.0
          %1171 = vmatpush.msra.mxu0 0.0
          %1172 = vmatpush.msra.mxu0 0.0
          %1173 = vmatpush.msra.mxu0 0.0
          %1174 = vmatpush.msra.mxu0 0.0
          %1175 = vmatpush.msra.mxu0 %v807
          %1176 = vmatmul.f32.gmra.mxu0 %v1149
          %v1177 = vpop.f32.mrf.mxu0
          %v1178 = vadd.f32 0.0, %v1177
          %1179 = vmatmul.f32.gmra.mxu0 %v1152
          %v1180 = vpop.f32.mrf.mxu0
          %v1181 = vadd.f32 0.0, %v1180
          %1182 = vmatmul.f32.gmra.mxu0 %v1155
          %v1183 = vpop.f32.mrf.mxu0
          %v1184 = vadd.f32 0.0, %v1183
          %1185 = vmatmul.f32.gmra.mxu0 %v1158
          %v1186 = vpop.f32.mrf.mxu0
          %v1187 = vadd.f32 0.0, %v1186
          %1188 = vdwg.mxu0
          %v1189 = vadd.f32 %v1140, %v1178
          %v1190 = vadd.f32 %v1141, %v1181
          %v1191 = vadd.f32 %v1142, %v1184
          %v1192 = vadd.f32 %v1143, %v1187
          %v1193 = vadd.f32 %v1189, %v843
          %v1194 = vadd.f32 %v1190, %v843
          %v1195 = vadd.f32 %v1191, %v843
          %v1196 = vadd.f32 %v1192, %v843
          %v1197 = vmax.f32 %v1193, 0.0
          %v1198 = vmax.f32 %v1194, 0.0
          %v1199 = vmax.f32 %v1195, 0.0
          %v1200 = vmax.f32 %v1196, 0.0
          %v1201 = vmax.f32 %v849, %v1197
          %v1202 = vmax.f32 %v850, %v1198
          %v1203 = vmax.f32 %v851, %v1199
          %v1204 = vmax.f32 %v852, %v1200
          %vm1205 = vcmask 244736
          %v1207 = vsel %vm1205, %v339, 0
          %v1210 = vsel %vm1205, %v340, 0
          %vm1212 = vcmask 1045504
          %v1214 = vsel %vm1212, %v1204, 0
          %1216 = vmatpush.msra.mxu0 0.0
          %1217 = vmatpush.msra.mxu0 0.0
          %1218 = vmatpush.msra.mxu0 0.0
          %1219 = vmatpush.msra.mxu0 0.0
          %1220 = vmatpush.msra.mxu0 0.0
          %1221 = vmatpush.msra.mxu0 0.0
          %1222 = vmatpush.msra.mxu0 0.0
          %1223 = vmatpush.msra.mxu0 0.0
          %1224 = vmatpush.msra.mxu0 0.0
          %1225 = vmatpush.msra.mxu0 0.0
          %1226 = vmatpush.msra.mxu0 0.0
          %1227 = vmatpush.msra.mxu0 0.0
          %1228 = vmatpush.msra.mxu0 %v1214
          %1229 = vmatpush.msra.mxu0 %v1203
          %1230 = vmatpush.msra.mxu0 %v1202
          %1231 = vmatpush.msra.mxu0 %v1201
          %1232 = vmatmul.f32.gmra.mxu0 %v1207
          %v1233 = vpop.f32.mrf.mxu0
          %v1234 = vadd.f32 0.0, %v1233
          %1235 = vmatmul.f32.gmra.mxu0 %v1210
          %v1236 = vpop.f32.mrf.mxu0
          %v1237 = vadd.f32 0.0, %v1236
          %1238 = vdwg.mxu0
          %v1240 = vsel %vm1205, %v345, 0
          %v1243 = vsel %vm1205, %v346, 0
          %1245 = vmatpush.msra.mxu0 0.0
          %1246 = vmatpush.msra.mxu0 0.0
          %1247 = vmatpush.msra.mxu0 0.0
          %1248 = vmatpush.msra.mxu0 0.0
          %1249 = vmatpush.msra.mxu0 0.0
          %1250 = vmatpush.msra.mxu0 0.0
          %1251 = vmatpush.msra.mxu0 0.0
          %1252 = vmatpush.msra.mxu0 0.0
          %1253 = vmatpush.msra.mxu0 0.0
          %1254 = vmatpush.msra.mxu0 0.0
          %1255 = vmatpush.msra.mxu0 0.0
          %1256 = vmatpush.msra.mxu0 0.0
          %1257 = vmatpush.msra.mxu0 %v1214
          %1258 = vmatpush.msra.mxu0 %v1203
          %1259 = vmatpush.msra.mxu0 %v1202
          %1260 = vmatpush.msra.mxu0 %v1201
          %1261 = vmatmul.f32.gmra.mxu0 %v1240
          %v1262 = vpop.f32.mrf.mxu0
          %v1263 = vadd.f32 0.0, %v1262
          %1264 = vmatmul.f32.gmra.mxu0 %v1243
          %v1265 = vpop.f32.mrf.mxu0
          %v1266 = vadd.f32 0.0, %v1265
          %1267 = vdwg.mxu0
          %v1268 = vmax.f32 %v1234, %v1263
          %v1269 = vmax.f32 %v1237, %v1266
          %s1270 = smul.u32 %s349, 16
          %s1271 = scalar_lea.vmem [#allocation2], %s1270
          %1272 = vst [vmem:[%s1271] sm:$0xff] %v1268
          %1273 = vst [vmem:[%s1271 + $0x8] sm:$0x7f] %v1269
        $region61: #{net_forward.1} parent=55 // loop_footer
          %s353 = sadd.s32 1, %s349
        $region62: #{net_forward.1} parent=55 // loop_footer_branch
          %348 = sbr.rel target = $region58
        $region63: #{net_forward.1} parent=55 // loop_exit
          _
        %v1274 = vld [vmem:[%s4] sm:$0x1]
        loop: start=0, step=1, limit=6
        $region64: #{net_forward.1} parent=55 // loop_pre_header
          _
        $region65: #{net_forward.1} parent=55 // loop_header
          %s1276 = sphi 0, %s1280
          %p1277 = scmp.ge.s32.totalorder %s1276, 6
        $region66: #{net_forward.1} parent=55 // loop_header_branch
          %1279 = sbr.rel (%p1277) target = $region70
        $region67: #{net_forward.1} parent=55 // loop_body
          %s1281 = smul.u32 %s1276, 2
          %s1282 = smul.u32 %s1281, 16
          %s1283 = scalar_lea.vmem [#allocation2], %s1282
          %v1284 = vld [vmem:[%s1283] sm:$0xff]
          %v1285 = vld [vmem:[%s1283 + $0x8] sm:$0x1f]
          %v1286 = vld [vmem:[%s3] sm:$0xff]
          %v1287 = vld [vmem:[%s3 + $0x8] sm:$0xff]
          %v1288 = vld [vmem:[%s3 + $0x10] sm:$0xff]
          %v1289 = vld [vmem:[%s3 + $0x18] sm:$0xff]
          %v1290 = vld [vmem:[%s3 + $0x20] sm:$0xff]
          %v1291 = vld [vmem:[%s3 + $0x28] sm:$0xff]
          %v1292 = vld [vmem:[%s3 + $0x30] sm:$0xff]
          %v1293 = vld [vmem:[%s3 + $0x38] sm:$0xff]
          %v1294 = vld [vmem:[%s3 + $0x40] sm:$0xff]
          %v1295 = vld [vmem:[%s3 + $0x48] sm:$0xff]
          %v1296 = vld [vmem:[%s3 + $0x50] sm:$0xff]
          %v1297 = vld [vmem:[%s3 + $0x58] sm:$0xff]
          %v1298 = vld [vmem:[%s3 + $0x60] sm:$0xff]
          %v1299 = vld [vmem:[%s3 + $0x68] sm:$0xff]
          %v1300 = vld [vmem:[%s3 + $0x70] sm:$0xff]
          %v1301 = vld [vmem:[%s3 + $0x78] sm:$0xff]
          %v1302 = vld [vmem:[%s1283 + $0x1] sm:$0xff]
          %v1303 = vld [vmem:[%s1283 + $0x9] sm:$0x1f]
          %s1304 = scalar_lea.vmem %s3, 128
          %v1305 = vld [vmem:[%s1304] sm:$0xff]
          %v1306 = vld [vmem:[%s1304 + $0x8] sm:$0xff]
          %v1307 = vld [vmem:[%s1304 + $0x10] sm:$0xff]
          %v1308 = vld [vmem:[%s1304 + $0x18] sm:$0xff]
          %v1309 = vld [vmem:[%s1304 + $0x20] sm:$0xff]
          %v1310 = vld [vmem:[%s1304 + $0x28] sm:$0xff]
          %v1311 = vld [vmem:[%s1304 + $0x30] sm:$0xff]
          %v1312 = vld [vmem:[%s1304 + $0x38] sm:$0xff]
          %v1313 = vld [vmem:[%s1304 + $0x40] sm:$0xff]
          %v1314 = vld [vmem:[%s1304 + $0x48] sm:$0xff]
          %v1315 = vld [vmem:[%s1304 + $0x50] sm:$0xff]
          %v1316 = vld [vmem:[%s1304 + $0x58] sm:$0xff]
          %v1317 = vld [vmem:[%s1304 + $0x60] sm:$0xff]
          %v1318 = vld [vmem:[%s1304 + $0x68] sm:$0xff]
          %v1319 = vld [vmem:[%s1304 + $0x70] sm:$0xff]
          %v1320 = vld [vmem:[%s1304 + $0x78] sm:$0xff]
          %1321 = vmatpush.msra.mxu0 %v1320
          %1322 = vmatpush.msra.mxu0 %v1319
          %1323 = vmatpush.msra.mxu0 %v1318
          %1324 = vmatpush.msra.mxu0 %v1317
          %1325 = vmatpush.msra.mxu0 %v1316
          %1326 = vmatpush.msra.mxu0 %v1315
          %1327 = vmatpush.msra.mxu0 %v1314
          %1328 = vmatpush.msra.mxu0 %v1313
          %1329 = vmatpush.msra.mxu0 %v1312
          %1330 = vmatpush.msra.mxu0 %v1311
          %1331 = vmatpush.msra.mxu0 %v1310
          %1332 = vmatpush.msra.mxu0 %v1309
          %1333 = vmatpush.msra.mxu0 %v1308
          %1334 = vmatpush.msra.mxu0 %v1307
          %1335 = vmatpush.msra.mxu0 %v1306
          %1336 = vmatpush.msra.mxu0 %v1305
          %1337 = vmatmul.f32.gmra.mxu0 %v1302
          %v1338 = vpop.f32.mrf.mxu0
          %v1339 = vadd.f32 0.0, %v1338
          %1340 = vmatmul.f32.gmra.mxu0 %v1303
          %v1341 = vpop.f32.mrf.mxu0
          %v1342 = vadd.f32 0.0, %v1341
          %1343 = vdwg.mxu0
          %1344 = vmatpush.msra.mxu0 %v1301
          %1345 = vmatpush.msra.mxu0 %v1300
          %1346 = vmatpush.msra.mxu0 %v1299
          %1347 = vmatpush.msra.mxu0 %v1298
          %1348 = vmatpush.msra.mxu0 %v1297
          %1349 = vmatpush.msra.mxu0 %v1296
          %1350 = vmatpush.msra.mxu0 %v1295
          %1351 = vmatpush.msra.mxu0 %v1294
          %1352 = vmatpush.msra.mxu0 %v1293
          %1353 = vmatpush.msra.mxu0 %v1292
          %1354 = vmatpush.msra.mxu0 %v1291
          %1355 = vmatpush.msra.mxu0 %v1290
          %1356 = vmatpush.msra.mxu0 %v1289
          %1357 = vmatpush.msra.mxu0 %v1288
          %1358 = vmatpush.msra.mxu0 %v1287
          %1359 = vmatpush.msra.mxu0 %v1286
          %1360 = vmatmul.f32.gmra.mxu0 %v1284
          %v1361 = vpop.f32.mrf.mxu0
          %v1362 = vadd.f32 %v1339, %v1361
          %1363 = vmatmul.f32.gmra.mxu0 %v1285
          %v1364 = vpop.f32.mrf.mxu0
          %v1365 = vadd.f32 %v1342, %v1364
          %1366 = vdwg.mxu0
          %v1367 = vld [vmem:[%s1283 + $0x2] sm:$0xff]
          %v1368 = vld [vmem:[%s1283 + $0xa] sm:$0x1f]
          %s1369 = scalar_lea.vmem %s3, 256
          %v1370 = vld [vmem:[%s1369] sm:$0xff]
          %v1371 = vld [vmem:[%s1369 + $0x8] sm:$0xff]
          %v1372 = vld [vmem:[%s1369 + $0x10] sm:$0xff]
          %v1373 = vld [vmem:[%s1369 + $0x18] sm:$0xff]
          %v1374 = vld [vmem:[%s1369 + $0x20] sm:$0xff]
          %v1375 = vld [vmem:[%s1369 + $0x28] sm:$0xff]
          %v1376 = vld [vmem:[%s1369 + $0x30] sm:$0xff]
          %v1377 = vld [vmem:[%s1369 + $0x38] sm:$0xff]
          %v1378 = vld [vmem:[%s1369 + $0x40] sm:$0xff]
          %v1379 = vld [vmem:[%s1369 + $0x48] sm:$0xff]
          %v1380 = vld [vmem:[%s1369 + $0x50] sm:$0xff]
          %v1381 = vld [vmem:[%s1369 + $0x58] sm:$0xff]
          %v1382 = vld [vmem:[%s1369 + $0x60] sm:$0xff]
          %v1383 = vld [vmem:[%s1369 + $0x68] sm:$0xff]
          %v1384 = vld [vmem:[%s1369 + $0x70] sm:$0xff]
          %v1385 = vld [vmem:[%s1369 + $0x78] sm:$0xff]
          %1386 = vmatpush.msra.mxu0 %v1385
          %1387 = vmatpush.msra.mxu0 %v1384
          %1388 = vmatpush.msra.mxu0 %v1383
          %1389 = vmatpush.msra.mxu0 %v1382
          %1390 = vmatpush.msra.mxu0 %v1381
          %1391 = vmatpush.msra.mxu0 %v1380
          %1392 = vmatpush.msra.mxu0 %v1379
          %1393 = vmatpush.msra.mxu0 %v1378
          %1394 = vmatpush.msra.mxu0 %v1377
          %1395 = vmatpush.msra.mxu0 %v1376
          %1396 = vmatpush.msra.mxu0 %v1375
          %1397 = vmatpush.msra.mxu0 %v1374
          %1398 = vmatpush.msra.mxu0 %v1373
          %1399 = vmatpush.msra.mxu0 %v1372
          %1400 = vmatpush.msra.mxu0 %v1371
          %1401 = vmatpush.msra.mxu0 %v1370
          %1402 = vmatmul.f32.gmra.mxu0 %v1367
          %v1403 = vpop.f32.mrf.mxu0
          %v1404 = vadd.f32 0.0, %v1403
          %1405 = vmatmul.f32.gmra.mxu0 %v1368
          %v1406 = vpop.f32.mrf.mxu0
          %v1407 = vadd.f32 0.0, %v1406
          %1408 = vdwg.mxu0
          %v1409 = vadd.f32 %v1362, %v1404
          %v1410 = vadd.f32 %v1365, %v1407
          %s1411 = sadd.s32 %s1281, 1
          %s1412 = smul.u32 %s1411, 16
          %s1413 = scalar_lea.vmem [#allocation2], %s1412
          %v1414 = vld [vmem:[%s1413] sm:$0xff]
          %v1415 = vld [vmem:[%s1413 + $0x8] sm:$0x1f]
          %s1416 = scalar_lea.vmem %s3, 384
          %v1417 = vld [vmem:[%s1416] sm:$0xff]
          %v1418 = vld [vmem:[%s1416 + $0x8] sm:$0xff]
          %v1419 = vld [vmem:[%s1416 + $0x10] sm:$0xff]
          %v1420 = vld [vmem:[%s1416 + $0x18] sm:$0xff]
          %v1421 = vld [vmem:[%s1416 + $0x20] sm:$0xff]
          %v1422 = vld [vmem:[%s1416 + $0x28] sm:$0xff]
          %v1423 = vld [vmem:[%s1416 + $0x30] sm:$0xff]
          %v1424 = vld [vmem:[%s1416 + $0x38] sm:$0xff]
          %v1425 = vld [vmem:[%s1416 + $0x40] sm:$0xff]
          %v1426 = vld [vmem:[%s1416 + $0x48] sm:$0xff]
          %v1427 = vld [vmem:[%s1416 + $0x50] sm:$0xff]
          %v1428 = vld [vmem:[%s1416 + $0x58] sm:$0xff]
          %v1429 = vld [vmem:[%s1416 + $0x60] sm:$0xff]
          %v1430 = vld [vmem:[%s1416 + $0x68] sm:$0xff]
          %v1431 = vld [vmem:[%s1416 + $0x70] sm:$0xff]
          %v1432 = vld [vmem:[%s1416 + $0x78] sm:$0xff]
          %1433 = vmatpush.msra.mxu0 %v1432
          %1434 = vmatpush.msra.mxu0 %v1431
          %1435 = vmatpush.msra.mxu0 %v1430
          %1436 = vmatpush.msra.mxu0 %v1429
          %1437 = vmatpush.msra.mxu0 %v1428
          %1438 = vmatpush.msra.mxu0 %v1427
          %1439 = vmatpush.msra.mxu0 %v1426
          %1440 = vmatpush.msra.mxu0 %v1425
          %1441 = vmatpush.msra.mxu0 %v1424
          %1442 = vmatpush.msra.mxu0 %v1423
          %1443 = vmatpush.msra.mxu0 %v1422
          %1444 = vmatpush.msra.mxu0 %v1421
          %1445 = vmatpush.msra.mxu0 %v1420
          %1446 = vmatpush.msra.mxu0 %v1419
          %1447 = vmatpush.msra.mxu0 %v1418
          %1448 = vmatpush.msra.mxu0 %v1417
          %1449 = vmatmul.f32.gmra.mxu0 %v1414
          %v1450 = vpop.f32.mrf.mxu0
          %v1451 = vadd.f32 0.0, %v1450
          %1452 = vmatmul.f32.gmra.mxu0 %v1415
          %v1453 = vpop.f32.mrf.mxu0
          %v1454 = vadd.f32 0.0, %v1453
          %1455 = vdwg.mxu0
          %v1456 = vadd.f32 %v1409, %v1451
          %v1457 = vadd.f32 %v1410, %v1454
          %v1458 = vld [vmem:[%s1413 + $0x1] sm:$0xff]
          %v1459 = vld [vmem:[%s1413 + $0x9] sm:$0x1f]
          %s1460 = scalar_lea.vmem %s3, 512
          %v1461 = vld [vmem:[%s1460] sm:$0xff]
          %v1462 = vld [vmem:[%s1460 + $0x8] sm:$0xff]
          %v1463 = vld [vmem:[%s1460 + $0x10] sm:$0xff]
          %v1464 = vld [vmem:[%s1460 + $0x18] sm:$0xff]
          %v1465 = vld [vmem:[%s1460 + $0x20] sm:$0xff]
          %v1466 = vld [vmem:[%s1460 + $0x28] sm:$0xff]
          %v1467 = vld [vmem:[%s1460 + $0x30] sm:$0xff]
          %v1468 = vld [vmem:[%s1460 + $0x38] sm:$0xff]
          %v1469 = vld [vmem:[%s1460 + $0x40] sm:$0xff]
          %v1470 = vld [vmem:[%s1460 + $0x48] sm:$0xff]
          %v1471 = vld [vmem:[%s1460 + $0x50] sm:$0xff]
          %v1472 = vld [vmem:[%s1460 + $0x58] sm:$0xff]
          %v1473 = vld [vmem:[%s1460 + $0x60] sm:$0xff]
          %v1474 = vld [vmem:[%s1460 + $0x68] sm:$0xff]
          %v1475 = vld [vmem:[%s1460 + $0x70] sm:$0xff]
          %v1476 = vld [vmem:[%s1460 + $0x78] sm:$0xff]
          %1477 = vmatpush.msra.mxu0 %v1476
          %1478 = vmatpush.msra.mxu0 %v1475
          %1479 = vmatpush.msra.mxu0 %v1474
          %1480 = vmatpush.msra.mxu0 %v1473
          %1481 = vmatpush.msra.mxu0 %v1472
          %1482 = vmatpush.msra.mxu0 %v1471
          %1483 = vmatpush.msra.mxu0 %v1470
          %1484 = vmatpush.msra.mxu0 %v1469
          %1485 = vmatpush.msra.mxu0 %v1468
          %1486 = vmatpush.msra.mxu0 %v1467
          %1487 = vmatpush.msra.mxu0 %v1466
          %1488 = vmatpush.msra.mxu0 %v1465
          %1489 = vmatpush.msra.mxu0 %v1464
          %1490 = vmatpush.msra.mxu0 %v1463
          %1491 = vmatpush.msra.mxu0 %v1462
          %1492 = vmatpush.msra.mxu0 %v1461
          %1493 = vmatmul.f32.gmra.mxu0 %v1458
          %v1494 = vpop.f32.mrf.mxu0
          %v1495 = vadd.f32 0.0, %v1494
          %1496 = vmatmul.f32.gmra.mxu0 %v1459
          %v1497 = vpop.f32.mrf.mxu0
          %v1498 = vadd.f32 0.0, %v1497
          %1499 = vdwg.mxu0
          %v1500 = vadd.f32 %v1456, %v1495
          %v1501 = vadd.f32 %v1457, %v1498
          %v1502 = vld [vmem:[%s1413 + $0x2] sm:$0xff]
          %v1503 = vld [vmem:[%s1413 + $0xa] sm:$0x1f]
          %s1504 = scalar_lea.vmem %s3, 640
          %v1505 = vld [vmem:[%s1504] sm:$0xff]
          %v1506 = vld [vmem:[%s1504 + $0x8] sm:$0xff]
          %v1507 = vld [vmem:[%s1504 + $0x10] sm:$0xff]
          %v1508 = vld [vmem:[%s1504 + $0x18] sm:$0xff]
          %v1509 = vld [vmem:[%s1504 + $0x20] sm:$0xff]
          %v1510 = vld [vmem:[%s1504 + $0x28] sm:$0xff]
          %v1511 = vld [vmem:[%s1504 + $0x30] sm:$0xff]
          %v1512 = vld [vmem:[%s1504 + $0x38] sm:$0xff]
          %v1513 = vld [vmem:[%s1504 + $0x40] sm:$0xff]
          %v1514 = vld [vmem:[%s1504 + $0x48] sm:$0xff]
          %v1515 = vld [vmem:[%s1504 + $0x50] sm:$0xff]
          %v1516 = vld [vmem:[%s1504 + $0x58] sm:$0xff]
          %v1517 = vld [vmem:[%s1504 + $0x60] sm:$0xff]
          %v1518 = vld [vmem:[%s1504 + $0x68] sm:$0xff]
          %v1519 = vld [vmem:[%s1504 + $0x70] sm:$0xff]
          %v1520 = vld [vmem:[%s1504 + $0x78] sm:$0xff]
          %1521 = vmatpush.msra.mxu0 %v1520
          %1522 = vmatpush.msra.mxu0 %v1519
          %1523 = vmatpush.msra.mxu0 %v1518
          %1524 = vmatpush.msra.mxu0 %v1517
          %1525 = vmatpush.msra.mxu0 %v1516
          %1526 = vmatpush.msra.mxu0 %v1515
          %1527 = vmatpush.msra.mxu0 %v1514
          %1528 = vmatpush.msra.mxu0 %v1513
          %1529 = vmatpush.msra.mxu0 %v1512
          %1530 = vmatpush.msra.mxu0 %v1511
          %1531 = vmatpush.msra.mxu0 %v1510
          %1532 = vmatpush.msra.mxu0 %v1509
          %1533 = vmatpush.msra.mxu0 %v1508
          %1534 = vmatpush.msra.mxu0 %v1507
          %1535 = vmatpush.msra.mxu0 %v1506
          %1536 = vmatpush.msra.mxu0 %v1505
          %1537 = vmatmul.f32.gmra.mxu0 %v1502
          %v1538 = vpop.f32.mrf.mxu0
          %v1539 = vadd.f32 0.0, %v1538
          %1540 = vmatmul.f32.gmra.mxu0 %v1503
          %v1541 = vpop.f32.mrf.mxu0
          %v1542 = vadd.f32 0.0, %v1541
          %1543 = vdwg.mxu0
          %v1544 = vadd.f32 %v1500, %v1539
          %v1545 = vadd.f32 %v1501, %v1542
          %s1546 = sadd.s32 %s1281, 2
          %s1547 = smul.u32 %s1546, 16
          %s1548 = scalar_lea.vmem [#allocation2], %s1547
          %v1549 = vld [vmem:[%s1548] sm:$0xff]
          %v1550 = vld [vmem:[%s1548 + $0x8] sm:$0x1f]
          %s1551 = scalar_lea.vmem %s3, 768
          %v1552 = vld [vmem:[%s1551] sm:$0xff]
          %v1553 = vld [vmem:[%s1551 + $0x8] sm:$0xff]
          %v1554 = vld [vmem:[%s1551 + $0x10] sm:$0xff]
          %v1555 = vld [vmem:[%s1551 + $0x18] sm:$0xff]
          %v1556 = vld [vmem:[%s1551 + $0x20] sm:$0xff]
          %v1557 = vld [vmem:[%s1551 + $0x28] sm:$0xff]
          %v1558 = vld [vmem:[%s1551 + $0x30] sm:$0xff]
          %v1559 = vld [vmem:[%s1551 + $0x38] sm:$0xff]
          %v1560 = vld [vmem:[%s1551 + $0x40] sm:$0xff]
          %v1561 = vld [vmem:[%s1551 + $0x48] sm:$0xff]
          %v1562 = vld [vmem:[%s1551 + $0x50] sm:$0xff]
          %v1563 = vld [vmem:[%s1551 + $0x58] sm:$0xff]
          %v1564 = vld [vmem:[%s1551 + $0x60] sm:$0xff]
          %v1565 = vld [vmem:[%s1551 + $0x68] sm:$0xff]
          %v1566 = vld [vmem:[%s1551 + $0x70] sm:$0xff]
          %v1567 = vld [vmem:[%s1551 + $0x78] sm:$0xff]
          %1568 = vmatpush.msra.mxu0 %v1567
          %1569 = vmatpush.msra.mxu0 %v1566
          %1570 = vmatpush.msra.mxu0 %v1565
          %1571 = vmatpush.msra.mxu0 %v1564
          %1572 = vmatpush.msra.mxu0 %v1563
          %1573 = vmatpush.msra.mxu0 %v1562
          %1574 = vmatpush.msra.mxu0 %v1561
          %1575 = vmatpush.msra.mxu0 %v1560
          %1576 = vmatpush.msra.mxu0 %v1559
          %1577 = vmatpush.msra.mxu0 %v1558
          %1578 = vmatpush.msra.mxu0 %v1557
          %1579 = vmatpush.msra.mxu0 %v1556
          %1580 = vmatpush.msra.mxu0 %v1555
          %1581 = vmatpush.msra.mxu0 %v1554
          %1582 = vmatpush.msra.mxu0 %v1553
          %1583 = vmatpush.msra.mxu0 %v1552
          %1584 = vmatmul.f32.gmra.mxu0 %v1549
          %v1585 = vpop.f32.mrf.mxu0
          %v1586 = vadd.f32 0.0, %v1585
          %1587 = vmatmul.f32.gmra.mxu0 %v1550
          %v1588 = vpop.f32.mrf.mxu0
          %v1589 = vadd.f32 0.0, %v1588
          %1590 = vdwg.mxu0
          %v1591 = vadd.f32 %v1544, %v1586
          %v1592 = vadd.f32 %v1545, %v1589
          %v1593 = vld [vmem:[%s1548 + $0x1] sm:$0xff]
          %v1594 = vld [vmem:[%s1548 + $0x9] sm:$0x1f]
          %s1595 = scalar_lea.vmem %s3, 896
          %v1596 = vld [vmem:[%s1595] sm:$0xff]
          %v1597 = vld [vmem:[%s1595 + $0x8] sm:$0xff]
          %v1598 = vld [vmem:[%s1595 + $0x10] sm:$0xff]
          %v1599 = vld [vmem:[%s1595 + $0x18] sm:$0xff]
          %v1600 = vld [vmem:[%s1595 + $0x20] sm:$0xff]
          %v1601 = vld [vmem:[%s1595 + $0x28] sm:$0xff]
          %v1602 = vld [vmem:[%s1595 + $0x30] sm:$0xff]
          %v1603 = vld [vmem:[%s1595 + $0x38] sm:$0xff]
          %v1604 = vld [vmem:[%s1595 + $0x40] sm:$0xff]
          %v1605 = vld [vmem:[%s1595 + $0x48] sm:$0xff]
          %v1606 = vld [vmem:[%s1595 + $0x50] sm:$0xff]
          %v1607 = vld [vmem:[%s1595 + $0x58] sm:$0xff]
          %v1608 = vld [vmem:[%s1595 + $0x60] sm:$0xff]
          %v1609 = vld [vmem:[%s1595 + $0x68] sm:$0xff]
          %v1610 = vld [vmem:[%s1595 + $0x70] sm:$0xff]
          %v1611 = vld [vmem:[%s1595 + $0x78] sm:$0xff]
          %1612 = vmatpush.msra.mxu0 %v1611
          %1613 = vmatpush.msra.mxu0 %v1610
          %1614 = vmatpush.msra.mxu0 %v1609
          %1615 = vmatpush.msra.mxu0 %v1608
          %1616 = vmatpush.msra.mxu0 %v1607
          %1617 = vmatpush.msra.mxu0 %v1606
          %1618 = vmatpush.msra.mxu0 %v1605
          %1619 = vmatpush.msra.mxu0 %v1604
          %1620 = vmatpush.msra.mxu0 %v1603
          %1621 = vmatpush.msra.mxu0 %v1602
          %1622 = vmatpush.msra.mxu0 %v1601
          %1623 = vmatpush.msra.mxu0 %v1600
          %1624 = vmatpush.msra.mxu0 %v1599
          %1625 = vmatpush.msra.mxu0 %v1598
          %1626 = vmatpush.msra.mxu0 %v1597
          %1627 = vmatpush.msra.mxu0 %v1596
          %1628 = vmatmul.f32.gmra.mxu0 %v1593
          %v1629 = vpop.f32.mrf.mxu0
          %v1630 = vadd.f32 0.0, %v1629
          %1631 = vmatmul.f32.gmra.mxu0 %v1594
          %v1632 = vpop.f32.mrf.mxu0
          %v1633 = vadd.f32 0.0, %v1632
          %1634 = vdwg.mxu0
          %v1635 = vadd.f32 %v1591, %v1630
          %v1636 = vadd.f32 %v1592, %v1633
          %v1637 = vld [vmem:[%s1548 + $0x2] sm:$0xff]
          %v1638 = vld [vmem:[%s1548 + $0xa] sm:$0x1f]
          %s1639 = scalar_lea.vmem %s3, 1024
          %v1640 = vld [vmem:[%s1639] sm:$0xff]
          %v1641 = vld [vmem:[%s1639 + $0x8] sm:$0xff]
          %v1642 = vld [vmem:[%s1639 + $0x10] sm:$0xff]
          %v1643 = vld [vmem:[%s1639 + $0x18] sm:$0xff]
          %v1644 = vld [vmem:[%s1639 + $0x20] sm:$0xff]
          %v1645 = vld [vmem:[%s1639 + $0x28] sm:$0xff]
          %v1646 = vld [vmem:[%s1639 + $0x30] sm:$0xff]
          %v1647 = vld [vmem:[%s1639 + $0x38] sm:$0xff]
          %v1648 = vld [vmem:[%s1639 + $0x40] sm:$0xff]
          %v1649 = vld [vmem:[%s1639 + $0x48] sm:$0xff]
          %v1650 = vld [vmem:[%s1639 + $0x50] sm:$0xff]
          %v1651 = vld [vmem:[%s1639 + $0x58] sm:$0xff]
          %v1652 = vld [vmem:[%s1639 + $0x60] sm:$0xff]
          %v1653 = vld [vmem:[%s1639 + $0x68] sm:$0xff]
          %v1654 = vld [vmem:[%s1639 + $0x70] sm:$0xff]
          %v1655 = vld [vmem:[%s1639 + $0x78] sm:$0xff]
          %1656 = vmatpush.msra.mxu0 %v1655
          %1657 = vmatpush.msra.mxu0 %v1654
          %1658 = vmatpush.msra.mxu0 %v1653
          %1659 = vmatpush.msra.mxu0 %v1652
          %1660 = vmatpush.msra.mxu0 %v1651
          %1661 = vmatpush.msra.mxu0 %v1650
          %1662 = vmatpush.msra.mxu0 %v1649
          %1663 = vmatpush.msra.mxu0 %v1648
          %1664 = vmatpush.msra.mxu0 %v1647
          %1665 = vmatpush.msra.mxu0 %v1646
          %1666 = vmatpush.msra.mxu0 %v1645
          %1667 = vmatpush.msra.mxu0 %v1644
          %1668 = vmatpush.msra.mxu0 %v1643
          %1669 = vmatpush.msra.mxu0 %v1642
          %1670 = vmatpush.msra.mxu0 %v1641
          %1671 = vmatpush.msra.mxu0 %v1640
          %1672 = vmatmul.f32.gmra.mxu0 %v1637
          %v1673 = vpop.f32.mrf.mxu0
          %v1674 = vadd.f32 0.0, %v1673
          %1675 = vmatmul.f32.gmra.mxu0 %v1638
          %v1676 = vpop.f32.mrf.mxu0
          %v1677 = vadd.f32 0.0, %v1676
          %1678 = vdwg.mxu0
          %v1679 = vadd.f32 %v1635, %v1674
          %v1680 = vadd.f32 %v1636, %v1677
          %v1682 = vperm.slane %v1274, 0
          %v1684 = vadd.f32 %v1679, %v1682
          %v1685 = vadd.f32 %v1680, %v1682
          %v1686 = vmax.f32 %v1684, 0.0
          %v1687 = vmax.f32 %v1685, 0.0
          %1688 = vmatpush.msra.mxu0 %v1320
          %1689 = vmatpush.msra.mxu0 %v1319
          %1690 = vmatpush.msra.mxu0 %v1318
          %1691 = vmatpush.msra.mxu0 %v1317
          %1692 = vmatpush.msra.mxu0 %v1316
          %1693 = vmatpush.msra.mxu0 %v1315
          %1694 = vmatpush.msra.mxu0 %v1314
          %1695 = vmatpush.msra.mxu0 %v1313
          %1696 = vmatpush.msra.mxu0 %v1312
          %1697 = vmatpush.msra.mxu0 %v1311
          %1698 = vmatpush.msra.mxu0 %v1310
          %1699 = vmatpush.msra.mxu0 %v1309
          %1700 = vmatpush.msra.mxu0 %v1308
          %1701 = vmatpush.msra.mxu0 %v1307
          %1702 = vmatpush.msra.mxu0 %v1306
          %1703 = vmatpush.msra.mxu0 %v1305
          %1704 = vmatmul.f32.gmra.mxu0 %v1458
          %v1705 = vpop.f32.mrf.mxu0
          %v1706 = vadd.f32 0.0, %v1705
          %1707 = vmatmul.f32.gmra.mxu0 %v1459
          %v1708 = vpop.f32.mrf.mxu0
          %v1709 = vadd.f32 0.0, %v1708
          %1710 = vdwg.mxu0
          %1711 = vmatpush.msra.mxu0 %v1301
          %1712 = vmatpush.msra.mxu0 %v1300
          %1713 = vmatpush.msra.mxu0 %v1299
          %1714 = vmatpush.msra.mxu0 %v1298
          %1715 = vmatpush.msra.mxu0 %v1297
          %1716 = vmatpush.msra.mxu0 %v1296
          %1717 = vmatpush.msra.mxu0 %v1295
          %1718 = vmatpush.msra.mxu0 %v1294
          %1719 = vmatpush.msra.mxu0 %v1293
          %1720 = vmatpush.msra.mxu0 %v1292
          %1721 = vmatpush.msra.mxu0 %v1291
          %1722 = vmatpush.msra.mxu0 %v1290
          %1723 = vmatpush.msra.mxu0 %v1289
          %1724 = vmatpush.msra.mxu0 %v1288
          %1725 = vmatpush.msra.mxu0 %v1287
          %1726 = vmatpush.msra.mxu0 %v1286
          %1727 = vmatmul.f32.gmra.mxu0 %v1414
          %v1728 = vpop.f32.mrf.mxu0
          %v1729 = vadd.f32 %v1706, %v1728
          %1730 = vmatmul.f32.gmra.mxu0 %v1415
          %v1731 = vpop.f32.mrf.mxu0
          %v1732 = vadd.f32 %v1709, %v1731
          %1733 = vdwg.mxu0
          %1734 = vmatpush.msra.mxu0 %v1385
          %1735 = vmatpush.msra.mxu0 %v1384
          %1736 = vmatpush.msra.mxu0 %v1383
          %1737 = vmatpush.msra.mxu0 %v1382
          %1738 = vmatpush.msra.mxu0 %v1381
          %1739 = vmatpush.msra.mxu0 %v1380
          %1740 = vmatpush.msra.mxu0 %v1379
          %1741 = vmatpush.msra.mxu0 %v1378
          %1742 = vmatpush.msra.mxu0 %v1377
          %1743 = vmatpush.msra.mxu0 %v1376
          %1744 = vmatpush.msra.mxu0 %v1375
          %1745 = vmatpush.msra.mxu0 %v1374
          %1746 = vmatpush.msra.mxu0 %v1373
          %1747 = vmatpush.msra.mxu0 %v1372
          %1748 = vmatpush.msra.mxu0 %v1371
          %1749 = vmatpush.msra.mxu0 %v1370
          %1750 = vmatmul.f32.gmra.mxu0 %v1502
          %v1751 = vpop.f32.mrf.mxu0
          %v1752 = vadd.f32 0.0, %v1751
          %1753 = vmatmul.f32.gmra.mxu0 %v1503
          %v1754 = vpop.f32.mrf.mxu0
          %v1755 = vadd.f32 0.0, %v1754
          %1756 = vdwg.mxu0
          %v1757 = vadd.f32 %v1729, %v1752
          %v1758 = vadd.f32 %v1732, %v1755
          %1759 = vmatpush.msra.mxu0 %v1432
          %1760 = vmatpush.msra.mxu0 %v1431
          %1761 = vmatpush.msra.mxu0 %v1430
          %1762 = vmatpush.msra.mxu0 %v1429
          %1763 = vmatpush.msra.mxu0 %v1428
          %1764 = vmatpush.msra.mxu0 %v1427
          %1765 = vmatpush.msra.mxu0 %v1426
          %1766 = vmatpush.msra.mxu0 %v1425
          %1767 = vmatpush.msra.mxu0 %v1424
          %1768 = vmatpush.msra.mxu0 %v1423
          %1769 = vmatpush.msra.mxu0 %v1422
          %1770 = vmatpush.msra.mxu0 %v1421
          %1771 = vmatpush.msra.mxu0 %v1420
          %1772 = vmatpush.msra.mxu0 %v1419
          %1773 = vmatpush.msra.mxu0 %v1418
          %1774 = vmatpush.msra.mxu0 %v1417
          %1775 = vmatmul.f32.gmra.mxu0 %v1549
          %v1776 = vpop.f32.mrf.mxu0
          %v1777 = vadd.f32 0.0, %v1776
          %1778 = vmatmul.f32.gmra.mxu0 %v1550
          %v1779 = vpop.f32.mrf.mxu0
          %v1780 = vadd.f32 0.0, %v1779
          %1781 = vdwg.mxu0
          %v1782 = vadd.f32 %v1757, %v1777
          %v1783 = vadd.f32 %v1758, %v1780
          %1784 = vmatpush.msra.mxu0 %v1476
          %1785 = vmatpush.msra.mxu0 %v1475
          %1786 = vmatpush.msra.mxu0 %v1474
          %1787 = vmatpush.msra.mxu0 %v1473
          %1788 = vmatpush.msra.mxu0 %v1472
          %1789 = vmatpush.msra.mxu0 %v1471
          %1790 = vmatpush.msra.mxu0 %v1470
          %1791 = vmatpush.msra.mxu0 %v1469
          %1792 = vmatpush.msra.mxu0 %v1468
          %1793 = vmatpush.msra.mxu0 %v1467
          %1794 = vmatpush.msra.mxu0 %v1466
          %1795 = vmatpush.msra.mxu0 %v1465
          %1796 = vmatpush.msra.mxu0 %v1464
          %1797 = vmatpush.msra.mxu0 %v1463
          %1798 = vmatpush.msra.mxu0 %v1462
          %1799 = vmatpush.msra.mxu0 %v1461
          %1800 = vmatmul.f32.gmra.mxu0 %v1593
          %v1801 = vpop.f32.mrf.mxu0
          %v1802 = vadd.f32 0.0, %v1801
          %1803 = vmatmul.f32.gmra.mxu0 %v1594
          %v1804 = vpop.f32.mrf.mxu0
          %v1805 = vadd.f32 0.0, %v1804
          %1806 = vdwg.mxu0
          %v1807 = vadd.f32 %v1782, %v1802
          %v1808 = vadd.f32 %v1783, %v1805
          %1809 = vmatpush.msra.mxu0 %v1520
          %1810 = vmatpush.msra.mxu0 %v1519
          %1811 = vmatpush.msra.mxu0 %v1518
          %1812 = vmatpush.msra.mxu0 %v1517
          %1813 = vmatpush.msra.mxu0 %v1516
          %1814 = vmatpush.msra.mxu0 %v1515
          %1815 = vmatpush.msra.mxu0 %v1514
          %1816 = vmatpush.msra.mxu0 %v1513
          %1817 = vmatpush.msra.mxu0 %v1512
          %1818 = vmatpush.msra.mxu0 %v1511
          %1819 = vmatpush.msra.mxu0 %v1510
          %1820 = vmatpush.msra.mxu0 %v1509
          %1821 = vmatpush.msra.mxu0 %v1508
          %1822 = vmatpush.msra.mxu0 %v1507
          %1823 = vmatpush.msra.mxu0 %v1506
          %1824 = vmatpush.msra.mxu0 %v1505
          %1825 = vmatmul.f32.gmra.mxu0 %v1637
          %v1826 = vpop.f32.mrf.mxu0
          %v1827 = vadd.f32 0.0, %v1826
          %1828 = vmatmul.f32.gmra.mxu0 %v1638
          %v1829 = vpop.f32.mrf.mxu0
          %v1830 = vadd.f32 0.0, %v1829
          %1831 = vdwg.mxu0
          %v1832 = vadd.f32 %v1807, %v1827
          %v1833 = vadd.f32 %v1808, %v1830
          %s1834 = sadd.s32 %s1281, 3
          %s1835 = smul.u32 %s1834, 16
          %s1836 = scalar_lea.vmem [#allocation2], %s1835
          %v1837 = vld [vmem:[%s1836] sm:$0xff]
          %v1838 = vld [vmem:[%s1836 + $0x8] sm:$0x1f]
          %1839 = vmatpush.msra.mxu0 %v1567
          %1840 = vmatpush.msra.mxu0 %v1566
          %1841 = vmatpush.msra.mxu0 %v1565
          %1842 = vmatpush.msra.mxu0 %v1564
          %1843 = vmatpush.msra.mxu0 %v1563
          %1844 = vmatpush.msra.mxu0 %v1562
          %1845 = vmatpush.msra.mxu0 %v1561
          %1846 = vmatpush.msra.mxu0 %v1560
          %1847 = vmatpush.msra.mxu0 %v1559
          %1848 = vmatpush.msra.mxu0 %v1558
          %1849 = vmatpush.msra.mxu0 %v1557
          %1850 = vmatpush.msra.mxu0 %v1556
          %1851 = vmatpush.msra.mxu0 %v1555
          %1852 = vmatpush.msra.mxu0 %v1554
          %1853 = vmatpush.msra.mxu0 %v1553
          %1854 = vmatpush.msra.mxu0 %v1552
          %1855 = vmatmul.f32.gmra.mxu0 %v1837
          %v1856 = vpop.f32.mrf.mxu0
          %v1857 = vadd.f32 0.0, %v1856
          %1858 = vmatmul.f32.gmra.mxu0 %v1838
          %v1859 = vpop.f32.mrf.mxu0
          %v1860 = vadd.f32 0.0, %v1859
          %1861 = vdwg.mxu0
          %v1862 = vadd.f32 %v1832, %v1857
          %v1863 = vadd.f32 %v1833, %v1860
          %v1864 = vld [vmem:[%s1836 + $0x1] sm:$0xff]
          %v1865 = vld [vmem:[%s1836 + $0x9] sm:$0x1f]
          %1866 = vmatpush.msra.mxu0 %v1611
          %1867 = vmatpush.msra.mxu0 %v1610
          %1868 = vmatpush.msra.mxu0 %v1609
          %1869 = vmatpush.msra.mxu0 %v1608
          %1870 = vmatpush.msra.mxu0 %v1607
          %1871 = vmatpush.msra.mxu0 %v1606
          %1872 = vmatpush.msra.mxu0 %v1605
          %1873 = vmatpush.msra.mxu0 %v1604
          %1874 = vmatpush.msra.mxu0 %v1603
          %1875 = vmatpush.msra.mxu0 %v1602
          %1876 = vmatpush.msra.mxu0 %v1601
          %1877 = vmatpush.msra.mxu0 %v1600
          %1878 = vmatpush.msra.mxu0 %v1599
          %1879 = vmatpush.msra.mxu0 %v1598
          %1880 = vmatpush.msra.mxu0 %v1597
          %1881 = vmatpush.msra.mxu0 %v1596
          %1882 = vmatmul.f32.gmra.mxu0 %v1864
          %v1883 = vpop.f32.mrf.mxu0
          %v1884 = vadd.f32 0.0, %v1883
          %1885 = vmatmul.f32.gmra.mxu0 %v1865
          %v1886 = vpop.f32.mrf.mxu0
          %v1887 = vadd.f32 0.0, %v1886
          %1888 = vdwg.mxu0
          %v1889 = vadd.f32 %v1862, %v1884
          %v1890 = vadd.f32 %v1863, %v1887
          %v1891 = vld [vmem:[%s1836 + $0x2] sm:$0xff]
          %v1892 = vld [vmem:[%s1836 + $0xa] sm:$0x1f]
          %1893 = vmatpush.msra.mxu0 %v1655
          %1894 = vmatpush.msra.mxu0 %v1654
          %1895 = vmatpush.msra.mxu0 %v1653
          %1896 = vmatpush.msra.mxu0 %v1652
          %1897 = vmatpush.msra.mxu0 %v1651
          %1898 = vmatpush.msra.mxu0 %v1650
          %1899 = vmatpush.msra.mxu0 %v1649
          %1900 = vmatpush.msra.mxu0 %v1648
          %1901 = vmatpush.msra.mxu0 %v1647
          %1902 = vmatpush.msra.mxu0 %v1646
          %1903 = vmatpush.msra.mxu0 %v1645
          %1904 = vmatpush.msra.mxu0 %v1644
          %1905 = vmatpush.msra.mxu0 %v1643
          %1906 = vmatpush.msra.mxu0 %v1642
          %1907 = vmatpush.msra.mxu0 %v1641
          %1908 = vmatpush.msra.mxu0 %v1640
          %1909 = vmatmul.f32.gmra.mxu0 %v1891
          %v1910 = vpop.f32.mrf.mxu0
          %v1911 = vadd.f32 0.0, %v1910
          %1912 = vmatmul.f32.gmra.mxu0 %v1892
          %v1913 = vpop.f32.mrf.mxu0
          %v1914 = vadd.f32 0.0, %v1913
          %1915 = vdwg.mxu0
          %v1916 = vadd.f32 %v1889, %v1911
          %v1917 = vadd.f32 %v1890, %v1914
          %v1918 = vadd.f32 %v1916, %v1682
          %v1919 = vadd.f32 %v1917, %v1682
          %v1920 = vmax.f32 %v1918, 0.0
          %v1921 = vmax.f32 %v1919, 0.0
          %v1922 = vmax.f32 %v1686, %v1920
          %v1923 = vmax.f32 %v1687, %v1921
          %vm1924 = vcmask 105472
          %v1926 = vsel %vm1924, %v339, 0
          %vm1928 = vcmask 1044480
          %v1930 = vsel %vm1928, %v1923, 0
          %1932 = vmatpush.msra.mxu0 0.0
          %1933 = vmatpush.msra.mxu0 0.0
          %1934 = vmatpush.msra.mxu0 0.0
          %1935 = vmatpush.msra.mxu0 0.0
          %1936 = vmatpush.msra.mxu0 0.0
          %1937 = vmatpush.msra.mxu0 0.0
          %1938 = vmatpush.msra.mxu0 0.0
          %1939 = vmatpush.msra.mxu0 0.0
          %1940 = vmatpush.msra.mxu0 0.0
          %1941 = vmatpush.msra.mxu0 0.0
          %1942 = vmatpush.msra.mxu0 0.0
          %1943 = vmatpush.msra.mxu0 0.0
          %1944 = vmatpush.msra.mxu0 0.0
          %1945 = vmatpush.msra.mxu0 0.0
          %1946 = vmatpush.msra.mxu0 %v1930
          %1947 = vmatpush.msra.mxu0 %v1922
          %1948 = vmatmul.f32.gmra.mxu0 %v1926
          %v1949 = vpop.f32.mrf.mxu0
          %v1950 = vadd.f32 0.0, %v1949
          %1951 = vdwg.mxu0
          %v1953 = vsel %vm1924, %v345, 0
          %1955 = vmatpush.msra.mxu0 0.0
          %1956 = vmatpush.msra.mxu0 0.0
          %1957 = vmatpush.msra.mxu0 0.0
          %1958 = vmatpush.msra.mxu0 0.0
          %1959 = vmatpush.msra.mxu0 0.0
          %1960 = vmatpush.msra.mxu0 0.0
          %1961 = vmatpush.msra.mxu0 0.0
          %1962 = vmatpush.msra.mxu0 0.0
          %1963 = vmatpush.msra.mxu0 0.0
          %1964 = vmatpush.msra.mxu0 0.0
          %1965 = vmatpush.msra.mxu0 0.0
          %1966 = vmatpush.msra.mxu0 0.0
          %1967 = vmatpush.msra.mxu0 0.0
          %1968 = vmatpush.msra.mxu0 0.0
          %1969 = vmatpush.msra.mxu0 %v1930
          %1970 = vmatpush.msra.mxu0 %v1922
          %1971 = vmatmul.f32.gmra.mxu0 %v1953
          %v1972 = vpop.f32.mrf.mxu0
          %v1973 = vadd.f32 0.0, %v1972
          %1974 = vdwg.mxu0
          %v1975 = vmax.f32 %v1950, %v1973
          %s1976 = smul.u32 %s1276, 8
          %s1977 = scalar_lea.vmem [#allocation3], %s1976
          %1978 = vst [vmem:[%s1977] sm:$0x3f] %v1975
        $region68: #{net_forward.1} parent=55 // loop_footer
          %s1280 = sadd.s32 1, %s1276
        $region69: #{net_forward.1} parent=55 // loop_footer_branch
          %1275 = sbr.rel target = $region65
        $region70: #{net_forward.1} parent=55 // loop_exit
          _
        %v1979 = vld [vmem:[%s6] sm:$0x1]
        loop: start=0, step=1, limit=2
        $region71: #{net_forward.1} parent=55 // loop_pre_header
          _
        $region72: #{net_forward.1} parent=55 // loop_header
          %s1981 = sphi 0, %s1985
          %p1982 = scmp.ge.s32.totalorder %s1981, 2
        $region73: #{net_forward.1} parent=55 // loop_header_branch
          %1984 = sbr.rel (%p1982) target = $region77
        $region74: #{net_forward.1} parent=55 // loop_body
          %s1986 = smul.u32 %s1981, 2
          %s1987 = smul.u32 %s1986, 8
          %s1988 = scalar_lea.vmem [#allocation3], %s1987
          %v1989 = vld [vmem:[%s1988] sm:$0xf]
          %v1990 = vld [vmem:[%s5] sm:$0xff]
          %v1991 = vld [vmem:[%s5 + $0x8] sm:$0xff]
          %v1992 = vld [vmem:[%s5 + $0x10] sm:$0xff]
          %v1993 = vld [vmem:[%s5 + $0x18] sm:$0xff]
          %v1994 = vld [vmem:[%s5 + $0x20] sm:$0xff]
          %v1995 = vld [vmem:[%s5 + $0x28] sm:$0xff]
          %v1996 = vld [vmem:[%s5 + $0x30] sm:$0xff]
          %v1997 = vld [vmem:[%s5 + $0x38] sm:$0xff]
          %v1998 = vld [vmem:[%s5 + $0x40] sm:$0xff]
          %v1999 = vld [vmem:[%s5 + $0x48] sm:$0xff]
          %v2000 = vld [vmem:[%s5 + $0x50] sm:$0xff]
          %v2001 = vld [vmem:[%s5 + $0x58] sm:$0xff]
          %v2002 = vld [vmem:[%s5 + $0x60] sm:$0xff]
          %v2003 = vld [vmem:[%s5 + $0x68] sm:$0xff]
          %v2004 = vld [vmem:[%s5 + $0x70] sm:$0xff]
          %v2005 = vld [vmem:[%s5 + $0x78] sm:$0xff]
          %v2006 = vld [vmem:[%s1988 + $0x1] sm:$0xf]
          %s2007 = scalar_lea.vmem %s5, 128
          %v2008 = vld [vmem:[%s2007] sm:$0xff]
          %v2009 = vld [vmem:[%s2007 + $0x8] sm:$0xff]
          %v2010 = vld [vmem:[%s2007 + $0x10] sm:$0xff]
          %v2011 = vld [vmem:[%s2007 + $0x18] sm:$0xff]
          %v2012 = vld [vmem:[%s2007 + $0x20] sm:$0xff]
          %v2013 = vld [vmem:[%s2007 + $0x28] sm:$0xff]
          %v2014 = vld [vmem:[%s2007 + $0x30] sm:$0xff]
          %v2015 = vld [vmem:[%s2007 + $0x38] sm:$0xff]
          %v2016 = vld [vmem:[%s2007 + $0x40] sm:$0xff]
          %v2017 = vld [vmem:[%s2007 + $0x48] sm:$0xff]
          %v2018 = vld [vmem:[%s2007 + $0x50] sm:$0xff]
          %v2019 = vld [vmem:[%s2007 + $0x58] sm:$0xff]
          %v2020 = vld [vmem:[%s2007 + $0x60] sm:$0xff]
          %v2021 = vld [vmem:[%s2007 + $0x68] sm:$0xff]
          %v2022 = vld [vmem:[%s2007 + $0x70] sm:$0xff]
          %v2023 = vld [vmem:[%s2007 + $0x78] sm:$0xff]
          %2024 = vmatpush.msra.mxu0 %v2023
          %2025 = vmatpush.msra.mxu0 %v2022
          %2026 = vmatpush.msra.mxu0 %v2021
          %2027 = vmatpush.msra.mxu0 %v2020
          %2028 = vmatpush.msra.mxu0 %v2019
          %2029 = vmatpush.msra.mxu0 %v2018
          %2030 = vmatpush.msra.mxu0 %v2017
          %2031 = vmatpush.msra.mxu0 %v2016
          %2032 = vmatpush.msra.mxu0 %v2015
          %2033 = vmatpush.msra.mxu0 %v2014
          %2034 = vmatpush.msra.mxu0 %v2013
          %2035 = vmatpush.msra.mxu0 %v2012
          %2036 = vmatpush.msra.mxu0 %v2011
          %2037 = vmatpush.msra.mxu0 %v2010
          %2038 = vmatpush.msra.mxu0 %v2009
          %2039 = vmatpush.msra.mxu0 %v2008
          %2040 = vmatmul.f32.gmra.mxu0 %v2006
          %v2041 = vpop.f32.mrf.mxu0
          %v2042 = vadd.f32 0.0, %v2041
          %2043 = vdwg.mxu0
          %2044 = vmatpush.msra.mxu0 %v2005
          %2045 = vmatpush.msra.mxu0 %v2004
          %2046 = vmatpush.msra.mxu0 %v2003
          %2047 = vmatpush.msra.mxu0 %v2002
          %2048 = vmatpush.msra.mxu0 %v2001
          %2049 = vmatpush.msra.mxu0 %v2000
          %2050 = vmatpush.msra.mxu0 %v1999
          %2051 = vmatpush.msra.mxu0 %v1998
          %2052 = vmatpush.msra.mxu0 %v1997
          %2053 = vmatpush.msra.mxu0 %v1996
          %2054 = vmatpush.msra.mxu0 %v1995
          %2055 = vmatpush.msra.mxu0 %v1994
          %2056 = vmatpush.msra.mxu0 %v1993
          %2057 = vmatpush.msra.mxu0 %v1992
          %2058 = vmatpush.msra.mxu0 %v1991
          %2059 = vmatpush.msra.mxu0 %v1990
          %2060 = vmatmul.f32.gmra.mxu0 %v1989
          %v2061 = vpop.f32.mrf.mxu0
          %v2062 = vadd.f32 %v2042, %v2061
          %2063 = vdwg.mxu0
          %v2064 = vld [vmem:[%s1988 + $0x2] sm:$0xf]
          %s2065 = scalar_lea.vmem %s5, 256
          %v2066 = vld [vmem:[%s2065] sm:$0xff]
          %v2067 = vld [vmem:[%s2065 + $0x8] sm:$0xff]
          %v2068 = vld [vmem:[%s2065 + $0x10] sm:$0xff]
          %v2069 = vld [vmem:[%s2065 + $0x18] sm:$0xff]
          %v2070 = vld [vmem:[%s2065 + $0x20] sm:$0xff]
          %v2071 = vld [vmem:[%s2065 + $0x28] sm:$0xff]
          %v2072 = vld [vmem:[%s2065 + $0x30] sm:$0xff]
          %v2073 = vld [vmem:[%s2065 + $0x38] sm:$0xff]
          %v2074 = vld [vmem:[%s2065 + $0x40] sm:$0xff]
          %v2075 = vld [vmem:[%s2065 + $0x48] sm:$0xff]
          %v2076 = vld [vmem:[%s2065 + $0x50] sm:$0xff]
          %v2077 = vld [vmem:[%s2065 + $0x58] sm:$0xff]
          %v2078 = vld [vmem:[%s2065 + $0x60] sm:$0xff]
          %v2079 = vld [vmem:[%s2065 + $0x68] sm:$0xff]
          %v2080 = vld [vmem:[%s2065 + $0x70] sm:$0xff]
          %v2081 = vld [vmem:[%s2065 + $0x78] sm:$0xff]
          %2082 = vmatpush.msra.mxu0 %v2081
          %2083 = vmatpush.msra.mxu0 %v2080
          %2084 = vmatpush.msra.mxu0 %v2079
          %2085 = vmatpush.msra.mxu0 %v2078
          %2086 = vmatpush.msra.mxu0 %v2077
          %2087 = vmatpush.msra.mxu0 %v2076
          %2088 = vmatpush.msra.mxu0 %v2075
          %2089 = vmatpush.msra.mxu0 %v2074
          %2090 = vmatpush.msra.mxu0 %v2073
          %2091 = vmatpush.msra.mxu0 %v2072
          %2092 = vmatpush.msra.mxu0 %v2071
          %2093 = vmatpush.msra.mxu0 %v2070
          %2094 = vmatpush.msra.mxu0 %v2069
          %2095 = vmatpush.msra.mxu0 %v2068
          %2096 = vmatpush.msra.mxu0 %v2067
          %2097 = vmatpush.msra.mxu0 %v2066
          %2098 = vmatmul.f32.gmra.mxu0 %v2064
          %v2099 = vpop.f32.mrf.mxu0
          %v2100 = vadd.f32 0.0, %v2099
          %2101 = vdwg.mxu0
          %v2102 = vadd.f32 %v2062, %v2100
          %s2103 = sadd.s32 %s1986, 1
          %s2104 = smul.u32 %s2103, 8
          %s2105 = scalar_lea.vmem [#allocation3], %s2104
          %v2106 = vld [vmem:[%s2105] sm:$0xf]
          %s2107 = scalar_lea.vmem %s5, 384
          %v2108 = vld [vmem:[%s2107] sm:$0xff]
          %v2109 = vld [vmem:[%s2107 + $0x8] sm:$0xff]
          %v2110 = vld [vmem:[%s2107 + $0x10] sm:$0xff]
          %v2111 = vld [vmem:[%s2107 + $0x18] sm:$0xff]
          %v2112 = vld [vmem:[%s2107 + $0x20] sm:$0xff]
          %v2113 = vld [vmem:[%s2107 + $0x28] sm:$0xff]
          %v2114 = vld [vmem:[%s2107 + $0x30] sm:$0xff]
          %v2115 = vld [vmem:[%s2107 + $0x38] sm:$0xff]
          %v2116 = vld [vmem:[%s2107 + $0x40] sm:$0xff]
          %v2117 = vld [vmem:[%s2107 + $0x48] sm:$0xff]
          %v2118 = vld [vmem:[%s2107 + $0x50] sm:$0xff]
          %v2119 = vld [vmem:[%s2107 + $0x58] sm:$0xff]
          %v2120 = vld [vmem:[%s2107 + $0x60] sm:$0xff]
          %v2121 = vld [vmem:[%s2107 + $0x68] sm:$0xff]
          %v2122 = vld [vmem:[%s2107 + $0x70] sm:$0xff]
          %v2123 = vld [vmem:[%s2107 + $0x78] sm:$0xff]
          %2124 = vmatpush.msra.mxu0 %v2123
          %2125 = vmatpush.msra.mxu0 %v2122
          %2126 = vmatpush.msra.mxu0 %v2121
          %2127 = vmatpush.msra.mxu0 %v2120
          %2128 = vmatpush.msra.mxu0 %v2119
          %2129 = vmatpush.msra.mxu0 %v2118
          %2130 = vmatpush.msra.mxu0 %v2117
          %2131 = vmatpush.msra.mxu0 %v2116
          %2132 = vmatpush.msra.mxu0 %v2115
          %2133 = vmatpush.msra.mxu0 %v2114
          %2134 = vmatpush.msra.mxu0 %v2113
          %2135 = vmatpush.msra.mxu0 %v2112
          %2136 = vmatpush.msra.mxu0 %v2111
          %2137 = vmatpush.msra.mxu0 %v2110
          %2138 = vmatpush.msra.mxu0 %v2109
          %2139 = vmatpush.msra.mxu0 %v2108
          %2140 = vmatmul.f32.gmra.mxu0 %v2106
          %v2141 = vpop.f32.mrf.mxu0
          %v2142 = vadd.f32 0.0, %v2141
          %2143 = vdwg.mxu0
          %v2144 = vadd.f32 %v2102, %v2142
          %v2145 = vld [vmem:[%s2105 + $0x1] sm:$0xf]
          %s2146 = scalar_lea.vmem %s5, 512
          %v2147 = vld [vmem:[%s2146] sm:$0xff]
          %v2148 = vld [vmem:[%s2146 + $0x8] sm:$0xff]
          %v2149 = vld [vmem:[%s2146 + $0x10] sm:$0xff]
          %v2150 = vld [vmem:[%s2146 + $0x18] sm:$0xff]
          %v2151 = vld [vmem:[%s2146 + $0x20] sm:$0xff]
          %v2152 = vld [vmem:[%s2146 + $0x28] sm:$0xff]
          %v2153 = vld [vmem:[%s2146 + $0x30] sm:$0xff]
          %v2154 = vld [vmem:[%s2146 + $0x38] sm:$0xff]
          %v2155 = vld [vmem:[%s2146 + $0x40] sm:$0xff]
          %v2156 = vld [vmem:[%s2146 + $0x48] sm:$0xff]
          %v2157 = vld [vmem:[%s2146 + $0x50] sm:$0xff]
          %v2158 = vld [vmem:[%s2146 + $0x58] sm:$0xff]
          %v2159 = vld [vmem:[%s2146 + $0x60] sm:$0xff]
          %v2160 = vld [vmem:[%s2146 + $0x68] sm:$0xff]
          %v2161 = vld [vmem:[%s2146 + $0x70] sm:$0xff]
          %v2162 = vld [vmem:[%s2146 + $0x78] sm:$0xff]
          %2163 = vmatpush.msra.mxu0 %v2162
          %2164 = vmatpush.msra.mxu0 %v2161
          %2165 = vmatpush.msra.mxu0 %v2160
          %2166 = vmatpush.msra.mxu0 %v2159
          %2167 = vmatpush.msra.mxu0 %v2158
          %2168 = vmatpush.msra.mxu0 %v2157
          %2169 = vmatpush.msra.mxu0 %v2156
          %2170 = vmatpush.msra.mxu0 %v2155
          %2171 = vmatpush.msra.mxu0 %v2154
          %2172 = vmatpush.msra.mxu0 %v2153
          %2173 = vmatpush.msra.mxu0 %v2152
          %2174 = vmatpush.msra.mxu0 %v2151
          %2175 = vmatpush.msra.mxu0 %v2150
          %2176 = vmatpush.msra.mxu0 %v2149
          %2177 = vmatpush.msra.mxu0 %v2148
          %2178 = vmatpush.msra.mxu0 %v2147
          %2179 = vmatmul.f32.gmra.mxu0 %v2145
          %v2180 = vpop.f32.mrf.mxu0
          %v2181 = vadd.f32 0.0, %v2180
          %2182 = vdwg.mxu0
          %v2183 = vadd.f32 %v2144, %v2181
          %v2184 = vld [vmem:[%s2105 + $0x2] sm:$0xf]
          %s2185 = scalar_lea.vmem %s5, 640
          %v2186 = vld [vmem:[%s2185] sm:$0xff]
          %v2187 = vld [vmem:[%s2185 + $0x8] sm:$0xff]
          %v2188 = vld [vmem:[%s2185 + $0x10] sm:$0xff]
          %v2189 = vld [vmem:[%s2185 + $0x18] sm:$0xff]
          %v2190 = vld [vmem:[%s2185 + $0x20] sm:$0xff]
          %v2191 = vld [vmem:[%s2185 + $0x28] sm:$0xff]
          %v2192 = vld [vmem:[%s2185 + $0x30] sm:$0xff]
          %v2193 = vld [vmem:[%s2185 + $0x38] sm:$0xff]
          %v2194 = vld [vmem:[%s2185 + $0x40] sm:$0xff]
          %v2195 = vld [vmem:[%s2185 + $0x48] sm:$0xff]
          %v2196 = vld [vmem:[%s2185 + $0x50] sm:$0xff]
          %v2197 = vld [vmem:[%s2185 + $0x58] sm:$0xff]
          %v2198 = vld [vmem:[%s2185 + $0x60] sm:$0xff]
          %v2199 = vld [vmem:[%s2185 + $0x68] sm:$0xff]
          %v2200 = vld [vmem:[%s2185 + $0x70] sm:$0xff]
          %v2201 = vld [vmem:[%s2185 + $0x78] sm:$0xff]
          %2202 = vmatpush.msra.mxu0 %v2201
          %2203 = vmatpush.msra.mxu0 %v2200
          %2204 = vmatpush.msra.mxu0 %v2199
          %2205 = vmatpush.msra.mxu0 %v2198
          %2206 = vmatpush.msra.mxu0 %v2197
          %2207 = vmatpush.msra.mxu0 %v2196
          %2208 = vmatpush.msra.mxu0 %v2195
          %2209 = vmatpush.msra.mxu0 %v2194
          %2210 = vmatpush.msra.mxu0 %v2193
          %2211 = vmatpush.msra.mxu0 %v2192
          %2212 = vmatpush.msra.mxu0 %v2191
          %2213 = vmatpush.msra.mxu0 %v2190
          %2214 = vmatpush.msra.mxu0 %v2189
          %2215 = vmatpush.msra.mxu0 %v2188
          %2216 = vmatpush.msra.mxu0 %v2187
          %2217 = vmatpush.msra.mxu0 %v2186
          %2218 = vmatmul.f32.gmra.mxu0 %v2184
          %v2219 = vpop.f32.mrf.mxu0
          %v2220 = vadd.f32 0.0, %v2219
          %2221 = vdwg.mxu0
          %v2222 = vadd.f32 %v2183, %v2220
          %s2223 = sadd.s32 %s1986, 2
          %s2224 = smul.u32 %s2223, 8
          %s2225 = scalar_lea.vmem [#allocation3], %s2224
          %v2226 = vld [vmem:[%s2225] sm:$0xf]
          %s2227 = scalar_lea.vmem %s5, 768
          %v2228 = vld [vmem:[%s2227] sm:$0xff]
          %v2229 = vld [vmem:[%s2227 + $0x8] sm:$0xff]
          %v2230 = vld [vmem:[%s2227 + $0x10] sm:$0xff]
          %v2231 = vld [vmem:[%s2227 + $0x18] sm:$0xff]
          %v2232 = vld [vmem:[%s2227 + $0x20] sm:$0xff]
          %v2233 = vld [vmem:[%s2227 + $0x28] sm:$0xff]
          %v2234 = vld [vmem:[%s2227 + $0x30] sm:$0xff]
          %v2235 = vld [vmem:[%s2227 + $0x38] sm:$0xff]
          %v2236 = vld [vmem:[%s2227 + $0x40] sm:$0xff]
          %v2237 = vld [vmem:[%s2227 + $0x48] sm:$0xff]
          %v2238 = vld [vmem:[%s2227 + $0x50] sm:$0xff]
          %v2239 = vld [vmem:[%s2227 + $0x58] sm:$0xff]
          %v2240 = vld [vmem:[%s2227 + $0x60] sm:$0xff]
          %v2241 = vld [vmem:[%s2227 + $0x68] sm:$0xff]
          %v2242 = vld [vmem:[%s2227 + $0x70] sm:$0xff]
          %v2243 = vld [vmem:[%s2227 + $0x78] sm:$0xff]
          %2244 = vmatpush.msra.mxu0 %v2243
          %2245 = vmatpush.msra.mxu0 %v2242
          %2246 = vmatpush.msra.mxu0 %v2241
          %2247 = vmatpush.msra.mxu0 %v2240
          %2248 = vmatpush.msra.mxu0 %v2239
          %2249 = vmatpush.msra.mxu0 %v2238
          %2250 = vmatpush.msra.mxu0 %v2237
          %2251 = vmatpush.msra.mxu0 %v2236
          %2252 = vmatpush.msra.mxu0 %v2235
          %2253 = vmatpush.msra.mxu0 %v2234
          %2254 = vmatpush.msra.mxu0 %v2233
          %2255 = vmatpush.msra.mxu0 %v2232
          %2256 = vmatpush.msra.mxu0 %v2231
          %2257 = vmatpush.msra.mxu0 %v2230
          %2258 = vmatpush.msra.mxu0 %v2229
          %2259 = vmatpush.msra.mxu0 %v2228
          %2260 = vmatmul.f32.gmra.mxu0 %v2226
          %v2261 = vpop.f32.mrf.mxu0
          %v2262 = vadd.f32 0.0, %v2261
          %2263 = vdwg.mxu0
          %v2264 = vadd.f32 %v2222, %v2262
          %v2265 = vld [vmem:[%s2225 + $0x1] sm:$0xf]
          %s2266 = scalar_lea.vmem %s5, 896
          %v2267 = vld [vmem:[%s2266] sm:$0xff]
          %v2268 = vld [vmem:[%s2266 + $0x8] sm:$0xff]
          %v2269 = vld [vmem:[%s2266 + $0x10] sm:$0xff]
          %v2270 = vld [vmem:[%s2266 + $0x18] sm:$0xff]
          %v2271 = vld [vmem:[%s2266 + $0x20] sm:$0xff]
          %v2272 = vld [vmem:[%s2266 + $0x28] sm:$0xff]
          %v2273 = vld [vmem:[%s2266 + $0x30] sm:$0xff]
          %v2274 = vld [vmem:[%s2266 + $0x38] sm:$0xff]
          %v2275 = vld [vmem:[%s2266 + $0x40] sm:$0xff]
          %v2276 = vld [vmem:[%s2266 + $0x48] sm:$0xff]
          %v2277 = vld [vmem:[%s2266 + $0x50] sm:$0xff]
          %v2278 = vld [vmem:[%s2266 + $0x58] sm:$0xff]
          %v2279 = vld [vmem:[%s2266 + $0x60] sm:$0xff]
          %v2280 = vld [vmem:[%s2266 + $0x68] sm:$0xff]
          %v2281 = vld [vmem:[%s2266 + $0x70] sm:$0xff]
          %v2282 = vld [vmem:[%s2266 + $0x78] sm:$0xff]
          %2283 = vmatpush.msra.mxu0 %v2282
          %2284 = vmatpush.msra.mxu0 %v2281
          %2285 = vmatpush.msra.mxu0 %v2280
          %2286 = vmatpush.msra.mxu0 %v2279
          %2287 = vmatpush.msra.mxu0 %v2278
          %2288 = vmatpush.msra.mxu0 %v2277
          %2289 = vmatpush.msra.mxu0 %v2276
          %2290 = vmatpush.msra.mxu0 %v2275
          %2291 = vmatpush.msra.mxu0 %v2274
          %2292 = vmatpush.msra.mxu0 %v2273
          %2293 = vmatpush.msra.mxu0 %v2272
          %2294 = vmatpush.msra.mxu0 %v2271
          %2295 = vmatpush.msra.mxu0 %v2270
          %2296 = vmatpush.msra.mxu0 %v2269
          %2297 = vmatpush.msra.mxu0 %v2268
          %2298 = vmatpush.msra.mxu0 %v2267
          %2299 = vmatmul.f32.gmra.mxu0 %v2265
          %v2300 = vpop.f32.mrf.mxu0
          %v2301 = vadd.f32 0.0, %v2300
          %2302 = vdwg.mxu0
          %v2303 = vadd.f32 %v2264, %v2301
          %v2304 = vld [vmem:[%s2225 + $0x2] sm:$0xf]
          %s2305 = scalar_lea.vmem %s5, 1024
          %v2306 = vld [vmem:[%s2305] sm:$0xff]
          %v2307 = vld [vmem:[%s2305 + $0x8] sm:$0xff]
          %v2308 = vld [vmem:[%s2305 + $0x10] sm:$0xff]
          %v2309 = vld [vmem:[%s2305 + $0x18] sm:$0xff]
          %v2310 = vld [vmem:[%s2305 + $0x20] sm:$0xff]
          %v2311 = vld [vmem:[%s2305 + $0x28] sm:$0xff]
          %v2312 = vld [vmem:[%s2305 + $0x30] sm:$0xff]
          %v2313 = vld [vmem:[%s2305 + $0x38] sm:$0xff]
          %v2314 = vld [vmem:[%s2305 + $0x40] sm:$0xff]
          %v2315 = vld [vmem:[%s2305 + $0x48] sm:$0xff]
          %v2316 = vld [vmem:[%s2305 + $0x50] sm:$0xff]
          %v2317 = vld [vmem:[%s2305 + $0x58] sm:$0xff]
          %v2318 = vld [vmem:[%s2305 + $0x60] sm:$0xff]
          %v2319 = vld [vmem:[%s2305 + $0x68] sm:$0xff]
          %v2320 = vld [vmem:[%s2305 + $0x70] sm:$0xff]
          %v2321 = vld [vmem:[%s2305 + $0x78] sm:$0xff]
          %2322 = vmatpush.msra.mxu0 %v2321
          %2323 = vmatpush.msra.mxu0 %v2320
          %2324 = vmatpush.msra.mxu0 %v2319
          %2325 = vmatpush.msra.mxu0 %v2318
          %2326 = vmatpush.msra.mxu0 %v2317
          %2327 = vmatpush.msra.mxu0 %v2316
          %2328 = vmatpush.msra.mxu0 %v2315
          %2329 = vmatpush.msra.mxu0 %v2314
          %2330 = vmatpush.msra.mxu0 %v2313
          %2331 = vmatpush.msra.mxu0 %v2312
          %2332 = vmatpush.msra.mxu0 %v2311
          %2333 = vmatpush.msra.mxu0 %v2310
          %2334 = vmatpush.msra.mxu0 %v2309
          %2335 = vmatpush.msra.mxu0 %v2308
          %2336 = vmatpush.msra.mxu0 %v2307
          %2337 = vmatpush.msra.mxu0 %v2306
          %2338 = vmatmul.f32.gmra.mxu0 %v2304
          %v2339 = vpop.f32.mrf.mxu0
          %v2340 = vadd.f32 0.0, %v2339
          %2341 = vdwg.mxu0
          %v2342 = vadd.f32 %v2303, %v2340
          %v2344 = vperm.slane %v1979, 0
          %v2346 = vadd.f32 %v2342, %v2344
          %v2347 = vmax.f32 %v2346, 0.0
          %2348 = vmatpush.msra.mxu0 %v2023
          %2349 = vmatpush.msra.mxu0 %v2022
          %2350 = vmatpush.msra.mxu0 %v2021
          %2351 = vmatpush.msra.mxu0 %v2020
          %2352 = vmatpush.msra.mxu0 %v2019
          %2353 = vmatpush.msra.mxu0 %v2018
          %2354 = vmatpush.msra.mxu0 %v2017
          %2355 = vmatpush.msra.mxu0 %v2016
          %2356 = vmatpush.msra.mxu0 %v2015
          %2357 = vmatpush.msra.mxu0 %v2014
          %2358 = vmatpush.msra.mxu0 %v2013
          %2359 = vmatpush.msra.mxu0 %v2012
          %2360 = vmatpush.msra.mxu0 %v2011
          %2361 = vmatpush.msra.mxu0 %v2010
          %2362 = vmatpush.msra.mxu0 %v2009
          %2363 = vmatpush.msra.mxu0 %v2008
          %2364 = vmatmul.f32.gmra.mxu0 %v2145
          %v2365 = vpop.f32.mrf.mxu0
          %v2366 = vadd.f32 0.0, %v2365
          %2367 = vdwg.mxu0
          %2368 = vmatpush.msra.mxu0 %v2005
          %2369 = vmatpush.msra.mxu0 %v2004
          %2370 = vmatpush.msra.mxu0 %v2003
          %2371 = vmatpush.msra.mxu0 %v2002
          %2372 = vmatpush.msra.mxu0 %v2001
          %2373 = vmatpush.msra.mxu0 %v2000
          %2374 = vmatpush.msra.mxu0 %v1999
          %2375 = vmatpush.msra.mxu0 %v1998
          %2376 = vmatpush.msra.mxu0 %v1997
          %2377 = vmatpush.msra.mxu0 %v1996
          %2378 = vmatpush.msra.mxu0 %v1995
          %2379 = vmatpush.msra.mxu0 %v1994
          %2380 = vmatpush.msra.mxu0 %v1993
          %2381 = vmatpush.msra.mxu0 %v1992
          %2382 = vmatpush.msra.mxu0 %v1991
          %2383 = vmatpush.msra.mxu0 %v1990
          %2384 = vmatmul.f32.gmra.mxu0 %v2106
          %v2385 = vpop.f32.mrf.mxu0
          %v2386 = vadd.f32 %v2366, %v2385
          %2387 = vdwg.mxu0
          %2388 = vmatpush.msra.mxu0 %v2081
          %2389 = vmatpush.msra.mxu0 %v2080
          %2390 = vmatpush.msra.mxu0 %v2079
          %2391 = vmatpush.msra.mxu0 %v2078
          %2392 = vmatpush.msra.mxu0 %v2077
          %2393 = vmatpush.msra.mxu0 %v2076
          %2394 = vmatpush.msra.mxu0 %v2075
          %2395 = vmatpush.msra.mxu0 %v2074
          %2396 = vmatpush.msra.mxu0 %v2073
          %2397 = vmatpush.msra.mxu0 %v2072
          %2398 = vmatpush.msra.mxu0 %v2071
          %2399 = vmatpush.msra.mxu0 %v2070
          %2400 = vmatpush.msra.mxu0 %v2069
          %2401 = vmatpush.msra.mxu0 %v2068
          %2402 = vmatpush.msra.mxu0 %v2067
          %2403 = vmatpush.msra.mxu0 %v2066
          %2404 = vmatmul.f32.gmra.mxu0 %v2184
          %v2405 = vpop.f32.mrf.mxu0
          %v2406 = vadd.f32 0.0, %v2405
          %2407 = vdwg.mxu0
          %v2408 = vadd.f32 %v2386, %v2406
          %2409 = vmatpush.msra.mxu0 %v2123
          %2410 = vmatpush.msra.mxu0 %v2122
          %2411 = vmatpush.msra.mxu0 %v2121
          %2412 = vmatpush.msra.mxu0 %v2120
          %2413 = vmatpush.msra.mxu0 %v2119
          %2414 = vmatpush.msra.mxu0 %v2118
          %2415 = vmatpush.msra.mxu0 %v2117
          %2416 = vmatpush.msra.mxu0 %v2116
          %2417 = vmatpush.msra.mxu0 %v2115
          %2418 = vmatpush.msra.mxu0 %v2114
          %2419 = vmatpush.msra.mxu0 %v2113
          %2420 = vmatpush.msra.mxu0 %v2112
          %2421 = vmatpush.msra.mxu0 %v2111
          %2422 = vmatpush.msra.mxu0 %v2110
          %2423 = vmatpush.msra.mxu0 %v2109
          %2424 = vmatpush.msra.mxu0 %v2108
          %2425 = vmatmul.f32.gmra.mxu0 %v2226
          %v2426 = vpop.f32.mrf.mxu0
          %v2427 = vadd.f32 0.0, %v2426
          %2428 = vdwg.mxu0
          %v2429 = vadd.f32 %v2408, %v2427
          %2430 = vmatpush.msra.mxu0 %v2162
          %2431 = vmatpush.msra.mxu0 %v2161
          %2432 = vmatpush.msra.mxu0 %v2160
          %2433 = vmatpush.msra.mxu0 %v2159
          %2434 = vmatpush.msra.mxu0 %v2158
          %2435 = vmatpush.msra.mxu0 %v2157
          %2436 = vmatpush.msra.mxu0 %v2156
          %2437 = vmatpush.msra.mxu0 %v2155
          %2438 = vmatpush.msra.mxu0 %v2154
          %2439 = vmatpush.msra.mxu0 %v2153
          %2440 = vmatpush.msra.mxu0 %v2152
          %2441 = vmatpush.msra.mxu0 %v2151
          %2442 = vmatpush.msra.mxu0 %v2150
          %2443 = vmatpush.msra.mxu0 %v2149
          %2444 = vmatpush.msra.mxu0 %v2148
          %2445 = vmatpush.msra.mxu0 %v2147
          %2446 = vmatmul.f32.gmra.mxu0 %v2265
          %v2447 = vpop.f32.mrf.mxu0
          %v2448 = vadd.f32 0.0, %v2447
          %2449 = vdwg.mxu0
          %v2450 = vadd.f32 %v2429, %v2448
          %2451 = vmatpush.msra.mxu0 %v2201
          %2452 = vmatpush.msra.mxu0 %v2200
          %2453 = vmatpush.msra.mxu0 %v2199
          %2454 = vmatpush.msra.mxu0 %v2198
          %2455 = vmatpush.msra.mxu0 %v2197
          %2456 = vmatpush.msra.mxu0 %v2196
          %2457 = vmatpush.msra.mxu0 %v2195
          %2458 = vmatpush.msra.mxu0 %v2194
          %2459 = vmatpush.msra.mxu0 %v2193
          %2460 = vmatpush.msra.mxu0 %v2192
          %2461 = vmatpush.msra.mxu0 %v2191
          %2462 = vmatpush.msra.mxu0 %v2190
          %2463 = vmatpush.msra.mxu0 %v2189
          %2464 = vmatpush.msra.mxu0 %v2188
          %2465 = vmatpush.msra.mxu0 %v2187
          %2466 = vmatpush.msra.mxu0 %v2186
          %2467 = vmatmul.f32.gmra.mxu0 %v2304
          %v2468 = vpop.f32.mrf.mxu0
          %v2469 = vadd.f32 0.0, %v2468
          %2470 = vdwg.mxu0
          %v2471 = vadd.f32 %v2450, %v2469
          %s2472 = sadd.s32 %s1986, 3
          %s2473 = smul.u32 %s2472, 8
          %s2474 = scalar_lea.vmem [#allocation3], %s2473
          %v2475 = vld [vmem:[%s2474] sm:$0xf]
          %2476 = vmatpush.msra.mxu0 %v2243
          %2477 = vmatpush.msra.mxu0 %v2242
          %2478 = vmatpush.msra.mxu0 %v2241
          %2479 = vmatpush.msra.mxu0 %v2240
          %2480 = vmatpush.msra.mxu0 %v2239
          %2481 = vmatpush.msra.mxu0 %v2238
          %2482 = vmatpush.msra.mxu0 %v2237
          %2483 = vmatpush.msra.mxu0 %v2236
          %2484 = vmatpush.msra.mxu0 %v2235
          %2485 = vmatpush.msra.mxu0 %v2234
          %2486 = vmatpush.msra.mxu0 %v2233
          %2487 = vmatpush.msra.mxu0 %v2232
          %2488 = vmatpush.msra.mxu0 %v2231
          %2489 = vmatpush.msra.mxu0 %v2230
          %2490 = vmatpush.msra.mxu0 %v2229
          %2491 = vmatpush.msra.mxu0 %v2228
          %2492 = vmatmul.f32.gmra.mxu0 %v2475
          %v2493 = vpop.f32.mrf.mxu0
          %v2494 = vadd.f32 0.0, %v2493
          %2495 = vdwg.mxu0
          %v2496 = vadd.f32 %v2471, %v2494
          %v2497 = vld [vmem:[%s2474 + $0x1] sm:$0xf]
          %2498 = vmatpush.msra.mxu0 %v2282
          %2499 = vmatpush.msra.mxu0 %v2281
          %2500 = vmatpush.msra.mxu0 %v2280
          %2501 = vmatpush.msra.mxu0 %v2279
          %2502 = vmatpush.msra.mxu0 %v2278
          %2503 = vmatpush.msra.mxu0 %v2277
          %2504 = vmatpush.msra.mxu0 %v2276
          %2505 = vmatpush.msra.mxu0 %v2275
          %2506 = vmatpush.msra.mxu0 %v2274
          %2507 = vmatpush.msra.mxu0 %v2273
          %2508 = vmatpush.msra.mxu0 %v2272
          %2509 = vmatpush.msra.mxu0 %v2271
          %2510 = vmatpush.msra.mxu0 %v2270
          %2511 = vmatpush.msra.mxu0 %v2269
          %2512 = vmatpush.msra.mxu0 %v2268
          %2513 = vmatpush.msra.mxu0 %v2267
          %2514 = vmatmul.f32.gmra.mxu0 %v2497
          %v2515 = vpop.f32.mrf.mxu0
          %v2516 = vadd.f32 0.0, %v2515
          %2517 = vdwg.mxu0
          %v2518 = vadd.f32 %v2496, %v2516
          %v2519 = vld [vmem:[%s2474 + $0x2] sm:$0xf]
          %2520 = vmatpush.msra.mxu0 %v2321
          %2521 = vmatpush.msra.mxu0 %v2320
          %2522 = vmatpush.msra.mxu0 %v2319
          %2523 = vmatpush.msra.mxu0 %v2318
          %2524 = vmatpush.msra.mxu0 %v2317
          %2525 = vmatpush.msra.mxu0 %v2316
          %2526 = vmatpush.msra.mxu0 %v2315
          %2527 = vmatpush.msra.mxu0 %v2314
          %2528 = vmatpush.msra.mxu0 %v2313
          %2529 = vmatpush.msra.mxu0 %v2312
          %2530 = vmatpush.msra.mxu0 %v2311
          %2531 = vmatpush.msra.mxu0 %v2310
          %2532 = vmatpush.msra.mxu0 %v2309
          %2533 = vmatpush.msra.mxu0 %v2308
          %2534 = vmatpush.msra.mxu0 %v2307
          %2535 = vmatpush.msra.mxu0 %v2306
          %2536 = vmatmul.f32.gmra.mxu0 %v2519
          %v2537 = vpop.f32.mrf.mxu0
          %v2538 = vadd.f32 0.0, %v2537
          %2539 = vdwg.mxu0
          %v2540 = vadd.f32 %v2518, %v2538
          %v2541 = vadd.f32 %v2540, %v2344
          %v2542 = vmax.f32 %v2541, 0.0
          %v2543 = vmax.f32 %v2347, %v2542
          %vm2544 = vcmask 31744
          %v2546 = vsel %vm2544, %v339, 0
          %vm2548 = vcmask 1043456
          %v2550 = vsel %vm2548, %v2543, 0
          %2552 = vmatpush.msra.mxu0 0.0
          %2553 = vmatpush.msra.mxu0 0.0
          %2554 = vmatpush.msra.mxu0 0.0
          %2555 = vmatpush.msra.mxu0 0.0
          %2556 = vmatpush.msra.mxu0 0.0
          %2557 = vmatpush.msra.mxu0 0.0
          %2558 = vmatpush.msra.mxu0 0.0
          %2559 = vmatpush.msra.mxu0 0.0
          %2560 = vmatpush.msra.mxu0 0.0
          %2561 = vmatpush.msra.mxu0 0.0
          %2562 = vmatpush.msra.mxu0 0.0
          %2563 = vmatpush.msra.mxu0 0.0
          %2564 = vmatpush.msra.mxu0 0.0
          %2565 = vmatpush.msra.mxu0 0.0
          %2566 = vmatpush.msra.mxu0 0.0
          %2567 = vmatpush.msra.mxu0 %v2550
          %2568 = vmatmul.f32.gmra.mxu0 %v2546
          %v2569 = vpop.f32.mrf.mxu0
          %v2570 = vadd.f32 0.0, %v2569
          %2571 = vdwg.mxu0
          %v2573 = vsel %vm2544, %v345, 0
          %2575 = vmatpush.msra.mxu0 0.0
          %2576 = vmatpush.msra.mxu0 0.0
          %2577 = vmatpush.msra.mxu0 0.0
          %2578 = vmatpush.msra.mxu0 0.0
          %2579 = vmatpush.msra.mxu0 0.0
          %2580 = vmatpush.msra.mxu0 0.0
          %2581 = vmatpush.msra.mxu0 0.0
          %2582 = vmatpush.msra.mxu0 0.0
          %2583 = vmatpush.msra.mxu0 0.0
          %2584 = vmatpush.msra.mxu0 0.0
          %2585 = vmatpush.msra.mxu0 0.0
          %2586 = vmatpush.msra.mxu0 0.0
          %2587 = vmatpush.msra.mxu0 0.0
          %2588 = vmatpush.msra.mxu0 0.0
          %2589 = vmatpush.msra.mxu0 0.0
          %2590 = vmatpush.msra.mxu0 %v2550
          %2591 = vmatmul.f32.gmra.mxu0 %v2573
          %v2592 = vpop.f32.mrf.mxu0
          %v2593 = vadd.f32 0.0, %v2592
          %2594 = vdwg.mxu0
          %v2595 = vmax.f32 %v2570, %v2593
          %s2596 = scalar_lea.vmem [#allocation4], %s1986
          %2597 = vst [vmem:[%s2596] sm:$0x3] %v2595
        $region75: #{net_forward.1} parent=55 // loop_footer
          %s1985 = sadd.s32 1, %s1981
        $region76: #{net_forward.1} parent=55 // loop_footer_branch
          %1980 = sbr.rel target = $region72
        $region77: #{net_forward.1} parent=55 // loop_exit
          _
        %v2598 = vld [vmem:[%s8] sm:$0x1]
        %v2599 = vld [vmem:[#allocation4] sm:$0x1]
        %v2600 = vld [vmem:[%s7] sm:$0xff]
        %v2601 = vld [vmem:[%s7 + $0x8] sm:$0xff]
        %v2602 = vld [vmem:[%s7 + $0x10] sm:$0xff]
        %v2603 = vld [vmem:[%s7 + $0x18] sm:$0xff]
        %v2604 = vld [vmem:[%s7 + $0x20] sm:$0xff]
        %v2605 = vld [vmem:[%s7 + $0x28] sm:$0xff]
        %v2606 = vld [vmem:[%s7 + $0x30] sm:$0xff]
        %v2607 = vld [vmem:[%s7 + $0x38] sm:$0xff]
        %v2608 = vld [vmem:[%s7 + $0x40] sm:$0xff]
        %v2609 = vld [vmem:[%s7 + $0x48] sm:$0xff]
        %v2610 = vld [vmem:[%s7 + $0x50] sm:$0xff]
        %v2611 = vld [vmem:[%s7 + $0x58] sm:$0xff]
        %v2612 = vld [vmem:[%s7 + $0x60] sm:$0xff]
        %v2613 = vld [vmem:[%s7 + $0x68] sm:$0xff]
        %v2614 = vld [vmem:[%s7 + $0x70] sm:$0xff]
        %v2615 = vld [vmem:[%s7 + $0x78] sm:$0xff]
        %2616 = vmatpush.msra.mxu0 %v2615
        %2617 = vmatpush.msra.mxu0 %v2614
        %2618 = vmatpush.msra.mxu0 %v2613
        %2619 = vmatpush.msra.mxu0 %v2612
        %2620 = vmatpush.msra.mxu0 %v2611
        %2621 = vmatpush.msra.mxu0 %v2610
        %2622 = vmatpush.msra.mxu0 %v2609
        %2623 = vmatpush.msra.mxu0 %v2608
        %2624 = vmatpush.msra.mxu0 %v2607
        %2625 = vmatpush.msra.mxu0 %v2606
        %2626 = vmatpush.msra.mxu0 %v2605
        %2627 = vmatpush.msra.mxu0 %v2604
        %2628 = vmatpush.msra.mxu0 %v2603
        %2629 = vmatpush.msra.mxu0 %v2602
        %2630 = vmatpush.msra.mxu0 %v2601
        %2631 = vmatpush.msra.mxu0 %v2600
        %2632 = vmatmul.f32.gmra.mxu0 %v2599
        %v2633 = vpop.f32.mrf.mxu0
        %v2634 = vadd.f32 0.0, %v2633
        %2635 = vdwg.mxu0
        %v2636 = vadd.f32 %v2598, %v2634
        %v2637 = vld [vmem:[#allocation4 + $0x1] sm:$0x1]
        %s2638 = scalar_lea.vmem %s7, 128
        %v2639 = vld [vmem:[%s2638] sm:$0xff]
        %v2640 = vld [vmem:[%s2638 + $0x8] sm:$0xff]
        %v2641 = vld [vmem:[%s2638 + $0x10] sm:$0xff]
        %v2642 = vld [vmem:[%s2638 + $0x18] sm:$0xff]
        %v2643 = vld [vmem:[%s2638 + $0x20] sm:$0xff]
        %v2644 = vld [vmem:[%s2638 + $0x28] sm:$0xff]
        %v2645 = vld [vmem:[%s2638 + $0x30] sm:$0xff]
        %v2646 = vld [vmem:[%s2638 + $0x38] sm:$0xff]
        %v2647 = vld [vmem:[%s2638 + $0x40] sm:$0xff]
        %v2648 = vld [vmem:[%s2638 + $0x48] sm:$0xff]
        %v2649 = vld [vmem:[%s2638 + $0x50] sm:$0xff]
        %v2650 = vld [vmem:[%s2638 + $0x58] sm:$0xff]
        %v2651 = vld [vmem:[%s2638 + $0x60] sm:$0xff]
        %v2652 = vld [vmem:[%s2638 + $0x68] sm:$0xff]
        %v2653 = vld [vmem:[%s2638 + $0x70] sm:$0xff]
        %v2654 = vld [vmem:[%s2638 + $0x78] sm:$0xff]
        %2655 = vmatpush.msra.mxu0 %v2654
        %2656 = vmatpush.msra.mxu0 %v2653
        %2657 = vmatpush.msra.mxu0 %v2652
        %2658 = vmatpush.msra.mxu0 %v2651
        %2659 = vmatpush.msra.mxu0 %v2650
        %2660 = vmatpush.msra.mxu0 %v2649
        %2661 = vmatpush.msra.mxu0 %v2648
        %2662 = vmatpush.msra.mxu0 %v2647
        %2663 = vmatpush.msra.mxu0 %v2646
        %2664 = vmatpush.msra.mxu0 %v2645
        %2665 = vmatpush.msra.mxu0 %v2644
        %2666 = vmatpush.msra.mxu0 %v2643
        %2667 = vmatpush.msra.mxu0 %v2642
        %2668 = vmatpush.msra.mxu0 %v2641
        %2669 = vmatpush.msra.mxu0 %v2640
        %2670 = vmatpush.msra.mxu0 %v2639
        %2671 = vmatmul.f32.gmra.mxu0 %v2637
        %v2672 = vpop.f32.mrf.mxu0
        %v2673 = vadd.f32 0.0, %v2672
        %2674 = vdwg.mxu0
        %v2675 = vadd.f32 %v2636, %v2673
        %s2676 = scalar_lea.vmem [#allocation4], 2
        %v2677 = vld [vmem:[%s2676] sm:$0x1]
        %s2678 = scalar_lea.vmem %s7, 256
        %v2679 = vld [vmem:[%s2678] sm:$0xff]
        %v2680 = vld [vmem:[%s2678 + $0x8] sm:$0xff]
        %v2681 = vld [vmem:[%s2678 + $0x10] sm:$0xff]
        %v2682 = vld [vmem:[%s2678 + $0x18] sm:$0xff]
        %v2683 = vld [vmem:[%s2678 + $0x20] sm:$0xff]
        %v2684 = vld [vmem:[%s2678 + $0x28] sm:$0xff]
        %v2685 = vld [vmem:[%s2678 + $0x30] sm:$0xff]
        %v2686 = vld [vmem:[%s2678 + $0x38] sm:$0xff]
        %v2687 = vld [vmem:[%s2678 + $0x40] sm:$0xff]
        %v2688 = vld [vmem:[%s2678 + $0x48] sm:$0xff]
        %v2689 = vld [vmem:[%s2678 + $0x50] sm:$0xff]
        %v2690 = vld [vmem:[%s2678 + $0x58] sm:$0xff]
        %v2691 = vld [vmem:[%s2678 + $0x60] sm:$0xff]
        %v2692 = vld [vmem:[%s2678 + $0x68] sm:$0xff]
        %v2693 = vld [vmem:[%s2678 + $0x70] sm:$0xff]
        %v2694 = vld [vmem:[%s2678 + $0x78] sm:$0xff]
        %2695 = vmatpush.msra.mxu0 %v2694
        %2696 = vmatpush.msra.mxu0 %v2693
        %2697 = vmatpush.msra.mxu0 %v2692
        %2698 = vmatpush.msra.mxu0 %v2691
        %2699 = vmatpush.msra.mxu0 %v2690
        %2700 = vmatpush.msra.mxu0 %v2689
        %2701 = vmatpush.msra.mxu0 %v2688
        %2702 = vmatpush.msra.mxu0 %v2687
        %2703 = vmatpush.msra.mxu0 %v2686
        %2704 = vmatpush.msra.mxu0 %v2685
        %2705 = vmatpush.msra.mxu0 %v2684
        %2706 = vmatpush.msra.mxu0 %v2683
        %2707 = vmatpush.msra.mxu0 %v2682
        %2708 = vmatpush.msra.mxu0 %v2681
        %2709 = vmatpush.msra.mxu0 %v2680
        %2710 = vmatpush.msra.mxu0 %v2679
        %2711 = vmatmul.f32.gmra.mxu0 %v2677
        %v2712 = vpop.f32.mrf.mxu0
        %v2713 = vadd.f32 0.0, %v2712
        %2714 = vdwg.mxu0
        %v2715 = vadd.f32 %v2675, %v2713
        %v2716 = vld [vmem:[%s2676 + $0x1] sm:$0x1]
        %s2717 = scalar_lea.vmem %s7, 384
        %v2718 = vld [vmem:[%s2717] sm:$0xff]
        %v2719 = vld [vmem:[%s2717 + $0x8] sm:$0xff]
        %v2720 = vld [vmem:[%s2717 + $0x10] sm:$0xff]
        %v2721 = vld [vmem:[%s2717 + $0x18] sm:$0xff]
        %v2722 = vld [vmem:[%s2717 + $0x20] sm:$0xff]
        %v2723 = vld [vmem:[%s2717 + $0x28] sm:$0xff]
        %v2724 = vld [vmem:[%s2717 + $0x30] sm:$0xff]
        %v2725 = vld [vmem:[%s2717 + $0x38] sm:$0xff]
        %v2726 = vld [vmem:[%s2717 + $0x40] sm:$0xff]
        %v2727 = vld [vmem:[%s2717 + $0x48] sm:$0xff]
        %v2728 = vld [vmem:[%s2717 + $0x50] sm:$0xff]
        %v2729 = vld [vmem:[%s2717 + $0x58] sm:$0xff]
        %v2730 = vld [vmem:[%s2717 + $0x60] sm:$0xff]
        %v2731 = vld [vmem:[%s2717 + $0x68] sm:$0xff]
        %v2732 = vld [vmem:[%s2717 + $0x70] sm:$0xff]
        %v2733 = vld [vmem:[%s2717 + $0x78] sm:$0xff]
        %2734 = vmatpush.msra.mxu0 %v2733
        %2735 = vmatpush.msra.mxu0 %v2732
        %2736 = vmatpush.msra.mxu0 %v2731
        %2737 = vmatpush.msra.mxu0 %v2730
        %2738 = vmatpush.msra.mxu0 %v2729
        %2739 = vmatpush.msra.mxu0 %v2728
        %2740 = vmatpush.msra.mxu0 %v2727
        %2741 = vmatpush.msra.mxu0 %v2726
        %2742 = vmatpush.msra.mxu0 %v2725
        %2743 = vmatpush.msra.mxu0 %v2724
        %2744 = vmatpush.msra.mxu0 %v2723
        %2745 = vmatpush.msra.mxu0 %v2722
        %2746 = vmatpush.msra.mxu0 %v2721
        %2747 = vmatpush.msra.mxu0 %v2720
        %2748 = vmatpush.msra.mxu0 %v2719
        %2749 = vmatpush.msra.mxu0 %v2718
        %2750 = vmatmul.f32.gmra.mxu0 %v2716
        %v2751 = vpop.f32.mrf.mxu0
        %v2752 = vadd.f32 0.0, %v2751
        %2753 = vdwg.mxu0
        %v2754 = vadd.f32 %v2715, %v2752
        %vm2755 = vcmask 73728
        %v2756 = vsel %vm2755, %v2754, -inf
        %2757 = vmax.xlane.f32.xlu0 %v2756
        %v2758 = vpop.xlane.xlu0 %2757
        %v2759 = vsub.f32 %v2754, %v2758
        %v2760 = vmul.f32 %v2759, 1.442695
        %v2761 = vpow.pop %v2760
        %v2762 = vsel %vm2755, %v2761, 0.0
        %2763 = vadd.xlane.f32.xlu0 %v2762
        %v2764 = vpop.xlane.xlu0 %2763
        %v2765 = vrcp.pop %v2764
        %v2766 = vmul.f32 %v2764, %v2765
        %v2767 = vsub.f32 1.0, %v2766
        %v2768 = vmul.f32 %v2765, %v2767
        %v2769 = vadd.f32 %v2765, %v2768
        %vm2770 = vweird.f32 %v2764
        %vm2771 = vweird.f32 %v2765
        %vm2772 = vmor %vm2770, %vm2771
        %v2773 = vsel %vm2772, %v2765, %v2769
        %v2774 = vand.u32 2147483647, %v2764
        %vm2775 = vcmp.eq.f32.partialorder %v2774, 8.507059e+37
        %v2776 = vand.u32 %v2764, 2147483648
        %v2777 = vor.u32 1.1754944e-38, %v2776
        %v2778 = vsel %vm2775, %v2777, %v2773
        %v2779 = vmul.f32 %v2761, %v2778
        %2780 = vst.msk [vmem:[%s324] sm:$0x1] %vm2755, %v2779
        %s2781 = sand.u32 %s225, 1
        %s2782 = scalar_lea.sflag [#allocation6], %s2781
        %s2783 = sand.u32 %s225, 1
        %s2784 = scalar_lea.vmem [#allocation5], %s2783
        // Predicated region
        $region78: #{net_forward.1} parent=55 // pred_check
          %p2785 = pneg %p235
        $region79: #{net_forward.1} parent=55 // pred_check_branch
          %2787 = sbr.rel (%p2785) target = $region81
        $region80: #{net_forward.1} parent=55 // pred_region
          %2789 = vsyncadd %s2782, 0
          %s2790 = scalar_lea.hbm %s9, %s23
          %s2792 = sshll.u32 %s2784, 4
          %s2793 = int_to_ptr.vmem [resolvable:$true] %s2792
          %s2794 = sshll.u32 %s2790, 4
          %s2795 = int_to_ptr.hbm [resolvable:$true] %s2794
          %2797 = dma.vmem_to_hbm [thread:$0]  %s2793, 16, %s2795, %s2782
        $region81: #{net_forward.1} parent=55 // pred_fallthru
          _
      $region56: #{net_forward.1} parent=5 // pred_fallthru
        _
      %p2798 = scmp.le.s32.totalorder 2, %s18
      // Predicated region
      $region82: #{net_forward.1} parent=5 // pred_check
        %p2799 = pneg %p2798
      $region83: #{net_forward.1} parent=5 // pred_check_branch
        %2801 = sbr.rel (%p2799) target = $region85
      $region84: #{net_forward.1} parent=5 // pred_region
        %s2802 = ssub.s32 %s18, 2
        // Predicated region
        $region86: #{net_forward.1} parent=84 // pred_check
          %p2803 = pneg %p241
        $region87: #{net_forward.1} parent=84 // pred_check_branch
          %2805 = sbr.rel (%p2803) target = $region89
        $region88: #{net_forward.1} parent=84 // pred_region
          %s2806 = sand.u32 %s226, 1
          %s2807 = scalar_lea.sflag [#allocation6], %s2806
          %s2808 = sand.u32 %s226, 1
          %s2809 = scalar_lea.vmem [#allocation5], %s2808
          %2811 = dma.done %s2807, 16
        $region89: #{net_forward.1} parent=84 // pred_fallthru
          _
      $region85: #{net_forward.1} parent=5 // pred_fallthru
        _
    $region6: #{net_forward.1} parent=1 // loop_footer
      %s22 = sadd.s32 1, %s18
    $region7: #{net_forward.1} parent=1 // loop_footer_branch
      %17 = sbr.rel target = $region3
    $region8: #{net_forward.1} parent=1 // loop_exit
      _
    %2812 = vsyncpa [#allocation6], 1
    %s2813 = scalar_lea.sflag [#allocation6], 1
    %2814 = vsyncpa %s2813, 1

</llo_original>
